<compile_context>
chip_gen: v6e
topology: v6e:2x2x1
jax: 0.10.0
libtpu: 0.0.40
codegen_flags: <defaults>
</compile_context>

<pallas_src>
import functools
import math

import jax
import jax.numpy as jnp
from jax.experimental import pallas as pl
from jax.experimental.pallas import tpu as pltpu


# ----------------------------- Pallas kernels ------------------------------

def _attn_block_kernel(q_ref, kv_ref, mask_ref, wqkv_ref, wo_ref, bqkv_ref,
                       misc_ref, o_ref, *, n_head, scale, eps):
    """Fused: per-head Q/K/V proj -> MHA -> out proj -> +residual -> LN."""
    B, Sq, D = q_ref.shape
    Sk = kv_ref.shape[1]
    dk = D // n_head
    M, Mk = B * Sq, B * Sk

    x = q_ref[...]                              # [B, Sq, D] bf16 (residual too)
    xm = x.reshape(M, D)                        # merge leading dims only
    srcm = kv_ref[...].reshape(Mk, D)           # [Mk, D] bf16
    masked = mask_ref[...] == 0                 # [B, Sq, Sk]; 1 = keep, 0 = mask

    acc = jnp.zeros((M, D), jnp.float32)        # output-projection accumulator
    for h in range(n_head):                     # unrolled; heads never on lanes
        # Per-head projections: full-width (D) contraction, f32 accumulation.
        qh = jnp.dot(xm, wqkv_ref[0, h], preferred_element_type=jnp.float32)
        kh = jnp.dot(srcm, wqkv_ref[1, h], preferred_element_type=jnp.float32)
        vh = jnp.dot(srcm, wqkv_ref[2, h], preferred_element_type=jnp.float32)
        q3 = (qh + bqkv_ref[0, h]).reshape(B, Sq, dk).astype(jnp.bfloat16)
        k3 = (kh + bqkv_ref[1, h]).reshape(B, Sk, dk).astype(jnp.bfloat16)
        v3 = (vh + bqkv_ref[2, h]).reshape(B, Sk, dk).astype(jnp.bfloat16)

        # Scores + softmax in f32; masked_fill(mask == 0, -10000) semantics.
        s = jnp.einsum("bqd,bkd->bqk", q3, k3,
                       preferred_element_type=jnp.float32) * scale
        s = jnp.where(masked, jnp.float32(-10000.0), s)
        s = s - jnp.max(s, axis=-1, keepdims=True)
        p = jnp.exp(s)
        p = p / jnp.sum(p, axis=-1, keepdims=True)        # exact division

        ctx = jnp.einsum("bqk,bkd->bqd", p.astype(jnp.bfloat16), v3,
                         preferred_element_type=jnp.float32)   # [B, Sq, dk]
        acc = acc + jnp.dot(ctx.reshape(M, dk).astype(jnp.bfloat16),
                            wo_ref[h], preferred_element_type=jnp.float32)

    # out bias + residual + LayerNorm (biased variance), all f32.
    y = acc + misc_ref[0:1, :] + xm.astype(jnp.float32)
    mean = jnp.mean(y, axis=-1, keepdims=True)
    var = jnp.mean((y - mean) ** 2, axis=-1, keepdims=True)
    yn = (misc_ref[1:2, :] * (y - mean) * jax.lax.rsqrt(var + eps)
          + misc_ref[2:3, :])
    o_ref[...] = yn.reshape(B, Sq, D).astype(o_ref.dtype)


def _ffn_block_kernel(x_ref, w1_ref, b1_ref, w2_ref, misc_ref, o_ref, *, eps):
    """Fused per row-tile: linear -> relu -> linear -> +residual -> LN."""
    x = x_ref[...]                                          # [tm, D] bf16
    h = jnp.dot(x, w1_ref[...], preferred_element_type=jnp.float32) + b1_ref[...]
    h = jnp.maximum(h, jnp.float32(0.0))
    y = jnp.dot(h.astype(jnp.bfloat16), w2_ref[...],
                preferred_element_type=jnp.float32) + misc_ref[0:1, :]
    y = y + x.astype(jnp.float32)
    mean = jnp.mean(y, axis=-1, keepdims=True)
    var = jnp.mean((y - mean) ** 2, axis=-1, keepdims=True)
    o_ref[...] = (misc_ref[1:2, :] * (y - mean) * jax.lax.rsqrt(var + eps)
                  + misc_ref[2:3, :]).astype(o_ref.dtype)


# ------------------------------ wrappers ------------------------------------

def attention_block(q_src, kv_src, mask, p, gamma, beta, *, n_head, eps=1e-12):
    """Fused MHA + residual + LayerNorm.  Residual == the query source."""
    B, Sq, D = q_src.shape
    Sk = kv_src.shape[1]
    dk = D // n_head
    M, Mk = B * Sq, B * Sk
    scale = 1.0 / math.sqrt(dk)

    mask3 = mask.reshape(B, Sq, Sk).astype(jnp.bfloat16)    # slim mask stream
    misc = jnp.stack([p["bo"], gamma, beta], axis=0).astype(jnp.float32)

    flops = 4 * M * D * D + 4 * Mk * D * D + 4 * B * Sq * Sk * D
    bytes_accessed = (2 * (2 * B * Sq * D + B * Sk * D + B * Sq * Sk)
                      + 2 * 4 * D * D + 4 * (3 * D + 3 * n_head * dk))

    # Single invocation (no grid): whole (tiny) batch in VMEM, lane-dense
    # [B, Sq, D] output block with D a multiple of 128.
    return pl.pallas_call(
        functools.partial(_attn_block_kernel,
                          n_head=n_head, scale=scale, eps=eps),
        out_shape=jax.ShapeDtypeStruct((B, Sq, D), jnp.bfloat16),
        cost_estimate=pl.CostEstimate(
            flops=flops,
            transcendentals=B * n_head * Sq * Sk + M,
            bytes_accessed=bytes_accessed),
    )(q_src, kv_src, mask3, p["wqkv_h"], p["wo_h"], p["bqkv_h"], misc)


def ffn_block(x, w1, b1, w2, b2, gamma, beta, *, eps=1e-12, max_rows=256):
    """Fused position-wise FFN + residual + LayerNorm, tiled over rows."""
    B, S, D = x.shape
    HID = w1.shape[1]
    M = B * S
    x2 = x.reshape(M, D)

    tm = M if M <= max_rows else max_rows
    if tm % 8 != 0 or M % tm != 0:
        tm = M                                   # fall back to one full block
    grid = (M // tm,)
    misc = jnp.stack([b2, gamma, beta], axis=0).astype(jnp.float32)

    out = pl.pallas_call(
        functools.partial(_ffn_block_kernel, eps=eps),
        out_shape=jax.ShapeDtypeStruct((M, D), jnp.float32),
        grid=grid,
        in_specs=[
            pl.BlockSpec((tm, D), lambda i: (i, 0)),     # x tile (+ residual)
            pl.BlockSpec((D, HID), lambda i: (0, 0)),    # w1 (bf16, resident)
            pl.BlockSpec((1, HID), lambda i: (0, 0)),    # b1
            pl.BlockSpec((HID, D), lambda i: (0, 0)),    # w2 (bf16, resident)
            pl.BlockSpec((3, D), lambda i: (0, 0)),      # b2 | gamma | beta
        ],
        out_specs=pl.BlockSpec((tm, D), lambda i: (i, 0)),
        compiler_params=pltpu.CompilerParams(
            dimension_semantics=("parallel",)),
        cost_estimate=pl.CostEstimate(
            flops=4 * M * D * HID,
            transcendentals=M,
            bytes_accessed=2 * (M * D + 2 * D * HID) + 4 * M * D),
    )(x2, w1, b1.reshape(1, HID), w2, misc)
    return out.reshape(B, S, D)


def decoder_layer(enc, dec, trg_mask, src_mask, params, *, n_head):
    dec16 = dec.astype(jnp.bfloat16)
    # 1) masked self-attention + dropout(identity) + add&norm (residual = dec)
    out = attention_block(dec16, dec16, trg_mask, params["self_attn"],
                          params["ln1_g"], params["ln1_b"], n_head=n_head)
    # 2) encoder-decoder cross attention + dropout(identity) + add&norm
    if enc is not None:
        enc16 = enc.astype(jnp.bfloat16)
        out = attention_block(out, enc16, src_mask, params["cross_attn"],
                              params["ln2_g"], params["ln2_b"], n_head=n_head)
    # 3) position-wise FFN + dropout(identity) + add&norm (final output f32)
    out = ffn_block(out, params["ffn_w1"], params["ffn_b1"],
                    params["ffn_w2"], params["ffn_b2"],
                    params["ln3_g"], params["ln3_b"])
    return out


# ------------------------------ param setup ---------------------------------

def make_attn_params(key, d_model, n_head):
    dk = d_model // n_head
    ks = jax.random.split(key, 8)
    s = 0.02
    wq, wk, wv, wo = (s * jax.random.normal(k, (d_model, d_model), jnp.float32)
                      for k in ks[:4])
    bq, bk, bv, bo = (s * jax.random.normal(k, (d_model,), jnp.float32)
                      for k in ks[4:])

    # Head-split done ONCE on the host side so the kernel never lane-slices:
    #   wq[:, h*dk:(h+1)*dk] -> wq_h[h]  (heads on a leading axis).
    def split_cols(w):
        return jnp.transpose(w.reshape(d_model, n_head, dk), (1, 0, 2))

    wqkv_h = jnp.stack([split_cols(wq), split_cols(wk), split_cols(wv)])
    bqkv_h = jnp.stack([bq.reshape(n_head, 1, dk),
                        bk.reshape(n_head, 1, dk),
                        bv.reshape(n_head, 1, dk)])
    return {
        "wqkv_h": wqkv_h.astype(jnp.bfloat16),                     # [3,H,D,dk]
        "bqkv_h": bqkv_h.astype(jnp.float32),                      # [3,H,1,dk]
        "wo_h": wo.reshape(n_head, dk, d_model).astype(jnp.bfloat16),  # [H,dk,D]
        "bo": bo,                                                  # [D]
    }


def make_decoder_params(key, d_model, hidden_size, n_head):
    k_self, k_cross, k_f1, k_f2, k_b1, k_b2 = jax.random.split(key, 6)
    s = 0.02
    return {
        "self_attn": make_attn_params(k_self, d_model, n_head),
        "cross_attn": make_attn_params(k_cross, d_model, n_head),
        "ln1_g": jnp.ones((d_model,), jnp.float32),
        "ln1_b": jnp.zeros((d_model,), jnp.float32),
        "ln2_g": jnp.ones((d_model,), jnp.float32),
        "ln2_b": jnp.zeros((d_model,), jnp.float32),
        "ln3_g": jnp.ones((d_model,), jnp.float32),
        "ln3_b": jnp.zeros((d_model,), jnp.float32),
        "ffn_w1": (s * jax.random.normal(
            k_f1, (d_model, hidden_size), jnp.float32)).astype(jnp.bfloat16),
        "ffn_b1": s * jax.random.normal(k_b1, (hidden_size,), jnp.float32),
        "ffn_w2": (s * jax.random.normal(
            k_f2, (hidden_size, d_model), jnp.float32)).astype(jnp.bfloat16),
        "ffn_b2": s * jax.random.normal(k_b2, (d_model,), jnp.float32),
    }


# --------------------------------- main --------------------------------------

if __name__ == "__main__":
    B, S, D = 2, 8, 128         # batch, seq, d_model (multiple of 128: lane-dense)
    H, HIDDEN = 4, 256          # head_nums, hidden_size
    PROB_DROP = 0.1             # unused at inference (dropout == identity)

    root = jax.random.PRNGKey(0)
    k_params, k_dec, k_enc = jax.random.split(root, 3)

    params = make_decoder_params(k_params, D, HIDDEN, H)
    dec = jax.random.normal(k_dec, (B, S, D), jnp.float32)
    enc = jax.random.normal(k_enc, (B, S, D), jnp.float32)

    # causal target mask [B,1,S,S], full source mask [B,1,S,S] (1=keep, 0=mask)
    causal = jnp.tril(jnp.ones((S, S), jnp.int32))
    trg_mask = jnp.broadcast_to(causal, (B, 1, S, S)).astype(jnp.int32)
    src_mask = jnp.ones((B, 1, S, S), jnp.int32)

    # n_head is bound statically (it drives Python-level loop unrolling/shapes)
    fwd = jax.jit(functools.partial(decoder_layer, n_head=H))
    out = fwd(enc, dec, trg_mask, src_mask, params)
    out = jax.block_until_ready(out)

    assert out.shape == (B, S, D)
    assert bool(jnp.all(jnp.isfinite(out)))
    print("KERNEL_OK")
</pallas_src>

<mosaic_0001>
module attributes {stable_mosaic.version = 11 : i64} {
  func.func @_ffn_block_kernel(%arg0: i32, %arg1: memref<16x128xbf16, #tpu.memory_space<vmem>>, %arg2: memref<128x256xbf16, #tpu.memory_space<vmem>>, %arg3: memref<1x256xf32, #tpu.memory_space<vmem>>, %arg4: memref<256x128xbf16, #tpu.memory_space<vmem>>, %arg5: memref<3x128xf32, #tpu.memory_space<vmem>>, %arg6: memref<16x128xf32, #tpu.memory_space<vmem>>) attributes {dimension_semantics = [#tpu.dimension_semantics<parallel>], iteration_bounds = array<i64: 1>, scalar_prefetch = 0 : i64, scratch_operands = 0 : i64, tpu.core_type = #tpu.core_type<tc>, window_params = [{transform_indices = @transform_0, window_bounds = array<i64: 16, 128>}, {pipeline_mode = #tpu.pipeline_mode<synchronous>, transform_indices = @transform_1, window_bounds = array<i64: 128, 256>}, {pipeline_mode = #tpu.pipeline_mode<synchronous>, transform_indices = @transform_2, window_bounds = array<i64: 1, 256>}, {pipeline_mode = #tpu.pipeline_mode<synchronous>, transform_indices = @transform_3, window_bounds = array<i64: 256, 128>}, {pipeline_mode = #tpu.pipeline_mode<synchronous>, transform_indices = @transform_4, window_bounds = array<i64: 3, 128>}, {transform_indices = @transform_5, window_bounds = array<i64: 16, 128>}]} {
    %c0 = arith.constant 0 : index
    %c0_0 = arith.constant 0 : index
    %0 = vector.load %arg1[%c0, %c0_0] : memref<16x128xbf16, #tpu.memory_space<vmem>>, vector<16x128xbf16>
    %c0_1 = arith.constant 0 : index
    %c0_2 = arith.constant 0 : index
    %1 = vector.load %arg2[%c0_1, %c0_2] : memref<128x256xbf16, #tpu.memory_space<vmem>>, vector<128x256xbf16>
    %cst = arith.constant dense<0.000000e+00> : vector<16x256xf32>
    %2 = tpu.matmul %0, %1, %cst {dimension_numbers = #tpu.dot_dimension_numbers<[1], [0], [0], [1], [0, 0, 1, 1], [], []>} : vector<16x128xbf16>, vector<128x256xbf16>, vector<16x256xf32> -> vector<16x256xf32>
    %c0_3 = arith.constant 0 : index
    %c0_4 = arith.constant 0 : index
    %3 = vector.load %arg3[%c0_3, %c0_4] : memref<1x256xf32, #tpu.memory_space<vmem>>, vector<1x256xf32>
    %4 = vector.broadcast %3 : vector<1x256xf32> to vector<16x256xf32>
    %5 = arith.addf %2, %4 : vector<16x256xf32>
    %cst_5 = arith.constant 0.000000e+00 : f32
    %6 = vector.broadcast %cst_5 : f32 to vector<16x256xf32>
    %7 = arith.maximumf %5, %6 : vector<16x256xf32>
    %8 = arith.truncf %7 : vector<16x256xf32> to vector<16x256xbf16>
    %c0_6 = arith.constant 0 : index
    %c0_7 = arith.constant 0 : index
    %9 = vector.load %arg4[%c0_6, %c0_7] : memref<256x128xbf16, #tpu.memory_space<vmem>>, vector<256x128xbf16>
    %cst_8 = arith.constant dense<0.000000e+00> : vector<16x128xf32>
    %10 = tpu.matmul %8, %9, %cst_8 {dimension_numbers = #tpu.dot_dimension_numbers<[1], [0], [0], [1], [0, 0, 1, 1], [], []>} : vector<16x256xbf16>, vector<256x128xbf16>, vector<16x128xf32> -> vector<16x128xf32>
    %c0_9 = arith.constant 0 : index
    %c0_10 = arith.constant 0 : index
    %11 = vector.load %arg5[%c0_9, %c0_10] : memref<3x128xf32, #tpu.memory_space<vmem>>, vector<1x128xf32>
    %12 = vector.broadcast %11 : vector<1x128xf32> to vector<16x128xf32>
    %13 = arith.addf %10, %12 : vector<16x128xf32>
    %14 = arith.extf %0 : vector<16x128xbf16> to vector<16x128xf32>
    %15 = arith.addf %13, %14 : vector<16x128xf32>
    %cst_11 = arith.constant dense<0.000000e+00> : vector<16xf32>
    %16 = vector.multi_reduction <add>, %15, %cst_11 [1] : vector<16x128xf32> to vector<16xf32>
    %17 = vector.shape_cast %16 : vector<16xf32> to vector<16x1xf32>
    %cst_12 = arith.constant 1.280000e+02 : f32
    %18 = vector.broadcast %cst_12 : f32 to vector<16x1xf32>
    %19 = arith.divf %17, %18 : vector<16x1xf32>
    %20 = vector.broadcast %19 : vector<16x1xf32> to vector<16x128xf32>
    %21 = arith.subf %15, %20 : vector<16x128xf32>
    %22 = arith.mulf %21, %21 : vector<16x128xf32>
    %cst_13 = arith.constant dense<0.000000e+00> : vector<16xf32>
    %23 = vector.multi_reduction <add>, %22, %cst_13 [1] : vector<16x128xf32> to vector<16xf32>
    %24 = vector.shape_cast %23 : vector<16xf32> to vector<16x1xf32>
    %cst_14 = arith.constant 1.280000e+02 : f32
    %25 = vector.broadcast %cst_14 : f32 to vector<16x1xf32>
    %26 = arith.divf %24, %25 : vector<16x1xf32>
    %c1 = arith.constant 1 : index
    %c0_15 = arith.constant 0 : index
    %27 = vector.load %arg5[%c1, %c0_15] : memref<3x128xf32, #tpu.memory_space<vmem>>, vector<1x128xf32>
    %28 = vector.broadcast %19 : vector<16x1xf32> to vector<16x128xf32>
    %29 = arith.subf %15, %28 : vector<16x128xf32>
    %30 = vector.broadcast %27 : vector<1x128xf32> to vector<16x128xf32>
    %31 = arith.mulf %30, %29 : vector<16x128xf32>
    %cst_16 = arith.constant 9.99999996E-13 : f32
    %32 = vector.broadcast %cst_16 : f32 to vector<16x1xf32>
    %33 = arith.addf %26, %32 : vector<16x1xf32>
    %34 = math.rsqrt %33 : vector<16x1xf32>
    %35 = vector.broadcast %34 : vector<16x1xf32> to vector<16x128xf32>
    %36 = arith.mulf %31, %35 : vector<16x128xf32>
    %c2 = arith.constant 2 : index
    %c0_17 = arith.constant 0 : index
    %37 = vector.load %arg5[%c2, %c0_17] : memref<3x128xf32, #tpu.memory_space<vmem>>, vector<1x128xf32>
    %38 = vector.broadcast %37 : vector<1x128xf32> to vector<16x128xf32>
    %39 = arith.addf %36, %38 : vector<16x128xf32>
    %c0_18 = arith.constant 0 : index
    %c0_19 = arith.constant 0 : index
    %40 = vector.load %arg6[%c0_18, %c0_19] : memref<16x128xf32, #tpu.memory_space<vmem>>, vector<16x128xf32>
    tpu.vector_store %arg6[%c0_18, %c0_19], %39 {strides = array<i32>} : memref<16x128xf32, #tpu.memory_space<vmem>>, vector<16x128xf32>,
    return
  }
  func.func @transform_0(%arg0: i32) -> (i32, i32) {
    %c0_i32 = arith.constant 0 : i32
    %c0_i32_0 = arith.constant 0 : i32
    return %arg0, %c0_i32 : i32, i32
  }
  func.func @transform_1(%arg0: i32) -> (i32, i32) {
    %c0_i32 = arith.constant 0 : i32
    %c0_i32_0 = arith.constant 0 : i32
    %c0_i32_1 = arith.constant 0 : i32
    return %c0_i32, %c0_i32_0 : i32, i32
  }
  func.func @transform_2(%arg0: i32) -> (i32, i32) {
    %c0_i32 = arith.constant 0 : i32
    %c0_i32_0 = arith.constant 0 : i32
    %c0_i32_1 = arith.constant 0 : i32
    return %c0_i32, %c0_i32_0 : i32, i32
  }
  func.func @transform_3(%arg0: i32) -> (i32, i32) {
    %c0_i32 = arith.constant 0 : i32
    %c0_i32_0 = arith.constant 0 : i32
    %c0_i32_1 = arith.constant 0 : i32
    return %c0_i32, %c0_i32_0 : i32, i32
  }
  func.func @transform_4(%arg0: i32) -> (i32, i32) {
    %c0_i32 = arith.constant 0 : i32
    %c0_i32_0 = arith.constant 0 : i32
    %c0_i32_1 = arith.constant 0 : i32
    return %c0_i32, %c0_i32_0 : i32, i32
  }
  func.func @transform_5(%arg0: i32) -> (i32, i32) {
    %c0_i32 = arith.constant 0 : i32
    %c0_i32_0 = arith.constant 0 : i32
    return %arg0, %c0_i32 : i32, i32
  }
}

module attributes {stable_mosaic.version = 11 : i64} {
  func.func @_attn_block_kernel(%arg0: memref<2x8x128xbf16, #tpu.memory_space<vmem>>, %arg1: memref<2x8x128xbf16, #tpu.memory_space<vmem>>, %arg2: memref<2x8x8xbf16, #tpu.memory_space<vmem>>, %arg3: memref<3x4x128x32xbf16, #tpu.memory_space<vmem>>, %arg4: memref<4x32x128xbf16, #tpu.memory_space<vmem>>, %arg5: memref<3x4x1x32xf32, #tpu.memory_space<vmem>>, %arg6: memref<3x128xf32, #tpu.memory_space<vmem>>, %arg7: memref<2x8x128xbf16, #tpu.memory_space<vmem>>) attributes {dimension_semantics = [], scalar_prefetch = 0 : i64, scratch_operands = 0 : i64, tpu.core_type = #tpu.core_type<tc>} {
    %c0 = arith.constant 0 : index
    %c0_0 = arith.constant 0 : index
    %c0_1 = arith.constant 0 : index
    %0 = vector.load %arg0[%c0, %c0_0, %c0_1] : memref<2x8x128xbf16, #tpu.memory_space<vmem>>, vector<2x8x128xbf16>
    %1 = vector.shape_cast %0 : vector<2x8x128xbf16> to vector<16x128xbf16>
    %c0_2 = arith.constant 0 : index
    %c0_3 = arith.constant 0 : index
    %c0_4 = arith.constant 0 : index
    %2 = vector.load %arg1[%c0_2, %c0_3, %c0_4] : memref<2x8x128xbf16, #tpu.memory_space<vmem>>, vector<2x8x128xbf16>
    %3 = vector.shape_cast %2 : vector<2x8x128xbf16> to vector<16x128xbf16>
    %c0_5 = arith.constant 0 : index
    %c0_6 = arith.constant 0 : index
    %c0_7 = arith.constant 0 : index
    %4 = vector.load %arg2[%c0_5, %c0_6, %c0_7] : memref<2x8x8xbf16, #tpu.memory_space<vmem>>, vector<2x8x8xbf16>
    %cst = arith.constant 0.000000e+00 : bf16
    %5 = vector.broadcast %cst : bf16 to vector<2x8x8xbf16>
    %6 = arith.cmpf oeq, %4, %5 : vector<2x8x8xbf16>
    %cst_8 = arith.constant 0.000000e+00 : f32
    %7 = vector.broadcast %cst_8 : f32 to vector<16x128xf32>
    %c0_9 = arith.constant 0 : index
    %c0_10 = arith.constant 0 : index
    %c0_11 = arith.constant 0 : index
    %c0_12 = arith.constant 0 : index
    %8 = vector.load %arg3[%c0_9, %c0_10, %c0_11, %c0_12] : memref<3x4x128x32xbf16, #tpu.memory_space<vmem>>, vector<1x1x128x32xbf16>
    %9 = vector.shape_cast %8 : vector<1x1x128x32xbf16> to vector<128x32xbf16>
    %cst_13 = arith.constant dense<0.000000e+00> : vector<16x32xf32>
    %10 = tpu.matmul %1, %9, %cst_13 {dimension_numbers = #tpu.dot_dimension_numbers<[1], [0], [0], [1], [0, 0, 1, 1], [], []>} : vector<16x128xbf16>, vector<128x32xbf16>, vector<16x32xf32> -> vector<16x32xf32>
    %c1 = arith.constant 1 : index
    %c0_14 = arith.constant 0 : index
    %c0_15 = arith.constant 0 : index
    %c0_16 = arith.constant 0 : index
    %11 = vector.load %arg3[%c1, %c0_14, %c0_15, %c0_16] : memref<3x4x128x32xbf16, #tpu.memory_space<vmem>>, vector<1x1x128x32xbf16>
    %12 = vector.shape_cast %11 : vector<1x1x128x32xbf16> to vector<128x32xbf16>
    %cst_17 = arith.constant dense<0.000000e+00> : vector<16x32xf32>
    %13 = tpu.matmul %3, %12, %cst_17 {dimension_numbers = #tpu.dot_dimension_numbers<[1], [0], [0], [1], [0, 0, 1, 1], [], []>} : vector<16x128xbf16>, vector<128x32xbf16>, vector<16x32xf32> -> vector<16x32xf32>
    %c2 = arith.constant 2 : index
    %c0_18 = arith.constant 0 : index
    %c0_19 = arith.constant 0 : index
    %c0_20 = arith.constant 0 : index
    %14 = vector.load %arg3[%c2, %c0_18, %c0_19, %c0_20] : memref<3x4x128x32xbf16, #tpu.memory_space<vmem>>, vector<1x1x128x32xbf16>
    %15 = vector.shape_cast %14 : vector<1x1x128x32xbf16> to vector<128x32xbf16>
    %cst_21 = arith.constant dense<0.000000e+00> : vector<16x32xf32>
    %16 = tpu.matmul %3, %15, %cst_21 {dimension_numbers = #tpu.dot_dimension_numbers<[1], [0], [0], [1], [0, 0, 1, 1], [], []>} : vector<16x128xbf16>, vector<128x32xbf16>, vector<16x32xf32> -> vector<16x32xf32>
    %c0_22 = arith.constant 0 : index
    %c0_23 = arith.constant 0 : index
    %c0_24 = arith.constant 0 : index
    %c0_25 = arith.constant 0 : index
    %17 = vector.load %arg5[%c0_22, %c0_23, %c0_24, %c0_25] : memref<3x4x1x32xf32, #tpu.memory_space<vmem>>, vector<1x1x1x32xf32>
    %18 = vector.shape_cast %17 : vector<1x1x1x32xf32> to vector<1x32xf32>
    %19 = vector.broadcast %18 : vector<1x32xf32> to vector<16x32xf32>
    %20 = arith.addf %10, %19 : vector<16x32xf32>
    %21 = vector.shape_cast %20 : vector<16x32xf32> to vector<2x8x32xf32>
    %22 = arith.truncf %21 : vector<2x8x32xf32> to vector<2x8x32xbf16>
    %c1_26 = arith.constant 1 : index
    %c0_27 = arith.constant 0 : index
    %c0_28 = arith.constant 0 : index
    %c0_29 = arith.constant 0 : index
    %23 = vector.load %arg5[%c1_26, %c0_27, %c0_28, %c0_29] : memref<3x4x1x32xf32, #tpu.memory_space<vmem>>, vector<1x1x1x32xf32>
    %24 = vector.shape_cast %23 : vector<1x1x1x32xf32> to vector<1x32xf32>
    %25 = vector.broadcast %24 : vector<1x32xf32> to vector<16x32xf32>
    %26 = arith.addf %13, %25 : vector<16x32xf32>
    %27 = vector.shape_cast %26 : vector<16x32xf32> to vector<2x8x32xf32>
    %28 = arith.truncf %27 : vector<2x8x32xf32> to vector<2x8x32xbf16>
    %c2_30 = arith.constant 2 : index
    %c0_31 = arith.constant 0 : index
    %c0_32 = arith.constant 0 : index
    %c0_33 = arith.constant 0 : index
    %29 = vector.load %arg5[%c2_30, %c0_31, %c0_32, %c0_33] : memref<3x4x1x32xf32, #tpu.memory_space<vmem>>, vector<1x1x1x32xf32>
    %30 = vector.shape_cast %29 : vector<1x1x1x32xf32> to vector<1x32xf32>
    %31 = vector.broadcast %30 : vector<1x32xf32> to vector<16x32xf32>
    %32 = arith.addf %16, %31 : vector<16x32xf32>
    %33 = vector.shape_cast %32 : vector<16x32xf32> to vector<2x8x32xf32>
    %34 = arith.truncf %33 : vector<2x8x32xf32> to vector<2x8x32xbf16>
    "tpu.trace_start"() <{level = 10 : i32, message = "bqd,bkd->bqk"}> : () -> ()
    %cst_34 = arith.constant dense<0.000000e+00> : vector<2x8x8xf32>
    %35 = tpu.matmul %22, %28, %cst_34 {dimension_numbers = #tpu.dot_dimension_numbers<[2], [2], [1], [1], [0, 0, 0, 1, 1, 1], [0], [0]>} : vector<2x8x32xbf16>, vector<2x8x32xbf16>, vector<2x8x8xf32> -> vector<2x8x8xf32>
    "tpu.trace_stop"() : () -> ()
    %cst_35 = arith.constant 0.176776692 : f32
    %36 = vector.broadcast %cst_35 : f32 to vector<2x8x8xf32>
    %37 = arith.mulf %35, %36 : vector<2x8x8xf32>
    %cst_36 = arith.constant -1.000000e+04 : f32
    %38 = vector.broadcast %cst_36 : f32 to vector<2x8x8xf32>
    %39 = arith.select %6, %38, %37 : vector<2x8x8xi1>, vector<2x8x8xf32>
    %cst_37 = arith.constant dense<0xFF800000> : vector<2x8xf32>
    %40 = vector.multi_reduction <maximumf>, %39, %cst_37 [2] : vector<2x8x8xf32> to vector<2x8xf32>
    %41 = vector.shape_cast %40 : vector<2x8xf32> to vector<2x8x1xf32>
    %42 = vector.broadcast %41 : vector<2x8x1xf32> to vector<2x8x8xf32>
    %43 = arith.subf %39, %42 : vector<2x8x8xf32>
    %44 = math.exp %43 : vector<2x8x8xf32>
    %cst_38 = arith.constant dense<0.000000e+00> : vector<2x8xf32>
    %45 = vector.multi_reduction <add>, %44, %cst_38 [2] : vector<2x8x8xf32> to vector<2x8xf32>
    %46 = vector.shape_cast %45 : vector<2x8xf32> to vector<2x8x1xf32>
    %47 = vector.broadcast %46 : vector<2x8x1xf32> to vector<2x8x8xf32>
    %48 = arith.divf %44, %47 : vector<2x8x8xf32>
    %49 = arith.truncf %48 : vector<2x8x8xf32> to vector<2x8x8xbf16>
    "tpu.trace_start"() <{level = 10 : i32, message = "bqk,bkd->bqd"}> : () -> ()
    %cst_39 = arith.constant dense<0.000000e+00> : vector<2x8x32xf32>
    %50 = tpu.matmul %49, %34, %cst_39 {dimension_numbers = #tpu.dot_dimension_numbers<[2], [1], [1], [2], [0, 0, 0, 1, 1, 2], [0], [0]>} : vector<2x8x8xbf16>, vector<2x8x32xbf16>, vector<2x8x32xf32> -> vector<2x8x32xf32>
    "tpu.trace_stop"() : () -> ()
    %51 = vector.shape_cast %50 : vector<2x8x32xf32> to vector<16x32xf32>
    %52 = arith.truncf %51 : vector<16x32xf32> to vector<16x32xbf16>
    %c0_40 = arith.constant 0 : index
    %c0_41 = arith.constant 0 : index
    %c0_42 = arith.constant 0 : index
    %53 = vector.load %arg4[%c0_40, %c0_41, %c0_42] : memref<4x32x128xbf16, #tpu.memory_space<vmem>>, vector<1x32x128xbf16>
    %54 = vector.shape_cast %53 : vector<1x32x128xbf16> to vector<32x128xbf16>
    %cst_43 = arith.constant dense<0.000000e+00> : vector<16x128xf32>
    %55 = tpu.matmul %52, %54, %cst_43 {dimension_numbers = #tpu.dot_dimension_numbers<[1], [0], [0], [1], [0, 0, 1, 1], [], []>} : vector<16x32xbf16>, vector<32x128xbf16>, vector<16x128xf32> -> vector<16x128xf32>
    %56 = arith.addf %7, %55 : vector<16x128xf32>
    %c0_44 = arith.constant 0 : index
    %c1_45 = arith.constant 1 : index
    %c0_46 = arith.constant 0 : index
    %c0_47 = arith.constant 0 : index
    %57 = vector.load %arg3[%c0_44, %c1_45, %c0_46, %c0_47] : memref<3x4x128x32xbf16, #tpu.memory_space<vmem>>, vector<1x1x128x32xbf16>
    %58 = vector.shape_cast %57 : vector<1x1x128x32xbf16> to vector<128x32xbf16>
    %cst_48 = arith.constant dense<0.000000e+00> : vector<16x32xf32>
    %59 = tpu.matmul %1, %58, %cst_48 {dimension_numbers = #tpu.dot_dimension_numbers<[1], [0], [0], [1], [0, 0, 1, 1], [], []>} : vector<16x128xbf16>, vector<128x32xbf16>, vector<16x32xf32> -> vector<16x32xf32>
    %c1_49 = arith.constant 1 : index
    %c1_50 = arith.constant 1 : index
    %c0_51 = arith.constant 0 : index
    %c0_52 = arith.constant 0 : index
    %60 = vector.load %arg3[%c1_49, %c1_50, %c0_51, %c0_52] : memref<3x4x128x32xbf16, #tpu.memory_space<vmem>>, vector<1x1x128x32xbf16>
    %61 = vector.shape_cast %60 : vector<1x1x128x32xbf16> to vector<128x32xbf16>
    %cst_53 = arith.constant dense<0.000000e+00> : vector<16x32xf32>
    %62 = tpu.matmul %3, %61, %cst_53 {dimension_numbers = #tpu.dot_dimension_numbers<[1], [0], [0], [1], [0, 0, 1, 1], [], []>} : vector<16x128xbf16>, vector<128x32xbf16>, vector<16x32xf32> -> vector<16x32xf32>
    %c2_54 = arith.constant 2 : index
    %c1_55 = arith.constant 1 : index
    %c0_56 = arith.constant 0 : index
    %c0_57 = arith.constant 0 : index
    %63 = vector.load %arg3[%c2_54, %c1_55, %c0_56, %c0_57] : memref<3x4x128x32xbf16, #tpu.memory_space<vmem>>, vector<1x1x128x32xbf16>
    %64 = vector.shape_cast %63 : vector<1x1x128x32xbf16> to vector<128x32xbf16>
    %cst_58 = arith.constant dense<0.000000e+00> : vector<16x32xf32>
    %65 = tpu.matmul %3, %64, %cst_58 {dimension_numbers = #tpu.dot_dimension_numbers<[1], [0], [0], [1], [0, 0, 1, 1], [], []>} : vector<16x128xbf16>, vector<128x32xbf16>, vector<16x32xf32> -> vector<16x32xf32>
    %c0_59 = arith.constant 0 : index
    %c1_60 = arith.constant 1 : index
    %c0_61 = arith.constant 0 : index
    %c0_62 = arith.constant 0 : index
    %66 = vector.load %arg5[%c0_59, %c1_60, %c0_61, %c0_62] : memref<3x4x1x32xf32, #tpu.memory_space<vmem>>, vector<1x1x1x32xf32>
    %67 = vector.shape_cast %66 : vector<1x1x1x32xf32> to vector<1x32xf32>
    %68 = vector.broadcast %67 : vector<1x32xf32> to vector<16x32xf32>
    %69 = arith.addf %59, %68 : vector<16x32xf32>
    %70 = vector.shape_cast %69 : vector<16x32xf32> to vector<2x8x32xf32>
    %71 = arith.truncf %70 : vector<2x8x32xf32> to vector<2x8x32xbf16>
    %c1_63 = arith.constant 1 : index
    %c1_64 = arith.constant 1 : index
    %c0_65 = arith.constant 0 : index
    %c0_66 = arith.constant 0 : index
    %72 = vector.load %arg5[%c1_63, %c1_64, %c0_65, %c0_66] : memref<3x4x1x32xf32, #tpu.memory_space<vmem>>, vector<1x1x1x32xf32>
    %73 = vector.shape_cast %72 : vector<1x1x1x32xf32> to vector<1x32xf32>
    %74 = vector.broadcast %73 : vector<1x32xf32> to vector<16x32xf32>
    %75 = arith.addf %62, %74 : vector<16x32xf32>
    %76 = vector.shape_cast %75 : vector<16x32xf32> to vector<2x8x32xf32>
    %77 = arith.truncf %76 : vector<2x8x32xf32> to vector<2x8x32xbf16>
    %c2_67 = arith.constant 2 : index
    %c1_68 = arith.constant 1 : index
    %c0_69 = arith.constant 0 : index
    %c0_70 = arith.constant 0 : index
    %78 = vector.load %arg5[%c2_67, %c1_68, %c0_69, %c0_70] : memref<3x4x1x32xf32, #tpu.memory_space<vmem>>, vector<1x1x1x32xf32>
    %79 = vector.shape_cast %78 : vector<1x1x1x32xf32> to vector<1x32xf32>
    %80 = vector.broadcast %79 : vector<1x32xf32> to vector<16x32xf32>
    %81 = arith.addf %65, %80 : vector<16x32xf32>
    %82 = vector.shape_cast %81 : vector<16x32xf32> to vector<2x8x32xf32>
    %83 = arith.truncf %82 : vector<2x8x32xf32> to vector<2x8x32xbf16>
    "tpu.trace_start"() <{level = 10 : i32, message = "bqd,bkd->bqk"}> : () -> ()
    %cst_71 = arith.constant dense<0.000000e+00> : vector<2x8x8xf32>
    %84 = tpu.matmul %71, %77, %cst_71 {dimension_numbers = #tpu.dot_dimension_numbers<[2], [2], [1], [1], [0, 0, 0, 1, 1, 1], [0], [0]>} : vector<2x8x32xbf16>, vector<2x8x32xbf16>, vector<2x8x8xf32> -> vector<2x8x8xf32>
    "tpu.trace_stop"() : () -> ()
    %cst_72 = arith.constant 0.176776692 : f32
    %85 = vector.broadcast %cst_72 : f32 to vector<2x8x8xf32>
    %86 = arith.mulf %84, %85 : vector<2x8x8xf32>
    %cst_73 = arith.constant -1.000000e+04 : f32
    %87 = vector.broadcast %cst_73 : f32 to vector<2x8x8xf32>
    %88 = arith.select %6, %87, %86 : vector<2x8x8xi1>, vector<2x8x8xf32>
    %cst_74 = arith.constant dense<0xFF800000> : vector<2x8xf32>
    %89 = vector.multi_reduction <maximumf>, %88, %cst_74 [2] : vector<2x8x8xf32> to vector<2x8xf32>
    %90 = vector.shape_cast %89 : vector<2x8xf32> to vector<2x8x1xf32>
    %91 = vector.broadcast %90 : vector<2x8x1xf32> to vector<2x8x8xf32>
    %92 = arith.subf %88, %91 : vector<2x8x8xf32>
    %93 = math.exp %92 : vector<2x8x8xf32>
    %cst_75 = arith.constant dense<0.000000e+00> : vector<2x8xf32>
    %94 = vector.multi_reduction <add>, %93, %cst_75 [2] : vector<2x8x8xf32> to vector<2x8xf32>
    %95 = vector.shape_cast %94 : vector<2x8xf32> to vector<2x8x1xf32>
    %96 = vector.broadcast %95 : vector<2x8x1xf32> to vector<2x8x8xf32>
    %97 = arith.divf %93, %96 : vector<2x8x8xf32>
    %98 = arith.truncf %97 : vector<2x8x8xf32> to vector<2x8x8xbf16>
    "tpu.trace_start"() <{level = 10 : i32, message = "bqk,bkd->bqd"}> : () -> ()
    %cst_76 = arith.constant dense<0.000000e+00> : vector<2x8x32xf32>
    %99 = tpu.matmul %98, %83, %cst_76 {dimension_numbers = #tpu.dot_dimension_numbers<[2], [1], [1], [2], [0, 0, 0, 1, 1, 2], [0], [0]>} : vector<2x8x8xbf16>, vector<2x8x32xbf16>, vector<2x8x32xf32> -> vector<2x8x32xf32>
    "tpu.trace_stop"() : () -> ()
    %100 = vector.shape_cast %99 : vector<2x8x32xf32> to vector<16x32xf32>
    %101 = arith.truncf %100 : vector<16x32xf32> to vector<16x32xbf16>
    %c1_77 = arith.constant 1 : index
    %c0_78 = arith.constant 0 : index
    %c0_79 = arith.constant 0 : index
    %102 = vector.load %arg4[%c1_77, %c0_78, %c0_79] : memref<4x32x128xbf16, #tpu.memory_space<vmem>>, vector<1x32x128xbf16>
    %103 = vector.shape_cast %102 : vector<1x32x128xbf16> to vector<32x128xbf16>
    %cst_80 = arith.constant dense<0.000000e+00> : vector<16x128xf32>
    %104 = tpu.matmul %101, %103, %cst_80 {dimension_numbers = #tpu.dot_dimension_numbers<[1], [0], [0], [1], [0, 0, 1, 1], [], []>} : vector<16x32xbf16>, vector<32x128xbf16>, vector<16x128xf32> -> vector<16x128xf32>
    %105 = arith.addf %56, %104 : vector<16x128xf32>
    %c0_81 = arith.constant 0 : index
    %c2_82 = arith.constant 2 : index
    %c0_83 = arith.constant 0 : index
    %c0_84 = arith.constant 0 : index
    %106 = vector.load %arg3[%c0_81, %c2_82, %c0_83, %c0_84] : memref<3x4x128x32xbf16, #tpu.memory_space<vmem>>, vector<1x1x128x32xbf16>
    %107 = vector.shape_cast %106 : vector<1x1x128x32xbf16> to vector<128x32xbf16>
    %cst_85 = arith.constant dense<0.000000e+00> : vector<16x32xf32>
    %108 = tpu.matmul %1, %107, %cst_85 {dimension_numbers = #tpu.dot_dimension_numbers<[1], [0], [0], [1], [0, 0, 1, 1], [], []>} : vector<16x128xbf16>, vector<128x32xbf16>, vector<16x32xf32> -> vector<16x32xf32>
    %c1_86 = arith.constant 1 : index
    %c2_87 = arith.constant 2 : index
    %c0_88 = arith.constant 0 : index
    %c0_89 = arith.constant 0 : index
    %109 = vector.load %arg3[%c1_86, %c2_87, %c0_88, %c0_89] : memref<3x4x128x32xbf16, #tpu.memory_space<vmem>>, vector<1x1x128x32xbf16>
    %110 = vector.shape_cast %109 : vector<1x1x128x32xbf16> to vector<128x32xbf16>
    %cst_90 = arith.constant dense<0.000000e+00> : vector<16x32xf32>
    %111 = tpu.matmul %3, %110, %cst_90 {dimension_numbers = #tpu.dot_dimension_numbers<[1], [0], [0], [1], [0, 0, 1, 1], [], []>} : vector<16x128xbf16>, vector<128x32xbf16>, vector<16x32xf32> -> vector<16x32xf32>
    %c2_91 = arith.constant 2 : index
    %c2_92 = arith.constant 2 : index
    %c0_93 = arith.constant 0 : index
    %c0_94 = arith.constant 0 : index
    %112 = vector.load %arg3[%c2_91, %c2_92, %c0_93, %c0_94] : memref<3x4x128x32xbf16, #tpu.memory_space<vmem>>, vector<1x1x128x32xbf16>
    %113 = vector.shape_cast %112 : vector<1x1x128x32xbf16> to vector<128x32xbf16>
    %cst_95 = arith.constant dense<0.000000e+00> : vector<16x32xf32>
    %114 = tpu.matmul %3, %113, %cst_95 {dimension_numbers = #tpu.dot_dimension_numbers<[1], [0], [0], [1], [0, 0, 1, 1], [], []>} : vector<16x128xbf16>, vector<128x32xbf16>, vector<16x32xf32> -> vector<16x32xf32>
    %c0_96 = arith.constant 0 : index
    %c2_97 = arith.constant 2 : index
    %c0_98 = arith.constant 0 : index
    %c0_99 = arith.constant 0 : index
    %115 = vector.load %arg5[%c0_96, %c2_97, %c0_98, %c0_99] : memref<3x4x1x32xf32, #tpu.memory_space<vmem>>, vector<1x1x1x32xf32>
    %116 = vector.shape_cast %115 : vector<1x1x1x32xf32> to vector<1x32xf32>
    %117 = vector.broadcast %116 : vector<1x32xf32> to vector<16x32xf32>
    %118 = arith.addf %108, %117 : vector<16x32xf32>
    %119 = vector.shape_cast %118 : vector<16x32xf32> to vector<2x8x32xf32>
    %120 = arith.truncf %119 : vector<2x8x32xf32> to vector<2x8x32xbf16>
    %c1_100 = arith.constant 1 : index
    %c2_101 = arith.constant 2 : index
    %c0_102 = arith.constant 0 : index
    %c0_103 = arith.constant 0 : index
    %121 = vector.load %arg5[%c1_100, %c2_101, %c0_102, %c0_103] : memref<3x4x1x32xf32, #tpu.memory_space<vmem>>, vector<1x1x1x32xf32>
    %122 = vector.shape_cast %121 : vector<1x1x1x32xf32> to vector<1x32xf32>
    %123 = vector.broadcast %122 : vector<1x32xf32> to vector<16x32xf32>
    %124 = arith.addf %111, %123 : vector<16x32xf32>
    %125 = vector.shape_cast %124 : vector<16x32xf32> to vector<2x8x32xf32>
    %126 = arith.truncf %125 : vector<2x8x32xf32> to vector<2x8x32xbf16>
    %c2_104 = arith.constant 2 : index
    %c2_105 = arith.constant 2 : index
    %c0_106 = arith.constant 0 : index
    %c0_107 = arith.constant 0 : index
    %127 = vector.load %arg5[%c2_104, %c2_105, %c0_106, %c0_107] : memref<3x4x1x32xf32, #tpu.memory_space<vmem>>, vector<1x1x1x32xf32>
    %128 = vector.shape_cast %127 : vector<1x1x1x32xf32> to vector<1x32xf32>
    %129 = vector.broadcast %128 : vector<1x32xf32> to vector<16x32xf32>
    %130 = arith.addf %114, %129 : vector<16x32xf32>
    %131 = vector.shape_cast %130 : vector<16x32xf32> to vector<2x8x32xf32>
    %132 = arith.truncf %131 : vector<2x8x32xf32> to vector<2x8x32xbf16>
    "tpu.trace_start"() <{level = 10 : i32, message = "bqd,bkd->bqk"}> : () -> ()
    %cst_108 = arith.constant dense<0.000000e+00> : vector<2x8x8xf32>
    %133 = tpu.matmul %120, %126, %cst_108 {dimension_numbers = #tpu.dot_dimension_numbers<[2], [2], [1], [1], [0, 0, 0, 1, 1, 1], [0], [0]>} : vector<2x8x32xbf16>, vector<2x8x32xbf16>, vector<2x8x8xf32> -> vector<2x8x8xf32>
    "tpu.trace_stop"() : () -> ()
    %cst_109 = arith.constant 0.176776692 : f32
    %134 = vector.broadcast %cst_109 : f32 to vector<2x8x8xf32>
    %135 = arith.mulf %133, %134 : vector<2x8x8xf32>
    %cst_110 = arith.constant -1.000000e+04 : f32
    %136 = vector.broadcast %cst_110 : f32 to vector<2x8x8xf32>
    %137 = arith.select %6, %136, %135 : vector<2x8x8xi1>, vector<2x8x8xf32>
    %cst_111 = arith.constant dense<0xFF800000> : vector<2x8xf32>
    %138 = vector.multi_reduction <maximumf>, %137, %cst_111 [2] : vector<2x8x8xf32> to vector<2x8xf32>
    %139 = vector.shape_cast %138 : vector<2x8xf32> to vector<2x8x1xf32>
    %140 = vector.broadcast %139 : vector<2x8x1xf32> to vector<2x8x8xf32>
    %141 = arith.subf %137, %140 : vector<2x8x8xf32>
    %142 = math.exp %141 : vector<2x8x8xf32>
    %cst_112 = arith.constant dense<0.000000e+00> : vector<2x8xf32>
    %143 = vector.multi_reduction <add>, %142, %cst_112 [2] : vector<2x8x8xf32> to vector<2x8xf32>
    %144 = vector.shape_cast %143 : vector<2x8xf32> to vector<2x8x1xf32>
    %145 = vector.broadcast %144 : vector<2x8x1xf32> to vector<2x8x8xf32>
    %146 = arith.divf %142, %145 : vector<2x8x8xf32>
    %147 = arith.truncf %146 : vector<2x8x8xf32> to vector<2x8x8xbf16>
    "tpu.trace_start"() <{level = 10 : i32, message = "bqk,bkd->bqd"}> : () -> ()
    %cst_113 = arith.constant dense<0.000000e+00> : vector<2x8x32xf32>
    %148 = tpu.matmul %147, %132, %cst_113 {dimension_numbers = #tpu.dot_dimension_numbers<[2], [1], [1], [2], [0, 0, 0, 1, 1, 2], [0], [0]>} : vector<2x8x8xbf16>, vector<2x8x32xbf16>, vector<2x8x32xf32> -> vector<2x8x32xf32>
    "tpu.trace_stop"() : () -> ()
    %149 = vector.shape_cast %148 : vector<2x8x32xf32> to vector<16x32xf32>
    %150 = arith.truncf %149 : vector<16x32xf32> to vector<16x32xbf16>
    %c2_114 = arith.constant 2 : index
    %c0_115 = arith.constant 0 : index
    %c0_116 = arith.constant 0 : index
    %151 = vector.load %arg4[%c2_114, %c0_115, %c0_116] : memref<4x32x128xbf16, #tpu.memory_space<vmem>>, vector<1x32x128xbf16>
    %152 = vector.shape_cast %151 : vector<1x32x128xbf16> to vector<32x128xbf16>
    %cst_117 = arith.constant dense<0.000000e+00> : vector<16x128xf32>
    %153 = tpu.matmul %150, %152, %cst_117 {dimension_numbers = #tpu.dot_dimension_numbers<[1], [0], [0], [1], [0, 0, 1, 1], [], []>} : vector<16x32xbf16>, vector<32x128xbf16>, vector<16x128xf32> -> vector<16x128xf32>
    %154 = arith.addf %105, %153 : vector<16x128xf32>
    %c0_118 = arith.constant 0 : index
    %c3 = arith.constant 3 : index
    %c0_119 = arith.constant 0 : index
    %c0_120 = arith.constant 0 : index
    %155 = vector.load %arg3[%c0_118, %c3, %c0_119, %c0_120] : memref<3x4x128x32xbf16, #tpu.memory_space<vmem>>, vector<1x1x128x32xbf16>
    %156 = vector.shape_cast %155 : vector<1x1x128x32xbf16> to vector<128x32xbf16>
    %cst_121 = arith.constant dense<0.000000e+00> : vector<16x32xf32>
    %157 = tpu.matmul %1, %156, %cst_121 {dimension_numbers = #tpu.dot_dimension_numbers<[1], [0], [0], [1], [0, 0, 1, 1], [], []>} : vector<16x128xbf16>, vector<128x32xbf16>, vector<16x32xf32> -> vector<16x32xf32>
    %c1_122 = arith.constant 1 : index
    %c3_123 = arith.constant 3 : index
    %c0_124 = arith.constant 0 : index
    %c0_125 = arith.constant 0 : index
    %158 = vector.load %arg3[%c1_122, %c3_123, %c0_124, %c0_125] : memref<3x4x128x32xbf16, #tpu.memory_space<vmem>>, vector<1x1x128x32xbf16>
    %159 = vector.shape_cast %158 : vector<1x1x128x32xbf16> to vector<128x32xbf16>
    %cst_126 = arith.constant dense<0.000000e+00> : vector<16x32xf32>
    %160 = tpu.matmul %3, %159, %cst_126 {dimension_numbers = #tpu.dot_dimension_numbers<[1], [0], [0], [1], [0, 0, 1, 1], [], []>} : vector<16x128xbf16>, vector<128x32xbf16>, vector<16x32xf32> -> vector<16x32xf32>
    %c2_127 = arith.constant 2 : index
    %c3_128 = arith.constant 3 : index
    %c0_129 = arith.constant 0 : index
    %c0_130 = arith.constant 0 : index
    %161 = vector.load %arg3[%c2_127, %c3_128, %c0_129, %c0_130] : memref<3x4x128x32xbf16, #tpu.memory_space<vmem>>, vector<1x1x128x32xbf16>
    %162 = vector.shape_cast %161 : vector<1x1x128x32xbf16> to vector<128x32xbf16>
    %cst_131 = arith.constant dense<0.000000e+00> : vector<16x32xf32>
    %163 = tpu.matmul %3, %162, %cst_131 {dimension_numbers = #tpu.dot_dimension_numbers<[1], [0], [0], [1], [0, 0, 1, 1], [], []>} : vector<16x128xbf16>, vector<128x32xbf16>, vector<16x32xf32> -> vector<16x32xf32>
    %c0_132 = arith.constant 0 : index
    %c3_133 = arith.constant 3 : index
    %c0_134 = arith.constant 0 : index
    %c0_135 = arith.constant 0 : index
    %164 = vector.load %arg5[%c0_132, %c3_133, %c0_134, %c0_135] : memref<3x4x1x32xf32, #tpu.memory_space<vmem>>, vector<1x1x1x32xf32>
    %165 = vector.shape_cast %164 : vector<1x1x1x32xf32> to vector<1x32xf32>
    %166 = vector.broadcast %165 : vector<1x32xf32> to vector<16x32xf32>
    %167 = arith.addf %157, %166 : vector<16x32xf32>
    %168 = vector.shape_cast %167 : vector<16x32xf32> to vector<2x8x32xf32>
    %169 = arith.truncf %168 : vector<2x8x32xf32> to vector<2x8x32xbf16>
    %c1_136 = arith.constant 1 : index
    %c3_137 = arith.constant 3 : index
    %c0_138 = arith.constant 0 : index
    %c0_139 = arith.constant 0 : index
    %170 = vector.load %arg5[%c1_136, %c3_137, %c0_138, %c0_139] : memref<3x4x1x32xf32, #tpu.memory_space<vmem>>, vector<1x1x1x32xf32>
    %171 = vector.shape_cast %170 : vector<1x1x1x32xf32> to vector<1x32xf32>
    %172 = vector.broadcast %171 : vector<1x32xf32> to vector<16x32xf32>
    %173 = arith.addf %160, %172 : vector<16x32xf32>
    %174 = vector.shape_cast %173 : vector<16x32xf32> to vector<2x8x32xf32>
    %175 = arith.truncf %174 : vector<2x8x32xf32> to vector<2x8x32xbf16>
    %c2_140 = arith.constant 2 : index
    %c3_141 = arith.constant 3 : index
    %c0_142 = arith.constant 0 : index
    %c0_143 = arith.constant 0 : index
    %176 = vector.load %arg5[%c2_140, %c3_141, %c0_142, %c0_143] : memref<3x4x1x32xf32, #tpu.memory_space<vmem>>, vector<1x1x1x32xf32>
    %177 = vector.shape_cast %176 : vector<1x1x1x32xf32> to vector<1x32xf32>
    %178 = vector.broadcast %177 : vector<1x32xf32> to vector<16x32xf32>
    %179 = arith.addf %163, %178 : vector<16x32xf32>
    %180 = vector.shape_cast %179 : vector<16x32xf32> to vector<2x8x32xf32>
    %181 = arith.truncf %180 : vector<2x8x32xf32> to vector<2x8x32xbf16>
    "tpu.trace_start"() <{level = 10 : i32, message = "bqd,bkd->bqk"}> : () -> ()
    %cst_144 = arith.constant dense<0.000000e+00> : vector<2x8x8xf32>
    %182 = tpu.matmul %169, %175, %cst_144 {dimension_numbers = #tpu.dot_dimension_numbers<[2], [2], [1], [1], [0, 0, 0, 1, 1, 1], [0], [0]>} : vector<2x8x32xbf16>, vector<2x8x32xbf16>, vector<2x8x8xf32> -> vector<2x8x8xf32>
    "tpu.trace_stop"() : () -> ()
    %cst_145 = arith.constant 0.176776692 : f32
    %183 = vector.broadcast %cst_145 : f32 to vector<2x8x8xf32>
    %184 = arith.mulf %182, %183 : vector<2x8x8xf32>
    %cst_146 = arith.constant -1.000000e+04 : f32
    %185 = vector.broadcast %cst_146 : f32 to vector<2x8x8xf32>
    %186 = arith.select %6, %185, %184 : vector<2x8x8xi1>, vector<2x8x8xf32>
    %cst_147 = arith.constant dense<0xFF800000> : vector<2x8xf32>
    %187 = vector.multi_reduction <maximumf>, %186, %cst_147 [2] : vector<2x8x8xf32> to vector<2x8xf32>
    %188 = vector.shape_cast %187 : vector<2x8xf32> to vector<2x8x1xf32>
    %189 = vector.broadcast %188 : vector<2x8x1xf32> to vector<2x8x8xf32>
    %190 = arith.subf %186, %189 : vector<2x8x8xf32>
    %191 = math.exp %190 : vector<2x8x8xf32>
    %cst_148 = arith.constant dense<0.000000e+00> : vector<2x8xf32>
    %192 = vector.multi_reduction <add>, %191, %cst_148 [2] : vector<2x8x8xf32> to vector<2x8xf32>
    %193 = vector.shape_cast %192 : vector<2x8xf32> to vector<2x8x1xf32>
    %194 = vector.broadcast %193 : vector<2x8x1xf32> to vector<2x8x8xf32>
    %195 = arith.divf %191, %194 : vector<2x8x8xf32>
    %196 = arith.truncf %195 : vector<2x8x8xf32> to vector<2x8x8xbf16>
    "tpu.trace_start"() <{level = 10 : i32, message = "bqk,bkd->bqd"}> : () -> ()
    %cst_149 = arith.constant dense<0.000000e+00> : vector<2x8x32xf32>
    %197 = tpu.matmul %196, %181, %cst_149 {dimension_numbers = #tpu.dot_dimension_numbers<[2], [1], [1], [2], [0, 0, 0, 1, 1, 2], [0], [0]>} : vector<2x8x8xbf16>, vector<2x8x32xbf16>, vector<2x8x32xf32> -> vector<2x8x32xf32>
    "tpu.trace_stop"() : () -> ()
    %198 = vector.shape_cast %197 : vector<2x8x32xf32> to vector<16x32xf32>
    %199 = arith.truncf %198 : vector<16x32xf32> to vector<16x32xbf16>
    %c3_150 = arith.constant 3 : index
    %c0_151 = arith.constant 0 : index
    %c0_152 = arith.constant 0 : index
    %200 = vector.load %arg4[%c3_150, %c0_151, %c0_152] : memref<4x32x128xbf16, #tpu.memory_space<vmem>>, vector<1x32x128xbf16>
    %201 = vector.shape_cast %200 : vector<1x32x128xbf16> to vector<32x128xbf16>
    %cst_153 = arith.constant dense<0.000000e+00> : vector<16x128xf32>
    %202 = tpu.matmul %199, %201, %cst_153 {dimension_numbers = #tpu.dot_dimension_numbers<[1], [0], [0], [1], [0, 0, 1, 1], [], []>} : vector<16x32xbf16>, vector<32x128xbf16>, vector<16x128xf32> -> vector<16x128xf32>
    %203 = arith.addf %154, %202 : vector<16x128xf32>
    %c0_154 = arith.constant 0 : index
    %c0_155 = arith.constant 0 : index
    %204 = vector.load %arg6[%c0_154, %c0_155] : memref<3x128xf32, #tpu.memory_space<vmem>>, vector<1x128xf32>
    %205 = vector.broadcast %204 : vector<1x128xf32> to vector<16x128xf32>
    %206 = arith.addf %203, %205 : vector<16x128xf32>
    %207 = arith.extf %1 : vector<16x128xbf16> to vector<16x128xf32>
    %208 = arith.addf %206, %207 : vector<16x128xf32>
    %cst_156 = arith.constant dense<0.000000e+00> : vector<16xf32>
    %209 = vector.multi_reduction <add>, %208, %cst_156 [1] : vector<16x128xf32> to vector<16xf32>
    %210 = vector.shape_cast %209 : vector<16xf32> to vector<16x1xf32>
    %cst_157 = arith.constant 1.280000e+02 : f32
    %211 = vector.broadcast %cst_157 : f32 to vector<16x1xf32>
    %212 = arith.divf %210, %211 : vector<16x1xf32>
    %213 = vector.broadcast %212 : vector<16x1xf32> to vector<16x128xf32>
    %214 = arith.subf %208, %213 : vector<16x128xf32>
    %215 = arith.mulf %214, %214 : vector<16x128xf32>
    %cst_158 = arith.constant dense<0.000000e+00> : vector<16xf32>
    %216 = vector.multi_reduction <add>, %215, %cst_158 [1] : vector<16x128xf32> to vector<16xf32>
    %217 = vector.shape_cast %216 : vector<16xf32> to vector<16x1xf32>
    %cst_159 = arith.constant 1.280000e+02 : f32
    %218 = vector.broadcast %cst_159 : f32 to vector<16x1xf32>
    %219 = arith.divf %217, %218 : vector<16x1xf32>
    %c1_160 = arith.constant 1 : index
    %c0_161 = arith.constant 0 : index
    %220 = vector.load %arg6[%c1_160, %c0_161] : memref<3x128xf32, #tpu.memory_space<vmem>>, vector<1x128xf32>
    %221 = vector.broadcast %212 : vector<16x1xf32> to vector<16x128xf32>
    %222 = arith.subf %208, %221 : vector<16x128xf32>
    %223 = vector.broadcast %220 : vector<1x128xf32> to vector<16x128xf32>
    %224 = arith.mulf %223, %222 : vector<16x128xf32>
    %cst_162 = arith.constant 9.99999996E-13 : f32
    %225 = vector.broadcast %cst_162 : f32 to vector<16x1xf32>
    %226 = arith.addf %219, %225 : vector<16x1xf32>
    %227 = math.rsqrt %226 : vector<16x1xf32>
    %228 = vector.broadcast %227 : vector<16x1xf32> to vector<16x128xf32>
    %229 = arith.mulf %224, %228 : vector<16x128xf32>
    %c2_163 = arith.constant 2 : index
    %c0_164 = arith.constant 0 : index
    %230 = vector.load %arg6[%c2_163, %c0_164] : memref<3x128xf32, #tpu.memory_space<vmem>>, vector<1x128xf32>
    %231 = vector.broadcast %230 : vector<1x128xf32> to vector<16x128xf32>
    %232 = arith.addf %229, %231 : vector<16x128xf32>
    %233 = vector.shape_cast %232 : vector<16x128xf32> to vector<2x8x128xf32>
    %234 = arith.truncf %233 : vector<2x8x128xf32> to vector<2x8x128xbf16>
    %c0_165 = arith.constant 0 : index
    %c0_166 = arith.constant 0 : index
    %c0_167 = arith.constant 0 : index
    %235 = vector.load %arg7[%c0_165, %c0_166, %c0_167] : memref<2x8x128xbf16, #tpu.memory_space<vmem>>, vector<2x8x128xbf16>
    tpu.vector_store %arg7[%c0_165, %c0_166, %c0_167], %234 {strides = array<i32>} : memref<2x8x128xbf16, #tpu.memory_space<vmem>>, vector<2x8x128xbf16>,
    return
  }
}

</mosaic_0001>

<llo_original>
// kernel: decoder_layer.5
$region0: #{decoder_layer.5}
  #allocation0 [shape = 'u32[]', space=smem, size = 0x4, offset = 0x4, fixed_abs, tag = 'smem constant byte address 0x4 - core index']
  #allocation1 [shape = 'u32[144,128]{1,0:T(1,128)}', space=vmem, size = 0x12000, scoped, tag = 'internal scratch']
  %s0 = inlined_call_operand.vmem [shape: bf16[16,128], index: 0, kind: input, shape index: {}]
  %s1 = inlined_call_operand.vmem [shape: bf16[128,256], index: 1, kind: input, shape index: {}]
  %s2 = inlined_call_operand.vmem [shape: f32[1,256], index: 2, kind: input, shape index: {}]
  %s3 = inlined_call_operand.vmem [shape: bf16[256,128], index: 3, kind: input, shape index: {}]
  %s4 = inlined_call_operand.vmem [shape: f32[3,128], index: 4, kind: input, shape index: {}]
  %s5 = inlined_call_operand.hbm [shape: f32[16,128], index: 5, kind: output, shape index: {}]
  %s6 = sld [smem:[#allocation0]]
  $region30: #{decoder_layer.5} parent=0
    _
  %s8 = ssub.s32 1, %s6
  %s9 = scalar_select 0, %s8, %s6
  $region1: #{decoder_layer.5} parent=0
    #allocation2 [shape = 'u8[8192]{0}', space=vmem, size = 0x2000, scoped, tag = 'output window, operand 0, single buffered']
    #allocation3 [shape = 's32[1]{0}', space=sflag, size = 0x4, scoped, tag = 'scoped memory for decoder_layer.5']
    %10 = vsyncpa [#allocation3], 0
    // Predicated region
    $region2: #{decoder_layer.5} parent=1 // pred_check
      _
    $region3: #{decoder_layer.5} parent=1 // pred_check_branch
      %12 = sbr.rel (0) target = $region5
    $region4: #{decoder_layer.5} parent=1 // pred_region
      _
    $region5: #{decoder_layer.5} parent=1 // pred_fallthru
      _
    // Predicated region
    $region6: #{decoder_layer.5} parent=1 // pred_check
      _
    $region7: #{decoder_layer.5} parent=1 // pred_check_branch
      %14 = sbr.rel (0) target = $region9
    $region8: #{decoder_layer.5} parent=1 // pred_region
      _
    $region9: #{decoder_layer.5} parent=1 // pred_fallthru
      _
    // Predicated region
    $region10: #{decoder_layer.5} parent=1 // pred_check
      _
    $region11: #{decoder_layer.5} parent=1 // pred_check_branch
      %16 = sbr.rel (0) target = $region13
    $region12: #{decoder_layer.5} parent=1 // pred_region
      _
    $region13: #{decoder_layer.5} parent=1 // pred_fallthru
      _
    // Predicated region
    $region14: #{decoder_layer.5} parent=1 // pred_check
      _
    $region15: #{decoder_layer.5} parent=1 // pred_check_branch
      %18 = sbr.rel (0) target = $region17
    $region16: #{decoder_layer.5} parent=1 // pred_region
      _
    $region17: #{decoder_layer.5} parent=1 // pred_fallthru
      _
    // Predicated region
    $region18: #{decoder_layer.5} parent=1 // pred_check
      _
    $region19: #{decoder_layer.5} parent=1 // pred_check_branch
      %20 = sbr.rel (0) target = $region21
    $region20: #{decoder_layer.5} parent=1 // pred_region
      _
    $region21: #{decoder_layer.5} parent=1 // pred_fallthru
      _
    %v22 = vld [vmem:[%s0] sm:$0xf]
    %v23 = vld [vmem:[%s0 + $0x4] sm:$0xf]
    %v24 = vld [vmem:[%s1] sm:$0xff]
    %v25 = vld [vmem:[%s1 + $0x8] sm:$0xff]
    %v26 = vld [vmem:[%s1 + $0x10] sm:$0xff]
    %v27 = vld [vmem:[%s1 + $0x18] sm:$0xff]
    %v28 = vld [vmem:[%s1 + $0x20] sm:$0xff]
    %v29 = vld [vmem:[%s1 + $0x28] sm:$0xff]
    %v30 = vld [vmem:[%s1 + $0x30] sm:$0xff]
    %v31 = vld [vmem:[%s1 + $0x38] sm:$0xff]
    %v32 = vld [vmem:[%s1 + $0x40] sm:$0xff]
    %v33 = vld [vmem:[%s1 + $0x48] sm:$0xff]
    %v34 = vld [vmem:[%s1 + $0x50] sm:$0xff]
    %v35 = vld [vmem:[%s1 + $0x58] sm:$0xff]
    %v36 = vld [vmem:[%s1 + $0x60] sm:$0xff]
    %v37 = vld [vmem:[%s1 + $0x68] sm:$0xff]
    %v38 = vld [vmem:[%s1 + $0x70] sm:$0xff]
    %v39 = vld [vmem:[%s1 + $0x78] sm:$0xff]
    %v40 = vld [vmem:[%s2] sm:$0x3]
    %v42 = vlaneseq
    %v43 = vshrl.u32 %v42, 7
    %v44 = vsub.s32 0, %v43
    %v45 = vrot.slane %v40, %v44
    %v46 = vlaneseq
    %v47 = vshrl.u32 %v46, 7
    %v48 = vsub.s32 1, %v47
    %v49 = vrot.slane %v40, %v48
    %v54 = vunpack.c.l.b16 %v22
    %v55 = vunpack.c.l.b16 %v23
    %v56 = vpack.c.b16 %v55, %v54
    %v74 = vunpack.c.l.b16 %v24
    %v75 = vunpack.c.h.b16 %v24
    %v76 = vunpack.c.l.b16 %v25
    %v77 = vunpack.c.h.b16 %v25
    %v78 = vunpack.c.l.b16 %v26
    %v79 = vunpack.c.h.b16 %v26
    %v80 = vunpack.c.l.b16 %v27
    %v81 = vunpack.c.h.b16 %v27
    %v82 = vunpack.c.l.b16 %v28
    %v83 = vunpack.c.h.b16 %v28
    %v84 = vunpack.c.l.b16 %v29
    %v85 = vunpack.c.h.b16 %v29
    %v86 = vunpack.c.l.b16 %v30
    %v87 = vunpack.c.h.b16 %v30
    %v88 = vunpack.c.l.b16 %v31
    %v89 = vunpack.c.h.b16 %v31
    %v90 = vunpack.c.l.b16 %v32
    %v91 = vunpack.c.h.b16 %v32
    %v92 = vunpack.c.l.b16 %v33
    %v93 = vunpack.c.h.b16 %v33
    %v94 = vunpack.c.l.b16 %v34
    %v95 = vunpack.c.h.b16 %v34
    %v96 = vunpack.c.l.b16 %v35
    %v97 = vunpack.c.h.b16 %v35
    %v98 = vunpack.c.l.b16 %v36
    %v99 = vunpack.c.h.b16 %v36
    %v100 = vunpack.c.l.b16 %v37
    %v101 = vunpack.c.h.b16 %v37
    %v102 = vunpack.c.l.b16 %v38
    %v103 = vunpack.c.h.b16 %v38
    %v104 = vunpack.c.l.b16 %v39
    %v105 = vunpack.c.h.b16 %v39
    %v106 = vpack.c.b16 %v76, %v74
    %v107 = vpack.c.b16 %v77, %v75
    %v108 = vpack.c.b16 %v80, %v78
    %v109 = vpack.c.b16 %v81, %v79
    %v110 = vpack.c.b16 %v84, %v82
    %v111 = vpack.c.b16 %v85, %v83
    %v112 = vpack.c.b16 %v88, %v86
    %v113 = vpack.c.b16 %v89, %v87
    %v114 = vpack.c.b16 %v92, %v90
    %v115 = vpack.c.b16 %v93, %v91
    %v116 = vpack.c.b16 %v96, %v94
    %v117 = vpack.c.b16 %v97, %v95
    %v118 = vpack.c.b16 %v100, %v98
    %v119 = vpack.c.b16 %v101, %v99
    %v120 = vpack.c.b16 %v104, %v102
    %v121 = vpack.c.b16 %v105, %v103
    %138 = vmatprep.subr.bf16.mxu0 %v121
    %139 = vmatpush1.bf16.msra.mxu0 %v120
    %140 = vmatprep.subr.bf16.mxu0 %v119
    %141 = vmatpush1.bf16.msra.mxu0 %v118
    %142 = vmatprep.subr.bf16.mxu0 %v117
    %143 = vmatpush1.bf16.msra.mxu0 %v116
    %144 = vmatprep.subr.bf16.mxu0 %v115
    %145 = vmatpush1.bf16.msra.mxu0 %v114
    %146 = vmatprep.subr.bf16.mxu0 %v113
    %147 = vmatpush1.bf16.msra.mxu0 %v112
    %148 = vmatprep.subr.bf16.mxu0 %v111
    %149 = vmatpush1.bf16.msra.mxu0 %v110
    %150 = vmatprep.subr.bf16.mxu0 %v109
    %151 = vmatpush1.bf16.msra.mxu0 %v108
    %152 = vmatprep.subr.bf16.mxu0 %v107
    %153 = vmatpush1.bf16.msra.mxu0 %v106
    %154 = vmatprep.subr.bf16.mxu0 0
    %155 = vmatpush2.bf16.msra.mxu0 0
    %156 = vmatprep.subr.bf16.mxu0 0
    %157 = vmatpush2.bf16.msra.mxu0 0
    %158 = vmatprep.subr.bf16.mxu0 0
    %159 = vmatpush2.bf16.msra.mxu0 0
    %160 = vmatprep.subr.bf16.mxu0 0
    %161 = vmatpush2.bf16.msra.mxu0 0
    %162 = vmatprep.subr.bf16.mxu0 0
    %163 = vmatpush2.bf16.msra.mxu0 0
    %164 = vmatprep.subr.bf16.mxu0 0
    %165 = vmatpush2.bf16.msra.mxu0 0
    %166 = vmatprep.subr.bf16.mxu0 0
    %167 = vmatpush2.bf16.msra.mxu0 0
    %168 = vmatprep.subr.bf16.mxu0 0
    %169 = vmatpush2.bf16.msra.mxu0 0
    %170 = vmatprep.mubr.bf16.mxu0 0
    %171 = vmatmul.mubr.bf16.gmra.mxu0 %v56
    %v172 = vpop.f32.mrf.mxu0
    %v173 = vadd.f32 %v45, %v172
    %v174 = vpop.f32.mrf.mxu0
    %v175 = vadd.f32 %v49, %v174
    %v176 = vpop.f32.mrf.mxu0
    %v177 = vadd.f32 %v45, %v176
    %v178 = vpop.f32.mrf.mxu0
    %v179 = vadd.f32 %v49, %v178
    %180 = vdwg.mxu0
    %v181 = vmax.f32 %v173, 0.0
    %v182 = vmax.f32 %v175, 0.0
    %v183 = vmax.f32 %v177, 0.0
    %v184 = vmax.f32 %v179, 0.0
    %v185 = vpack.c.bf16 %v183, %v181
    %v186 = vpack.c.bf16 %v184, %v182
    %v187 = vld [vmem:[%s3] sm:$0xf]
    %v188 = vld [vmem:[%s3 + $0x4] sm:$0xf]
    %v189 = vld [vmem:[%s3 + $0x8] sm:$0xf]
    %v190 = vld [vmem:[%s3 + $0xc] sm:$0xf]
    %v191 = vld [vmem:[%s3 + $0x10] sm:$0xf]
    %v192 = vld [vmem:[%s3 + $0x14] sm:$0xf]
    %v193 = vld [vmem:[%s3 + $0x18] sm:$0xf]
    %v194 = vld [vmem:[%s3 + $0x1c] sm:$0xf]
    %v195 = vld [vmem:[%s3 + $0x20] sm:$0xf]
    %v196 = vld [vmem:[%s3 + $0x24] sm:$0xf]
    %v197 = vld [vmem:[%s3 + $0x28] sm:$0xf]
    %v198 = vld [vmem:[%s3 + $0x2c] sm:$0xf]
    %v199 = vld [vmem:[%s3 + $0x30] sm:$0xf]
    %v200 = vld [vmem:[%s3 + $0x34] sm:$0xf]
    %v201 = vld [vmem:[%s3 + $0x38] sm:$0xf]
    %v202 = vld [vmem:[%s3 + $0x3c] sm:$0xf]
    %v203 = vld [vmem:[%s3 + $0x40] sm:$0xf]
    %v204 = vld [vmem:[%s3 + $0x44] sm:$0xf]
    %v205 = vld [vmem:[%s3 + $0x48] sm:$0xf]
    %v206 = vld [vmem:[%s3 + $0x4c] sm:$0xf]
    %v207 = vld [vmem:[%s3 + $0x50] sm:$0xf]
    %v208 = vld [vmem:[%s3 + $0x54] sm:$0xf]
    %v209 = vld [vmem:[%s3 + $0x58] sm:$0xf]
    %v210 = vld [vmem:[%s3 + $0x5c] sm:$0xf]
    %v211 = vld [vmem:[%s3 + $0x60] sm:$0xf]
    %v212 = vld [vmem:[%s3 + $0x64] sm:$0xf]
    %v213 = vld [vmem:[%s3 + $0x68] sm:$0xf]
    %v214 = vld [vmem:[%s3 + $0x6c] sm:$0xf]
    %v215 = vld [vmem:[%s3 + $0x70] sm:$0xf]
    %v216 = vld [vmem:[%s3 + $0x74] sm:$0xf]
    %v217 = vld [vmem:[%s3 + $0x78] sm:$0xf]
    %v218 = vld [vmem:[%s3 + $0x7c] sm:$0xf]
    %v219 = vld [vmem:[%s4] sm:$0x1]
    %v220 = vlaneseq
    %v221 = vshrl.u32 %v220, 7
    %v222 = vsub.s32 0, %v221
    %v223 = vrot.slane %v219, %v222
    %v256 = vunpack.c.l.b16 %v187
    %v257 = vunpack.c.l.b16 %v188
    %v258 = vunpack.c.l.b16 %v189
    %v259 = vunpack.c.l.b16 %v190
    %v260 = vunpack.c.l.b16 %v191
    %v261 = vunpack.c.l.b16 %v192
    %v262 = vunpack.c.l.b16 %v193
    %v263 = vunpack.c.l.b16 %v194
    %v264 = vunpack.c.l.b16 %v195
    %v265 = vunpack.c.l.b16 %v196
    %v266 = vunpack.c.l.b16 %v197
    %v267 = vunpack.c.l.b16 %v198
    %v268 = vunpack.c.l.b16 %v199
    %v269 = vunpack.c.l.b16 %v200
    %v270 = vunpack.c.l.b16 %v201
    %v271 = vunpack.c.l.b16 %v202
    %v272 = vunpack.c.l.b16 %v203
    %v273 = vunpack.c.l.b16 %v204
    %v274 = vunpack.c.l.b16 %v205
    %v275 = vunpack.c.l.b16 %v206
    %v276 = vunpack.c.l.b16 %v207
    %v277 = vunpack.c.l.b16 %v208
    %v278 = vunpack.c.l.b16 %v209
    %v279 = vunpack.c.l.b16 %v210
    %v280 = vunpack.c.l.b16 %v211
    %v281 = vunpack.c.l.b16 %v212
    %v282 = vunpack.c.l.b16 %v213
    %v283 = vunpack.c.l.b16 %v214
    %v284 = vunpack.c.l.b16 %v215
    %v285 = vunpack.c.l.b16 %v216
    %v286 = vunpack.c.l.b16 %v217
    %v287 = vunpack.c.l.b16 %v218
    %v288 = vpack.c.b16 %v257, %v256
    %v289 = vpack.c.b16 %v259, %v258
    %v290 = vpack.c.b16 %v261, %v260
    %v291 = vpack.c.b16 %v263, %v262
    %v292 = vpack.c.b16 %v265, %v264
    %v293 = vpack.c.b16 %v267, %v266
    %v294 = vpack.c.b16 %v269, %v268
    %v295 = vpack.c.b16 %v271, %v270
    %v296 = vpack.c.b16 %v273, %v272
    %v297 = vpack.c.b16 %v275, %v274
    %v298 = vpack.c.b16 %v277, %v276
    %v299 = vpack.c.b16 %v279, %v278
    %v300 = vpack.c.b16 %v281, %v280
    %v301 = vpack.c.b16 %v283, %v282
    %v302 = vpack.c.b16 %v285, %v284
    %v303 = vpack.c.b16 %v287, %v286
    %320 = vmatprep.subr.bf16.mxu0 0
    %321 = vmatpush1.bf16.msra.mxu0 %v295
    %322 = vmatprep.subr.bf16.mxu0 0
    %323 = vmatpush1.bf16.msra.mxu0 %v294
    %324 = vmatprep.subr.bf16.mxu0 0
    %325 = vmatpush1.bf16.msra.mxu0 %v293
    %326 = vmatprep.subr.bf16.mxu0 0
    %327 = vmatpush1.bf16.msra.mxu0 %v292
    %328 = vmatprep.subr.bf16.mxu0 0
    %329 = vmatpush1.bf16.msra.mxu0 %v291
    %330 = vmatprep.subr.bf16.mxu0 0
    %331 = vmatpush1.bf16.msra.mxu0 %v290
    %332 = vmatprep.subr.bf16.mxu0 0
    %333 = vmatpush1.bf16.msra.mxu0 %v289
    %334 = vmatprep.subr.bf16.mxu0 0
    %335 = vmatpush1.bf16.msra.mxu0 %v288
    %336 = vmatprep.subr.bf16.mxu0 0
    %337 = vmatpush2.bf16.msra.mxu0 %v303
    %338 = vmatprep.subr.bf16.mxu0 0
    %339 = vmatpush2.bf16.msra.mxu0 %v302
    %340 = vmatprep.subr.bf16.mxu0 0
    %341 = vmatpush2.bf16.msra.mxu0 %v301
    %342 = vmatprep.subr.bf16.mxu0 0
    %343 = vmatpush2.bf16.msra.mxu0 %v300
    %344 = vmatprep.subr.bf16.mxu0 0
    %345 = vmatpush2.bf16.msra.mxu0 %v299
    %346 = vmatprep.subr.bf16.mxu0 0
    %347 = vmatpush2.bf16.msra.mxu0 %v298
    %348 = vmatprep.subr.bf16.mxu0 0
    %349 = vmatpush2.bf16.msra.mxu0 %v297
    %350 = vmatprep.subr.bf16.mxu0 0
    %351 = vmatpush2.bf16.msra.mxu0 %v296
    %352 = vmatprep.mubr.bf16.mxu0 %v186
    %353 = vmatmul.mubr.bf16.gmra.mxu0 %v185
    %v354 = vpop.f32.mrf.mxu0
    %v355 = vadd.f32 %v223, %v354
    %v356 = vpop.f32.mrf.mxu0
    %v357 = vpop.f32.mrf.mxu0
    %v358 = vadd.f32 %v223, %v357
    %v359 = vpop.f32.mrf.mxu0
    %360 = vdwg.mxu0
    %v361 = vunpack.c.l.bf16 %v22
    %v362 = vunpack.c.l.bf16 %v23
    %v363 = vadd.f32 %v355, %v361
    %v364 = vadd.f32 %v358, %v362
    %365 = vadd.xlane.f32.xlu0 %v363
    %v366 = vpop.xlane.xlu0 %365
    %367 = vadd.xlane.f32.xlu0 %v364
    %v368 = vpop.xlane.xlu0 %367
    %v369 = vrcp.pop 128.0
    %v370 = vmul.f32 %v366, %v369
    %v371 = vmul.f32 %v368, %v369
    %v372 = vsub.f32 %v363, %v370
    %v373 = vsub.f32 %v364, %v371
    %v374 = vmul.f32 %v372, %v372
    %v375 = vmul.f32 %v373, %v373
    %376 = vadd.xlane.f32.xlu0 %v374
    %v377 = vpop.xlane.xlu0 %376
    %378 = vadd.xlane.f32.xlu0 %v375
    %v379 = vpop.xlane.xlu0 %378
    %v380 = vmul.f32 %v377, %v369
    %v381 = vmul.f32 %v379, %v369
    %v382 = vld [vmem:[%s4 + $0x1] sm:$0x1]
    %v383 = vlaneseq
    %v384 = vshrl.u32 %v383, 7
    %v385 = vsub.s32 0, %v384
    %v386 = vrot.slane %v382, %v385
    %v387 = vmul.f32 %v386, %v372
    %v388 = vmul.f32 %v386, %v373
    %v389 = vadd.f32 %v380, 1e-12
    %v390 = vadd.f32 %v381, 1e-12
    %v391 = vrsqrt.pop %v389
    %v392 = vrsqrt.pop %v390
    %v393 = vmul.f32 %v387, %v391
    %v394 = vmul.f32 %v388, %v392
    %v395 = vld [vmem:[%s4 + $0x2] sm:$0x1]
    %v396 = vlaneseq
    %v397 = vshrl.u32 %v396, 7
    %v398 = vsub.s32 0, %v397
    %v399 = vrot.slane %v395, %v398
    %v400 = vadd.f32 %v393, %v399
    %v401 = vadd.f32 %v394, %v399
    %402 = vst [vmem:[#allocation2] sm:$0xff] %v400
    %403 = vst [vmem:[#allocation2 + $0x8] sm:$0xff] %v401
    // Predicated region
    $region22: #{decoder_layer.5} parent=1 // pred_check
      _
    $region23: #{decoder_layer.5} parent=1 // pred_check_branch
      %405 = sbr.rel (0) target = $region25
    $region24: #{decoder_layer.5} parent=1 // pred_region
      %s407 = ssub.s32 256, 256
      %408 = vsyncadd [#allocation3], %s407
      %s409 = sshll.u32 [#allocation2], 4
      %s410 = int_to_ptr.vmem [resolvable:$true] %s409
      %415 = dma.vmem_to_hbm [thread:$0]  %s410, 256, %s5, [#allocation3], 128, 128, 8
    $region25: #{decoder_layer.5} parent=1 // pred_fallthru
      _
    // Predicated region
    $region26: #{decoder_layer.5} parent=1 // pred_check
      _
    $region27: #{decoder_layer.5} parent=1 // pred_check_branch
      %417 = sbr.rel (0) target = $region29
    $region28: #{decoder_layer.5} parent=1 // pred_region
      %418 = dma.done [#allocation3], 256
    $region29: #{decoder_layer.5} parent=1 // pred_fallthru
      _
    %419 = vsyncpa [#allocation3], 1

// kernel: decoder_layer.3
$region0: #{decoder_layer.3}
  #allocation0 [shape = 'u32[]', space=smem, size = 0x4, offset = 0x4, fixed_abs, tag = 'smem constant byte address 0x4 - core index']
  #allocation1 [shape = 'u32[144,128]{1,0:T(1,128)}', space=vmem, size = 0x12000, scoped, tag = 'internal scratch']
  %s0 = inlined_call_operand.vmem [shape: bf16[2,8,128], index: 0, kind: input, shape index: {}, may-alias: {0,1}]
  %s1 = inlined_call_operand.vmem [shape: bf16[2,8,128], index: 1, kind: input, shape index: {}, may-alias: {0,1}]
  %s2 = inlined_call_operand.vmem [shape: bf16[2,8,8], index: 2, kind: input, shape index: {}]
  %s3 = inlined_call_operand.vmem [shape: bf16[3,4,128,32], index: 3, kind: input, shape index: {}]
  %s4 = inlined_call_operand.vmem [shape: bf16[4,32,128], index: 4, kind: input, shape index: {}]
  %s5 = inlined_call_operand.vmem [shape: f32[3,4,1,32], index: 5, kind: input, shape index: {}]
  %s6 = inlined_call_operand.vmem [shape: f32[3,128], index: 6, kind: input, shape index: {}]
  %s7 = inlined_call_operand.vmem [shape: bf16[2,8,128], index: 7, kind: output, shape index: {}]
  %s8 = sld [smem:[#allocation0]]
  $region38: #{decoder_layer.3} parent=0
    _
  %s10 = ssub.s32 1, %s8
  %s11 = scalar_select 0, %s10, %s8
  // Predicated region
  $region2: #{decoder_layer.3} parent=0 // pred_check
    _
  $region3: #{decoder_layer.3} parent=0 // pred_check_branch
    %13 = sbr.rel (0) target = $region5
  $region4: #{decoder_layer.3} parent=0 // pred_region
    _
  $region5: #{decoder_layer.3} parent=0 // pred_fallthru
    _
  // Predicated region
  $region6: #{decoder_layer.3} parent=0 // pred_check
    _
  $region7: #{decoder_layer.3} parent=0 // pred_check_branch
    %15 = sbr.rel (0) target = $region9
  $region8: #{decoder_layer.3} parent=0 // pred_region
    _
  $region9: #{decoder_layer.3} parent=0 // pred_fallthru
    _
  // Predicated region
  $region10: #{decoder_layer.3} parent=0 // pred_check
    _
  $region11: #{decoder_layer.3} parent=0 // pred_check_branch
    %17 = sbr.rel (0) target = $region13
  $region12: #{decoder_layer.3} parent=0 // pred_region
    _
  $region13: #{decoder_layer.3} parent=0 // pred_fallthru
    _
  // Predicated region
  $region14: #{decoder_layer.3} parent=0 // pred_check
    _
  $region15: #{decoder_layer.3} parent=0 // pred_check_branch
    %19 = sbr.rel (0) target = $region17
  $region16: #{decoder_layer.3} parent=0 // pred_region
    _
  $region17: #{decoder_layer.3} parent=0 // pred_fallthru
    _
  // Predicated region
  $region18: #{decoder_layer.3} parent=0 // pred_check
    _
  $region19: #{decoder_layer.3} parent=0 // pred_check_branch
    %21 = sbr.rel (0) target = $region21
  $region20: #{decoder_layer.3} parent=0 // pred_region
    _
  $region21: #{decoder_layer.3} parent=0 // pred_fallthru
    _
  // Predicated region
  $region22: #{decoder_layer.3} parent=0 // pred_check
    _
  $region23: #{decoder_layer.3} parent=0 // pred_check_branch
    %23 = sbr.rel (0) target = $region25
  $region24: #{decoder_layer.3} parent=0 // pred_region
    _
  $region25: #{decoder_layer.3} parent=0 // pred_fallthru
    _
  // Predicated region
  $region26: #{decoder_layer.3} parent=0 // pred_check
    _
  $region27: #{decoder_layer.3} parent=0 // pred_check_branch
    %25 = sbr.rel (0) target = $region29
  $region28: #{decoder_layer.3} parent=0 // pred_region
    _
  $region29: #{decoder_layer.3} parent=0 // pred_fallthru
    _
  %v29 = vld [vmem:[%s0] sm:$0xf]
  %v30 = vld [vmem:[%s0 + $0x4] sm:$0xf]
  %v31 = vld [vmem:[%s1] sm:$0xf]
  %v32 = vld [vmem:[%s1 + $0x4] sm:$0xf]
  %v33 = vld [vmem:[%s2] sm:$0xf]
  %v34 = vld [vmem:[%s2 + $0x4] sm:$0xf]
  %vm35 = vcmp.eq.bf16.partialorder %v33, 0
  %vm36 = vcmp.eq.bf16.partialorder %v34, 0
  %v37 = vld [vmem:[%s3] sm:$0xf]
  %v38 = vld [vmem:[%s3 + $0x4] sm:$0xf]
  %v39 = vld [vmem:[%s3 + $0x8] sm:$0xf]
  %v40 = vld [vmem:[%s3 + $0xc] sm:$0xf]
  %v41 = vld [vmem:[%s3 + $0x10] sm:$0xf]
  %v42 = vld [vmem:[%s3 + $0x14] sm:$0xf]
  %v43 = vld [vmem:[%s3 + $0x18] sm:$0xf]
  %v44 = vld [vmem:[%s3 + $0x1c] sm:$0xf]
  %v45 = vld [vmem:[%s3 + $0x20] sm:$0xf]
  %v46 = vld [vmem:[%s3 + $0x24] sm:$0xf]
  %v47 = vld [vmem:[%s3 + $0x28] sm:$0xf]
  %v48 = vld [vmem:[%s3 + $0x2c] sm:$0xf]
  %v49 = vld [vmem:[%s3 + $0x30] sm:$0xf]
  %v50 = vld [vmem:[%s3 + $0x34] sm:$0xf]
  %v51 = vld [vmem:[%s3 + $0x38] sm:$0xf]
  %v52 = vld [vmem:[%s3 + $0x3c] sm:$0xf]
  %s53 = scalar_lea.vmem %s3, 256
  %v54 = vld [vmem:[%s53] sm:$0xf]
  %v55 = vld [vmem:[%s53 + $0x4] sm:$0xf]
  %v56 = vld [vmem:[%s53 + $0x8] sm:$0xf]
  %v57 = vld [vmem:[%s53 + $0xc] sm:$0xf]
  %v58 = vld [vmem:[%s53 + $0x10] sm:$0xf]
  %v59 = vld [vmem:[%s53 + $0x14] sm:$0xf]
  %v60 = vld [vmem:[%s53 + $0x18] sm:$0xf]
  %v61 = vld [vmem:[%s53 + $0x1c] sm:$0xf]
  %v62 = vld [vmem:[%s53 + $0x20] sm:$0xf]
  %v63 = vld [vmem:[%s53 + $0x24] sm:$0xf]
  %v64 = vld [vmem:[%s53 + $0x28] sm:$0xf]
  %v65 = vld [vmem:[%s53 + $0x2c] sm:$0xf]
  %v66 = vld [vmem:[%s53 + $0x30] sm:$0xf]
  %v67 = vld [vmem:[%s53 + $0x34] sm:$0xf]
  %v68 = vld [vmem:[%s53 + $0x38] sm:$0xf]
  %v69 = vld [vmem:[%s53 + $0x3c] sm:$0xf]
  %s70 = scalar_lea.vmem %s3, 512
  %v71 = vld [vmem:[%s70] sm:$0xf]
  %v72 = vld [vmem:[%s70 + $0x4] sm:$0xf]
  %v73 = vld [vmem:[%s70 + $0x8] sm:$0xf]
  %v74 = vld [vmem:[%s70 + $0xc] sm:$0xf]
  %v75 = vld [vmem:[%s70 + $0x10] sm:$0xf]
  %v76 = vld [vmem:[%s70 + $0x14] sm:$0xf]
  %v77 = vld [vmem:[%s70 + $0x18] sm:$0xf]
  %v78 = vld [vmem:[%s70 + $0x1c] sm:$0xf]
  %v79 = vld [vmem:[%s70 + $0x20] sm:$0xf]
  %v80 = vld [vmem:[%s70 + $0x24] sm:$0xf]
  %v81 = vld [vmem:[%s70 + $0x28] sm:$0xf]
  %v82 = vld [vmem:[%s70 + $0x2c] sm:$0xf]
  %v83 = vld [vmem:[%s70 + $0x30] sm:$0xf]
  %v84 = vld [vmem:[%s70 + $0x34] sm:$0xf]
  %v85 = vld [vmem:[%s70 + $0x38] sm:$0xf]
  %v86 = vld [vmem:[%s70 + $0x3c] sm:$0xf]
  %v87 = vld [vmem:[%s5] sm:$0x1]
  %v89 = vlaneseq
  %v90 = vshrl.u32 %v89, 7
  %v91 = vsub.s32 0, %v90
  %v92 = vrot.slane %v87, %v91
  %v96 = vunpack.c.l.b16 %v29
  %v97 = vunpack.c.l.b16 %v30
  %v98 = vpack.c.b16 %v97, %v96
  %v116 = vunpack.c.l.b16 %v37
  %v117 = vunpack.c.l.b16 %v38
  %v118 = vunpack.c.l.b16 %v39
  %v119 = vunpack.c.l.b16 %v40
  %v120 = vunpack.c.l.b16 %v41
  %v121 = vunpack.c.l.b16 %v42
  %v122 = vunpack.c.l.b16 %v43
  %v123 = vunpack.c.l.b16 %v44
  %v124 = vunpack.c.l.b16 %v45
  %v125 = vunpack.c.l.b16 %v46
  %v126 = vunpack.c.l.b16 %v47
  %v127 = vunpack.c.l.b16 %v48
  %v128 = vunpack.c.l.b16 %v49
  %v129 = vunpack.c.l.b16 %v50
  %v130 = vunpack.c.l.b16 %v51
  %v131 = vunpack.c.l.b16 %v52
  %v132 = vpack.c.b16 %v117, %v116
  %v133 = vpack.c.b16 %v119, %v118
  %v134 = vpack.c.b16 %v121, %v120
  %v135 = vpack.c.b16 %v123, %v122
  %v136 = vpack.c.b16 %v125, %v124
  %v137 = vpack.c.b16 %v127, %v126
  %v138 = vpack.c.b16 %v129, %v128
  %v139 = vpack.c.b16 %v131, %v130
  %148 = vmatprep.subr.bf16.mxu0 0
  %149 = vmatpush1.bf16.msra.mxu0 %v139
  %150 = vmatprep.subr.bf16.mxu0 0
  %151 = vmatpush1.bf16.msra.mxu0 %v138
  %152 = vmatprep.subr.bf16.mxu0 0
  %153 = vmatpush1.bf16.msra.mxu0 %v137
  %154 = vmatprep.subr.bf16.mxu0 0
  %155 = vmatpush1.bf16.msra.mxu0 %v136
  %156 = vmatprep.subr.bf16.mxu0 0
  %157 = vmatpush1.bf16.msra.mxu0 %v135
  %158 = vmatprep.subr.bf16.mxu0 0
  %159 = vmatpush1.bf16.msra.mxu0 %v134
  %160 = vmatprep.subr.bf16.mxu0 0
  %161 = vmatpush1.bf16.msra.mxu0 %v133
  %162 = vmatprep.subr.bf16.mxu0 0
  %163 = vmatpush1.bf16.msra.mxu0 %v132
  %164 = vmatprep.subr.bf16.mxu0 0
  %165 = vmatpush2.bf16.msra.mxu0 0
  %166 = vmatprep.subr.bf16.mxu0 0
  %167 = vmatpush2.bf16.msra.mxu0 0
  %168 = vmatprep.subr.bf16.mxu0 0
  %169 = vmatpush2.bf16.msra.mxu0 0
  %170 = vmatprep.subr.bf16.mxu0 0
  %171 = vmatpush2.bf16.msra.mxu0 0
  %172 = vmatprep.subr.bf16.mxu0 0
  %173 = vmatpush2.bf16.msra.mxu0 0
  %174 = vmatprep.subr.bf16.mxu0 0
  %175 = vmatpush2.bf16.msra.mxu0 0
  %176 = vmatprep.subr.bf16.mxu0 0
  %177 = vmatpush2.bf16.msra.mxu0 0
  %178 = vmatprep.subr.bf16.mxu0 0
  %179 = vmatpush2.bf16.msra.mxu0 0
  %180 = vmatprep.mubr.bf16.mxu0 0
  %181 = vmatmul.mubr.bf16.gmra.mxu0 %v98
  %v182 = vpop.f32.mrf.mxu0
  %v183 = vadd.f32 %v92, %v182
  %v184 = vpop.f32.mrf.mxu0
  %v185 = vpop.f32.mrf.mxu0
  %v186 = vadd.f32 %v92, %v185
  %v187 = vpop.f32.mrf.mxu0
  %188 = vdwg.mxu0
  %v189 = vpack.c.bf16 %v183, %v183
  %v190 = vpack.c.bf16 %v186, %v186
  %s191 = scalar_lea.vmem %s5, 4
  %v192 = vld [vmem:[%s191] sm:$0x1]
  %v194 = vlaneseq
  %v195 = vshrl.u32 %v194, 7
  %v196 = vsub.s32 0, %v195
  %v197 = vrot.slane %v192, %v196
  %v201 = vunpack.c.l.b16 %v31
  %v202 = vunpack.c.l.b16 %v32
  %v203 = vpack.c.b16 %v202, %v201
  %v221 = vunpack.c.l.b16 %v54
  %v222 = vunpack.c.l.b16 %v55
  %v223 = vunpack.c.l.b16 %v56
  %v224 = vunpack.c.l.b16 %v57
  %v225 = vunpack.c.l.b16 %v58
  %v226 = vunpack.c.l.b16 %v59
  %v227 = vunpack.c.l.b16 %v60
  %v228 = vunpack.c.l.b16 %v61
  %v229 = vunpack.c.l.b16 %v62
  %v230 = vunpack.c.l.b16 %v63
  %v231 = vunpack.c.l.b16 %v64
  %v232 = vunpack.c.l.b16 %v65
  %v233 = vunpack.c.l.b16 %v66
  %v234 = vunpack.c.l.b16 %v67
  %v235 = vunpack.c.l.b16 %v68
  %v236 = vunpack.c.l.b16 %v69
  %v237 = vpack.c.b16 %v222, %v221
  %v238 = vpack.c.b16 %v224, %v223
  %v239 = vpack.c.b16 %v226, %v225
  %v240 = vpack.c.b16 %v228, %v227
  %v241 = vpack.c.b16 %v230, %v229
  %v242 = vpack.c.b16 %v232, %v231
  %v243 = vpack.c.b16 %v234, %v233
  %v244 = vpack.c.b16 %v236, %v235
  %253 = vmatprep.subr.bf16.mxu0 0
  %254 = vmatpush1.bf16.msra.mxu0 %v244
  %255 = vmatprep.subr.bf16.mxu0 0
  %256 = vmatpush1.bf16.msra.mxu0 %v243
  %257 = vmatprep.subr.bf16.mxu0 0
  %258 = vmatpush1.bf16.msra.mxu0 %v242
  %259 = vmatprep.subr.bf16.mxu0 0
  %260 = vmatpush1.bf16.msra.mxu0 %v241
  %261 = vmatprep.subr.bf16.mxu0 0
  %262 = vmatpush1.bf16.msra.mxu0 %v240
  %263 = vmatprep.subr.bf16.mxu0 0
  %264 = vmatpush1.bf16.msra.mxu0 %v239
  %265 = vmatprep.subr.bf16.mxu0 0
  %266 = vmatpush1.bf16.msra.mxu0 %v238
  %267 = vmatprep.subr.bf16.mxu0 0
  %268 = vmatpush1.bf16.msra.mxu0 %v237
  %269 = vmatprep.subr.bf16.mxu0 0
  %270 = vmatpush2.bf16.msra.mxu0 0
  %271 = vmatprep.subr.bf16.mxu0 0
  %272 = vmatpush2.bf16.msra.mxu0 0
  %273 = vmatprep.subr.bf16.mxu0 0
  %274 = vmatpush2.bf16.msra.mxu0 0
  %275 = vmatprep.subr.bf16.mxu0 0
  %276 = vmatpush2.bf16.msra.mxu0 0
  %277 = vmatprep.subr.bf16.mxu0 0
  %278 = vmatpush2.bf16.msra.mxu0 0
  %279 = vmatprep.subr.bf16.mxu0 0
  %280 = vmatpush2.bf16.msra.mxu0 0
  %281 = vmatprep.subr.bf16.mxu0 0
  %282 = vmatpush2.bf16.msra.mxu0 0
  %283 = vmatprep.subr.bf16.mxu0 0
  %284 = vmatpush2.bf16.msra.mxu0 0
  %285 = vmatprep.mubr.bf16.mxu0 0
  %286 = vmatmul.mubr.bf16.gmra.mxu0 %v203
  %v287 = vpop.f32.mrf.mxu0
  %v288 = vadd.f32 %v197, %v287
  %v289 = vpop.f32.mrf.mxu0
  %v290 = vpop.f32.mrf.mxu0
  %v291 = vadd.f32 %v197, %v290
  %v292 = vpop.f32.mrf.mxu0
  %293 = vdwg.mxu0
  %v294 = vpack.c.bf16 %v288, %v288
  %v295 = vpack.c.bf16 %v291, %v291
  %s296 = scalar_lea.vmem %s5, 8
  %v297 = vld [vmem:[%s296] sm:$0x1]
  %v299 = vlaneseq
  %v300 = vshrl.u32 %v299, 7
  %v301 = vsub.s32 0, %v300
  %v302 = vrot.slane %v297, %v301
  %v320 = vunpack.c.l.b16 %v71
  %v321 = vunpack.c.l.b16 %v72
  %v322 = vunpack.c.l.b16 %v73
  %v323 = vunpack.c.l.b16 %v74
  %v324 = vunpack.c.l.b16 %v75
  %v325 = vunpack.c.l.b16 %v76
  %v326 = vunpack.c.l.b16 %v77
  %v327 = vunpack.c.l.b16 %v78
  %v328 = vunpack.c.l.b16 %v79
  %v329 = vunpack.c.l.b16 %v80
  %v330 = vunpack.c.l.b16 %v81
  %v331 = vunpack.c.l.b16 %v82
  %v332 = vunpack.c.l.b16 %v83
  %v333 = vunpack.c.l.b16 %v84
  %v334 = vunpack.c.l.b16 %v85
  %v335 = vunpack.c.l.b16 %v86
  %v336 = vpack.c.b16 %v321, %v320
  %v337 = vpack.c.b16 %v323, %v322
  %v338 = vpack.c.b16 %v325, %v324
  %v339 = vpack.c.b16 %v327, %v326
  %v340 = vpack.c.b16 %v329, %v328
  %v341 = vpack.c.b16 %v331, %v330
  %v342 = vpack.c.b16 %v333, %v332
  %v343 = vpack.c.b16 %v335, %v334
  %352 = vmatprep.subr.bf16.mxu0 0
  %353 = vmatpush1.bf16.msra.mxu0 %v343
  %354 = vmatprep.subr.bf16.mxu0 0
  %355 = vmatpush1.bf16.msra.mxu0 %v342
  %356 = vmatprep.subr.bf16.mxu0 0
  %357 = vmatpush1.bf16.msra.mxu0 %v341
  %358 = vmatprep.subr.bf16.mxu0 0
  %359 = vmatpush1.bf16.msra.mxu0 %v340
  %360 = vmatprep.subr.bf16.mxu0 0
  %361 = vmatpush1.bf16.msra.mxu0 %v339
  %362 = vmatprep.subr.bf16.mxu0 0
  %363 = vmatpush1.bf16.msra.mxu0 %v338
  %364 = vmatprep.subr.bf16.mxu0 0
  %365 = vmatpush1.bf16.msra.mxu0 %v337
  %366 = vmatprep.subr.bf16.mxu0 0
  %367 = vmatpush1.bf16.msra.mxu0 %v336
  %368 = vmatprep.subr.bf16.mxu0 0
  %369 = vmatpush2.bf16.msra.mxu0 0
  %370 = vmatprep.subr.bf16.mxu0 0
  %371 = vmatpush2.bf16.msra.mxu0 0
  %372 = vmatprep.subr.bf16.mxu0 0
  %373 = vmatpush2.bf16.msra.mxu0 0
  %374 = vmatprep.subr.bf16.mxu0 0
  %375 = vmatpush2.bf16.msra.mxu0 0
  %376 = vmatprep.subr.bf16.mxu0 0
  %377 = vmatpush2.bf16.msra.mxu0 0
  %378 = vmatprep.subr.bf16.mxu0 0
  %379 = vmatpush2.bf16.msra.mxu0 0
  %380 = vmatprep.subr.bf16.mxu0 0
  %381 = vmatpush2.bf16.msra.mxu0 0
  %382 = vmatprep.subr.bf16.mxu0 0
  %383 = vmatpush2.bf16.msra.mxu0 0
  %384 = vmatprep.mubr.bf16.mxu0 0
  %385 = vmatmul.mubr.bf16.gmra.mxu0 %v203
  %v386 = vpop.f32.mrf.mxu0
  %v387 = vadd.f32 %v302, %v386
  %v388 = vpop.f32.mrf.mxu0
  %v389 = vpop.f32.mrf.mxu0
  %v390 = vadd.f32 %v302, %v389
  %v391 = vpop.f32.mrf.mxu0
  %392 = vdwg.mxu0
  %v393 = vpack.c.bf16 %v387, %v387
  %v394 = vpack.c.bf16 %v390, %v390
  %vm395 = vcmask 261120
  %v397 = vsel %vm395, %v189, 0
  %v400 = vsel %vm395, %v294, 0
  %402 = vmatprep.subr.bf16.mxu0 0
  %403 = vmatpush1.bf16.xpose.msra.mxu0 0
  %404 = vmatprep.subr.bf16.mxu0 0
  %405 = vmatpush1.bf16.xpose.msra.mxu0 0
  %406 = vmatprep.subr.bf16.mxu0 0
  %407 = vmatpush1.bf16.xpose.msra.mxu0 0
  %408 = vmatprep.subr.bf16.mxu0 0
  %409 = vmatpush1.bf16.xpose.msra.mxu0 0
  %410 = vmatprep.subr.bf16.mxu0 0
  %411 = vmatpush1.bf16.xpose.msra.mxu0 0
  %412 = vmatprep.subr.bf16.mxu0 0
  %413 = vmatpush1.bf16.xpose.msra.mxu0 0
  %414 = vmatprep.subr.bf16.mxu0 0
  %415 = vmatpush1.bf16.xpose.msra.mxu0 0
  %416 = vmatprep.subr.bf16.mxu0 0
  %417 = vmatpush1.bf16.xpose.msra.mxu0 %v400
  %418 = vmatprep.subr.bf16.mxu0 0
  %419 = vmatpush2.bf16.xpose.msra.mxu0 0
  %420 = vmatprep.subr.bf16.mxu0 0
  %421 = vmatpush2.bf16.xpose.msra.mxu0 0
  %422 = vmatprep.subr.bf16.mxu0 0
  %423 = vmatpush2.bf16.xpose.msra.mxu0 0
  %424 = vmatprep.subr.bf16.mxu0 0
  %425 = vmatpush2.bf16.xpose.msra.mxu0 0
  %426 = vmatprep.subr.bf16.mxu0 0
  %427 = vmatpush2.bf16.xpose.msra.mxu0 0
  %428 = vmatprep.subr.bf16.mxu0 0
  %429 = vmatpush2.bf16.xpose.msra.mxu0 0
  %430 = vmatprep.subr.bf16.mxu0 0
  %431 = vmatpush2.bf16.xpose.msra.mxu0 0
  %432 = vmatprep.subr.bf16.mxu0 0
  %433 = vmatpush2.bf16.xpose.msra.mxu0 0
  %434 = vmatprep.mubr.bf16.mxu0 0
  %435 = vmatmul.mubr.bf16.gmra.mxu0 %v397
  %v436 = vpop.f32.mrf.mxu0
  %v437 = vadd.f32 0.0, %v436
  %v438 = vpop.f32.mrf.mxu0
  %v439 = vpop.f32.mrf.mxu0
  %v440 = vpop.f32.mrf.mxu0
  %441 = vdwg.mxu0
  %v443 = vsel %vm395, %v190, 0
  %v446 = vsel %vm395, %v295, 0
  %448 = vmatprep.subr.bf16.mxu0 0
  %449 = vmatpush1.bf16.xpose.msra.mxu0 0
  %450 = vmatprep.subr.bf16.mxu0 0
  %451 = vmatpush1.bf16.xpose.msra.mxu0 0
  %452 = vmatprep.subr.bf16.mxu0 0
  %453 = vmatpush1.bf16.xpose.msra.mxu0 0
  %454 = vmatprep.subr.bf16.mxu0 0
  %455 = vmatpush1.bf16.xpose.msra.mxu0 0
  %456 = vmatprep.subr.bf16.mxu0 0
  %457 = vmatpush1.bf16.xpose.msra.mxu0 0
  %458 = vmatprep.subr.bf16.mxu0 0
  %459 = vmatpush1.bf16.xpose.msra.mxu0 0
  %460 = vmatprep.subr.bf16.mxu0 0
  %461 = vmatpush1.bf16.xpose.msra.mxu0 0
  %462 = vmatprep.subr.bf16.mxu0 0
  %463 = vmatpush1.bf16.xpose.msra.mxu0 %v446
  %464 = vmatprep.subr.bf16.mxu0 0
  %465 = vmatpush2.bf16.xpose.msra.mxu0 0
  %466 = vmatprep.subr.bf16.mxu0 0
  %467 = vmatpush2.bf16.xpose.msra.mxu0 0
  %468 = vmatprep.subr.bf16.mxu0 0
  %469 = vmatpush2.bf16.xpose.msra.mxu0 0
  %470 = vmatprep.subr.bf16.mxu0 0
  %471 = vmatpush2.bf16.xpose.msra.mxu0 0
  %472 = vmatprep.subr.bf16.mxu0 0
  %473 = vmatpush2.bf16.xpose.msra.mxu0 0
  %474 = vmatprep.subr.bf16.mxu0 0
  %475 = vmatpush2.bf16.xpose.msra.mxu0 0
  %476 = vmatprep.subr.bf16.mxu0 0
  %477 = vmatpush2.bf16.xpose.msra.mxu0 0
  %478 = vmatprep.subr.bf16.mxu0 0
  %479 = vmatpush2.bf16.xpose.msra.mxu0 0
  %480 = vmatprep.mubr.bf16.mxu0 0
  %481 = vmatmul.mubr.bf16.gmra.mxu0 %v443
  %v482 = vpop.f32.mrf.mxu0
  %v483 = vadd.f32 0.0, %v482
  %v484 = vpop.f32.mrf.mxu0
  %v485 = vpop.f32.mrf.mxu0
  %v486 = vpop.f32.mrf.mxu0
  %487 = vdwg.mxu0
  %v488 = vmul.f32 %v437, 0.17677669
  %v489 = vmul.f32 %v483, 0.17677669
  %v490 = vsel %vm35, 65537, 0
  %v491 = vsel %vm36, 65537, 0
  %v492 = vunpack.c.l.b16 %v490
  %v493 = vunpack.c.l.b16 %v491
  %vm494 = vcmp.ne.s32.totalorder %v492, 0
  %vm495 = vcmp.ne.s32.totalorder %v493, 0
  %v496 = vsel %vm494, -10000.0, %v488
  %v497 = vsel %vm495, -10000.0, %v489
  %vm498 = vcmask 64512
  %v499 = vsel %vm498, %v496, -inf
  %500 = vmax.xlane.f32.xlu0 %v499
  %v501 = vpop.xlane.xlu0 %500
  %v502 = vsel %vm498, %v497, -inf
  %503 = vmax.xlane.f32.xlu0 %v502
  %v504 = vpop.xlane.xlu0 %503
  %v505 = vsub.f32 %v496, %v501
  %v506 = vsub.f32 %v497, %v504
  %v507 = vmul.f32 %v505, 1.442695
  %v508 = vpow.pop %v507
  %v509 = vmul.f32 %v506, 1.442695
  %v510 = vpow.pop %v509
  %v511 = vsel %vm498, %v508, 0.0
  %512 = vadd.xlane.f32.xlu0 %v511
  %v513 = vpop.xlane.xlu0 %512
  %v514 = vsel %vm498, %v510, 0.0
  %515 = vadd.xlane.f32.xlu0 %v514
  %v516 = vpop.xlane.xlu0 %515
  %v517 = vrcp.pop %v513
  %v518 = vmul.f32 %v508, %v517
  %v519 = vrcp.pop %v516
  %v520 = vmul.f32 %v510, %v519
  %v521 = vpack.c.bf16 %v518, %v518
  %v522 = vpack.c.bf16 %v520, %v520
  %v524 = vsel %vm498, %v521, 0
  %vm526 = vcmask 1043456
  %v528 = vsel %vm526, %v393, 0
  %530 = vmatprep.subr.bf16.mxu0 0
  %531 = vmatpush1.bf16.msra.mxu0 0
  %532 = vmatprep.subr.bf16.mxu0 0
  %533 = vmatpush1.bf16.msra.mxu0 0
  %534 = vmatprep.subr.bf16.mxu0 0
  %535 = vmatpush1.bf16.msra.mxu0 0
  %536 = vmatprep.subr.bf16.mxu0 0
  %537 = vmatpush1.bf16.msra.mxu0 0
  %538 = vmatprep.subr.bf16.mxu0 0
  %539 = vmatpush1.bf16.msra.mxu0 0
  %540 = vmatprep.subr.bf16.mxu0 0
  %541 = vmatpush1.bf16.msra.mxu0 0
  %542 = vmatprep.subr.bf16.mxu0 0
  %543 = vmatpush1.bf16.msra.mxu0 0
  %544 = vmatprep.subr.bf16.mxu0 0
  %545 = vmatpush1.bf16.msra.mxu0 %v528
  %546 = vmatprep.subr.bf16.mxu0 0
  %547 = vmatpush2.bf16.msra.mxu0 0
  %548 = vmatprep.subr.bf16.mxu0 0
  %549 = vmatpush2.bf16.msra.mxu0 0
  %550 = vmatprep.subr.bf16.mxu0 0
  %551 = vmatpush2.bf16.msra.mxu0 0
  %552 = vmatprep.subr.bf16.mxu0 0
  %553 = vmatpush2.bf16.msra.mxu0 0
  %554 = vmatprep.subr.bf16.mxu0 0
  %555 = vmatpush2.bf16.msra.mxu0 0
  %556 = vmatprep.subr.bf16.mxu0 0
  %557 = vmatpush2.bf16.msra.mxu0 0
  %558 = vmatprep.subr.bf16.mxu0 0
  %559 = vmatpush2.bf16.msra.mxu0 0
  %560 = vmatprep.subr.bf16.mxu0 0
  %561 = vmatpush2.bf16.msra.mxu0 0
  %562 = vmatprep.mubr.bf16.mxu0 0
  %563 = vmatmul.mubr.bf16.gmra.mxu0 %v524
  %v564 = vpop.f32.mrf.mxu0
  %v565 = vadd.f32 0.0, %v564
  %v566 = vpop.f32.mrf.mxu0
  %v567 = vpop.f32.mrf.mxu0
  %v568 = vpop.f32.mrf.mxu0
  %569 = vdwg.mxu0
  %v571 = vsel %vm498, %v522, 0
  %v574 = vsel %vm526, %v394, 0
  %576 = vmatprep.subr.bf16.mxu0 0
  %577 = vmatpush1.bf16.msra.mxu0 0
  %578 = vmatprep.subr.bf16.mxu0 0
  %579 = vmatpush1.bf16.msra.mxu0 0
  %580 = vmatprep.subr.bf16.mxu0 0
  %581 = vmatpush1.bf16.msra.mxu0 0
  %582 = vmatprep.subr.bf16.mxu0 0
  %583 = vmatpush1.bf16.msra.mxu0 0
  %584 = vmatprep.subr.bf16.mxu0 0
  %585 = vmatpush1.bf16.msra.mxu0 0
  %586 = vmatprep.subr.bf16.mxu0 0
  %587 = vmatpush1.bf16.msra.mxu0 0
  %588 = vmatprep.subr.bf16.mxu0 0
  %589 = vmatpush1.bf16.msra.mxu0 0
  %590 = vmatprep.subr.bf16.mxu0 0
  %591 = vmatpush1.bf16.msra.mxu0 %v574
  %592 = vmatprep.subr.bf16.mxu0 0
  %593 = vmatpush2.bf16.msra.mxu0 0
  %594 = vmatprep.subr.bf16.mxu0 0
  %595 = vmatpush2.bf16.msra.mxu0 0
  %596 = vmatprep.subr.bf16.mxu0 0
  %597 = vmatpush2.bf16.msra.mxu0 0
  %598 = vmatprep.subr.bf16.mxu0 0
  %599 = vmatpush2.bf16.msra.mxu0 0
  %600 = vmatprep.subr.bf16.mxu0 0
  %601 = vmatpush2.bf16.msra.mxu0 0
  %602 = vmatprep.subr.bf16.mxu0 0
  %603 = vmatpush2.bf16.msra.mxu0 0
  %604 = vmatprep.subr.bf16.mxu0 0
  %605 = vmatpush2.bf16.msra.mxu0 0
  %606 = vmatprep.subr.bf16.mxu0 0
  %607 = vmatpush2.bf16.msra.mxu0 0
  %608 = vmatprep.mubr.bf16.mxu0 0
  %609 = vmatmul.mubr.bf16.gmra.mxu0 %v571
  %v610 = vpop.f32.mrf.mxu0
  %v611 = vadd.f32 0.0, %v610
  %v612 = vpop.f32.mrf.mxu0
  %v613 = vpop.f32.mrf.mxu0
  %v614 = vpop.f32.mrf.mxu0
  %615 = vdwg.mxu0
  %v616 = vpack.c.bf16 %v611, %v565
  %v617 = vld [vmem:[%s4] sm:$0xf]
  %v618 = vld [vmem:[%s4 + $0x4] sm:$0xf]
  %v619 = vld [vmem:[%s4 + $0x8] sm:$0xf]
  %v620 = vld [vmem:[%s4 + $0xc] sm:$0xf]
  %s621 = scalar_lea.vmem %s3, 64
  %v622 = vld [vmem:[%s621] sm:$0xf]
  %v623 = vld [vmem:[%s621 + $0x4] sm:$0xf]
  %v624 = vld [vmem:[%s621 + $0x8] sm:$0xf]
  %v625 = vld [vmem:[%s621 + $0xc] sm:$0xf]
  %v626 = vld [vmem:[%s621 + $0x10] sm:$0xf]
  %v627 = vld [vmem:[%s621 + $0x14] sm:$0xf]
  %v628 = vld [vmem:[%s621 + $0x18] sm:$0xf]
  %v629 = vld [vmem:[%s621 + $0x1c] sm:$0xf]
  %v630 = vld [vmem:[%s621 + $0x20] sm:$0xf]
  %v631 = vld [vmem:[%s621 + $0x24] sm:$0xf]
  %v632 = vld [vmem:[%s621 + $0x28] sm:$0xf]
  %v633 = vld [vmem:[%s621 + $0x2c] sm:$0xf]
  %v634 = vld [vmem:[%s621 + $0x30] sm:$0xf]
  %v635 = vld [vmem:[%s621 + $0x34] sm:$0xf]
  %v636 = vld [vmem:[%s621 + $0x38] sm:$0xf]
  %v637 = vld [vmem:[%s621 + $0x3c] sm:$0xf]
  %s638 = scalar_lea.vmem %s3, 320
  %v639 = vld [vmem:[%s638] sm:$0xf]
  %v640 = vld [vmem:[%s638 + $0x4] sm:$0xf]
  %v641 = vld [vmem:[%s638 + $0x8] sm:$0xf]
  %v642 = vld [vmem:[%s638 + $0xc] sm:$0xf]
  %v643 = vld [vmem:[%s638 + $0x10] sm:$0xf]
  %v644 = vld [vmem:[%s638 + $0x14] sm:$0xf]
  %v645 = vld [vmem:[%s638 + $0x18] sm:$0xf]
  %v646 = vld [vmem:[%s638 + $0x1c] sm:$0xf]
  %v647 = vld [vmem:[%s638 + $0x20] sm:$0xf]
  %v648 = vld [vmem:[%s638 + $0x24] sm:$0xf]
  %v649 = vld [vmem:[%s638 + $0x28] sm:$0xf]
  %v650 = vld [vmem:[%s638 + $0x2c] sm:$0xf]
  %v651 = vld [vmem:[%s638 + $0x30] sm:$0xf]
  %v652 = vld [vmem:[%s638 + $0x34] sm:$0xf]
  %v653 = vld [vmem:[%s638 + $0x38] sm:$0xf]
  %v654 = vld [vmem:[%s638 + $0x3c] sm:$0xf]
  %s655 = scalar_lea.vmem %s3, 576
  %v656 = vld [vmem:[%s655] sm:$0xf]
  %v657 = vld [vmem:[%s655 + $0x4] sm:$0xf]
  %v658 = vld [vmem:[%s655 + $0x8] sm:$0xf]
  %v659 = vld [vmem:[%s655 + $0xc] sm:$0xf]
  %v660 = vld [vmem:[%s655 + $0x10] sm:$0xf]
  %v661 = vld [vmem:[%s655 + $0x14] sm:$0xf]
  %v662 = vld [vmem:[%s655 + $0x18] sm:$0xf]
  %v663 = vld [vmem:[%s655 + $0x1c] sm:$0xf]
  %v664 = vld [vmem:[%s655 + $0x20] sm:$0xf]
  %v665 = vld [vmem:[%s655 + $0x24] sm:$0xf]
  %v666 = vld [vmem:[%s655 + $0x28] sm:$0xf]
  %v667 = vld [vmem:[%s655 + $0x2c] sm:$0xf]
  %v668 = vld [vmem:[%s655 + $0x30] sm:$0xf]
  %v669 = vld [vmem:[%s655 + $0x34] sm:$0xf]
  %v670 = vld [vmem:[%s655 + $0x38] sm:$0xf]
  %v671 = vld [vmem:[%s655 + $0x3c] sm:$0xf]
  %s672 = scalar_lea.vmem %s5, 1
  %v673 = vld [vmem:[%s672] sm:$0x1]
  %v675 = vlaneseq
  %v676 = vshrl.u32 %v675, 7
  %v677 = vsub.s32 0, %v676
  %v678 = vrot.slane %v673, %v677
  %v696 = vunpack.c.l.b16 %v622
  %v697 = vunpack.c.l.b16 %v623
  %v698 = vunpack.c.l.b16 %v624
  %v699 = vunpack.c.l.b16 %v625
  %v700 = vunpack.c.l.b16 %v626
  %v701 = vunpack.c.l.b16 %v627
  %v702 = vunpack.c.l.b16 %v628
  %v703 = vunpack.c.l.b16 %v629
  %v704 = vunpack.c.l.b16 %v630
  %v705 = vunpack.c.l.b16 %v631
  %v706 = vunpack.c.l.b16 %v632
  %v707 = vunpack.c.l.b16 %v633
  %v708 = vunpack.c.l.b16 %v634
  %v709 = vunpack.c.l.b16 %v635
  %v710 = vunpack.c.l.b16 %v636
  %v711 = vunpack.c.l.b16 %v637
  %v712 = vpack.c.b16 %v697, %v696
  %v713 = vpack.c.b16 %v699, %v698
  %v714 = vpack.c.b16 %v701, %v700
  %v715 = vpack.c.b16 %v703, %v702
  %v716 = vpack.c.b16 %v705, %v704
  %v717 = vpack.c.b16 %v707, %v706
  %v718 = vpack.c.b16 %v709, %v708
  %v719 = vpack.c.b16 %v711, %v710
  %728 = vmatprep.subr.bf16.mxu0 0
  %729 = vmatpush1.bf16.msra.mxu0 %v719
  %730 = vmatprep.subr.bf16.mxu0 0
  %731 = vmatpush1.bf16.msra.mxu0 %v718
  %732 = vmatprep.subr.bf16.mxu0 0
  %733 = vmatpush1.bf16.msra.mxu0 %v717
  %734 = vmatprep.subr.bf16.mxu0 0
  %735 = vmatpush1.bf16.msra.mxu0 %v716
  %736 = vmatprep.subr.bf16.mxu0 0
  %737 = vmatpush1.bf16.msra.mxu0 %v715
  %738 = vmatprep.subr.bf16.mxu0 0
  %739 = vmatpush1.bf16.msra.mxu0 %v714
  %740 = vmatprep.subr.bf16.mxu0 0
  %741 = vmatpush1.bf16.msra.mxu0 %v713
  %742 = vmatprep.subr.bf16.mxu0 0
  %743 = vmatpush1.bf16.msra.mxu0 %v712
  %744 = vmatprep.subr.bf16.mxu0 0
  %745 = vmatpush2.bf16.msra.mxu0 0
  %746 = vmatprep.subr.bf16.mxu0 0
  %747 = vmatpush2.bf16.msra.mxu0 0
  %748 = vmatprep.subr.bf16.mxu0 0
  %749 = vmatpush2.bf16.msra.mxu0 0
  %750 = vmatprep.subr.bf16.mxu0 0
  %751 = vmatpush2.bf16.msra.mxu0 0
  %752 = vmatprep.subr.bf16.mxu0 0
  %753 = vmatpush2.bf16.msra.mxu0 0
  %754 = vmatprep.subr.bf16.mxu0 0
  %755 = vmatpush2.bf16.msra.mxu0 0
  %756 = vmatprep.subr.bf16.mxu0 0
  %757 = vmatpush2.bf16.msra.mxu0 0
  %758 = vmatprep.subr.bf16.mxu0 0
  %759 = vmatpush2.bf16.msra.mxu0 0
  %760 = vmatprep.mubr.bf16.mxu0 0
  %761 = vmatmul.mubr.bf16.gmra.mxu0 %v98
  %v762 = vpop.f32.mrf.mxu0
  %v763 = vadd.f32 %v678, %v762
  %v764 = vpop.f32.mrf.mxu0
  %v765 = vpop.f32.mrf.mxu0
  %v766 = vadd.f32 %v678, %v765
  %v767 = vpop.f32.mrf.mxu0
  %768 = vdwg.mxu0
  %v769 = vpack.c.bf16 %v763, %v763
  %v770 = vpack.c.bf16 %v766, %v766
  %s771 = scalar_lea.vmem %s5, 5
  %v772 = vld [vmem:[%s771] sm:$0x1]
  %v774 = vlaneseq
  %v775 = vshrl.u32 %v774, 7
  %v776 = vsub.s32 0, %v775
  %v777 = vrot.slane %v772, %v776
  %v795 = vunpack.c.l.b16 %v639
  %v796 = vunpack.c.l.b16 %v640
  %v797 = vunpack.c.l.b16 %v641
  %v798 = vunpack.c.l.b16 %v642
  %v799 = vunpack.c.l.b16 %v643
  %v800 = vunpack.c.l.b16 %v644
  %v801 = vunpack.c.l.b16 %v645
  %v802 = vunpack.c.l.b16 %v646
  %v803 = vunpack.c.l.b16 %v647
  %v804 = vunpack.c.l.b16 %v648
  %v805 = vunpack.c.l.b16 %v649
  %v806 = vunpack.c.l.b16 %v650
  %v807 = vunpack.c.l.b16 %v651
  %v808 = vunpack.c.l.b16 %v652
  %v809 = vunpack.c.l.b16 %v653
  %v810 = vunpack.c.l.b16 %v654
  %v811 = vpack.c.b16 %v796, %v795
  %v812 = vpack.c.b16 %v798, %v797
  %v813 = vpack.c.b16 %v800, %v799
  %v814 = vpack.c.b16 %v802, %v801
  %v815 = vpack.c.b16 %v804, %v803
  %v816 = vpack.c.b16 %v806, %v805
  %v817 = vpack.c.b16 %v808, %v807
  %v818 = vpack.c.b16 %v810, %v809
  %827 = vmatprep.subr.bf16.mxu0 0
  %828 = vmatpush1.bf16.msra.mxu0 %v818
  %829 = vmatprep.subr.bf16.mxu0 0
  %830 = vmatpush1.bf16.msra.mxu0 %v817
  %831 = vmatprep.subr.bf16.mxu0 0
  %832 = vmatpush1.bf16.msra.mxu0 %v816
  %833 = vmatprep.subr.bf16.mxu0 0
  %834 = vmatpush1.bf16.msra.mxu0 %v815
  %835 = vmatprep.subr.bf16.mxu0 0
  %836 = vmatpush1.bf16.msra.mxu0 %v814
  %837 = vmatprep.subr.bf16.mxu0 0
  %838 = vmatpush1.bf16.msra.mxu0 %v813
  %839 = vmatprep.subr.bf16.mxu0 0
  %840 = vmatpush1.bf16.msra.mxu0 %v812
  %841 = vmatprep.subr.bf16.mxu0 0
  %842 = vmatpush1.bf16.msra.mxu0 %v811
  %843 = vmatprep.subr.bf16.mxu0 0
  %844 = vmatpush2.bf16.msra.mxu0 0
  %845 = vmatprep.subr.bf16.mxu0 0
  %846 = vmatpush2.bf16.msra.mxu0 0
  %847 = vmatprep.subr.bf16.mxu0 0
  %848 = vmatpush2.bf16.msra.mxu0 0
  %849 = vmatprep.subr.bf16.mxu0 0
  %850 = vmatpush2.bf16.msra.mxu0 0
  %851 = vmatprep.subr.bf16.mxu0 0
  %852 = vmatpush2.bf16.msra.mxu0 0
  %853 = vmatprep.subr.bf16.mxu0 0
  %854 = vmatpush2.bf16.msra.mxu0 0
  %855 = vmatprep.subr.bf16.mxu0 0
  %856 = vmatpush2.bf16.msra.mxu0 0
  %857 = vmatprep.subr.bf16.mxu0 0
  %858 = vmatpush2.bf16.msra.mxu0 0
  %859 = vmatprep.mubr.bf16.mxu0 0
  %860 = vmatmul.mubr.bf16.gmra.mxu0 %v203
  %v861 = vpop.f32.mrf.mxu0
  %v862 = vadd.f32 %v777, %v861
  %v863 = vpop.f32.mrf.mxu0
  %v864 = vpop.f32.mrf.mxu0
  %v865 = vadd.f32 %v777, %v864
  %v866 = vpop.f32.mrf.mxu0
  %867 = vdwg.mxu0
  %v868 = vpack.c.bf16 %v862, %v862
  %v869 = vpack.c.bf16 %v865, %v865
  %s870 = scalar_lea.vmem %s5, 9
  %v871 = vld [vmem:[%s870] sm:$0x1]
  %v873 = vlaneseq
  %v874 = vshrl.u32 %v873, 7
  %v875 = vsub.s32 0, %v874
  %v876 = vrot.slane %v871, %v875
  %v894 = vunpack.c.l.b16 %v656
  %v895 = vunpack.c.l.b16 %v657
  %v896 = vunpack.c.l.b16 %v658
  %v897 = vunpack.c.l.b16 %v659
  %v898 = vunpack.c.l.b16 %v660
  %v899 = vunpack.c.l.b16 %v661
  %v900 = vunpack.c.l.b16 %v662
  %v901 = vunpack.c.l.b16 %v663
  %v902 = vunpack.c.l.b16 %v664
  %v903 = vunpack.c.l.b16 %v665
  %v904 = vunpack.c.l.b16 %v666
  %v905 = vunpack.c.l.b16 %v667
  %v906 = vunpack.c.l.b16 %v668
  %v907 = vunpack.c.l.b16 %v669
  %v908 = vunpack.c.l.b16 %v670
  %v909 = vunpack.c.l.b16 %v671
  %v910 = vpack.c.b16 %v895, %v894
  %v911 = vpack.c.b16 %v897, %v896
  %v912 = vpack.c.b16 %v899, %v898
  %v913 = vpack.c.b16 %v901, %v900
  %v914 = vpack.c.b16 %v903, %v902
  %v915 = vpack.c.b16 %v905, %v904
  %v916 = vpack.c.b16 %v907, %v906
  %v917 = vpack.c.b16 %v909, %v908
  %926 = vmatprep.subr.bf16.mxu0 0
  %927 = vmatpush1.bf16.msra.mxu0 %v917
  %928 = vmatprep.subr.bf16.mxu0 0
  %929 = vmatpush1.bf16.msra.mxu0 %v916
  %930 = vmatprep.subr.bf16.mxu0 0
  %931 = vmatpush1.bf16.msra.mxu0 %v915
  %932 = vmatprep.subr.bf16.mxu0 0
  %933 = vmatpush1.bf16.msra.mxu0 %v914
  %934 = vmatprep.subr.bf16.mxu0 0
  %935 = vmatpush1.bf16.msra.mxu0 %v913
  %936 = vmatprep.subr.bf16.mxu0 0
  %937 = vmatpush1.bf16.msra.mxu0 %v912
  %938 = vmatprep.subr.bf16.mxu0 0
  %939 = vmatpush1.bf16.msra.mxu0 %v911
  %940 = vmatprep.subr.bf16.mxu0 0
  %941 = vmatpush1.bf16.msra.mxu0 %v910
  %942 = vmatprep.subr.bf16.mxu0 0
  %943 = vmatpush2.bf16.msra.mxu0 0
  %944 = vmatprep.subr.bf16.mxu0 0
  %945 = vmatpush2.bf16.msra.mxu0 0
  %946 = vmatprep.subr.bf16.mxu0 0
  %947 = vmatpush2.bf16.msra.mxu0 0
  %948 = vmatprep.subr.bf16.mxu0 0
  %949 = vmatpush2.bf16.msra.mxu0 0
  %950 = vmatprep.subr.bf16.mxu0 0
  %951 = vmatpush2.bf16.msra.mxu0 0
  %952 = vmatprep.subr.bf16.mxu0 0
  %953 = vmatpush2.bf16.msra.mxu0 0
  %954 = vmatprep.subr.bf16.mxu0 0
  %955 = vmatpush2.bf16.msra.mxu0 0
  %956 = vmatprep.subr.bf16.mxu0 0
  %957 = vmatpush2.bf16.msra.mxu0 0
  %958 = vmatprep.mubr.bf16.mxu0 0
  %959 = vmatmul.mubr.bf16.gmra.mxu0 %v203
  %v960 = vpop.f32.mrf.mxu0
  %v961 = vadd.f32 %v876, %v960
  %v962 = vpop.f32.mrf.mxu0
  %v963 = vpop.f32.mrf.mxu0
  %v964 = vadd.f32 %v876, %v963
  %v965 = vpop.f32.mrf.mxu0
  %966 = vdwg.mxu0
  %v967 = vpack.c.bf16 %v961, %v961
  %v968 = vpack.c.bf16 %v964, %v964
  %v970 = vsel %vm395, %v769, 0
  %v973 = vsel %vm395, %v868, 0
  %975 = vmatprep.subr.bf16.mxu0 0
  %976 = vmatpush1.bf16.xpose.msra.mxu0 0
  %977 = vmatprep.subr.bf16.mxu0 0
  %978 = vmatpush1.bf16.xpose.msra.mxu0 0
  %979 = vmatprep.subr.bf16.mxu0 0
  %980 = vmatpush1.bf16.xpose.msra.mxu0 0
  %981 = vmatprep.subr.bf16.mxu0 0
  %982 = vmatpush1.bf16.xpose.msra.mxu0 0
  %983 = vmatprep.subr.bf16.mxu0 0
  %984 = vmatpush1.bf16.xpose.msra.mxu0 0
  %985 = vmatprep.subr.bf16.mxu0 0
  %986 = vmatpush1.bf16.xpose.msra.mxu0 0
  %987 = vmatprep.subr.bf16.mxu0 0
  %988 = vmatpush1.bf16.xpose.msra.mxu0 0
  %989 = vmatprep.subr.bf16.mxu0 0
  %990 = vmatpush1.bf16.xpose.msra.mxu0 %v973
  %991 = vmatprep.subr.bf16.mxu0 0
  %992 = vmatpush2.bf16.xpose.msra.mxu0 0
  %993 = vmatprep.subr.bf16.mxu0 0
  %994 = vmatpush2.bf16.xpose.msra.mxu0 0
  %995 = vmatprep.subr.bf16.mxu0 0
  %996 = vmatpush2.bf16.xpose.msra.mxu0 0
  %997 = vmatprep.subr.bf16.mxu0 0
  %998 = vmatpush2.bf16.xpose.msra.mxu0 0
  %999 = vmatprep.subr.bf16.mxu0 0
  %1000 = vmatpush2.bf16.xpose.msra.mxu0 0
  %1001 = vmatprep.subr.bf16.mxu0 0
  %1002 = vmatpush2.bf16.xpose.msra.mxu0 0
  %1003 = vmatprep.subr.bf16.mxu0 0
  %1004 = vmatpush2.bf16.xpose.msra.mxu0 0
  %1005 = vmatprep.subr.bf16.mxu0 0
  %1006 = vmatpush2.bf16.xpose.msra.mxu0 0
  %1007 = vmatprep.mubr.bf16.mxu0 0
  %1008 = vmatmul.mubr.bf16.gmra.mxu0 %v970
  %v1009 = vpop.f32.mrf.mxu0
  %v1010 = vadd.f32 0.0, %v1009
  %v1011 = vpop.f32.mrf.mxu0
  %v1012 = vpop.f32.mrf.mxu0
  %v1013 = vpop.f32.mrf.mxu0
  %1014 = vdwg.mxu0
  %v1016 = vsel %vm395, %v770, 0
  %v1019 = vsel %vm395, %v869, 0
  %1021 = vmatprep.subr.bf16.mxu0 0
  %1022 = vmatpush1.bf16.xpose.msra.mxu0 0
  %1023 = vmatprep.subr.bf16.mxu0 0
  %1024 = vmatpush1.bf16.xpose.msra.mxu0 0
  %1025 = vmatprep.subr.bf16.mxu0 0
  %1026 = vmatpush1.bf16.xpose.msra.mxu0 0
  %1027 = vmatprep.subr.bf16.mxu0 0
  %1028 = vmatpush1.bf16.xpose.msra.mxu0 0
  %1029 = vmatprep.subr.bf16.mxu0 0
  %1030 = vmatpush1.bf16.xpose.msra.mxu0 0
  %1031 = vmatprep.subr.bf16.mxu0 0
  %1032 = vmatpush1.bf16.xpose.msra.mxu0 0
  %1033 = vmatprep.subr.bf16.mxu0 0
  %1034 = vmatpush1.bf16.xpose.msra.mxu0 0
  %1035 = vmatprep.subr.bf16.mxu0 0
  %1036 = vmatpush1.bf16.xpose.msra.mxu0 %v1019
  %1037 = vmatprep.subr.bf16.mxu0 0
  %1038 = vmatpush2.bf16.xpose.msra.mxu0 0
  %1039 = vmatprep.subr.bf16.mxu0 0
  %1040 = vmatpush2.bf16.xpose.msra.mxu0 0
  %1041 = vmatprep.subr.bf16.mxu0 0
  %1042 = vmatpush2.bf16.xpose.msra.mxu0 0
  %1043 = vmatprep.subr.bf16.mxu0 0
  %1044 = vmatpush2.bf16.xpose.msra.mxu0 0
  %1045 = vmatprep.subr.bf16.mxu0 0
  %1046 = vmatpush2.bf16.xpose.msra.mxu0 0
  %1047 = vmatprep.subr.bf16.mxu0 0
  %1048 = vmatpush2.bf16.xpose.msra.mxu0 0
  %1049 = vmatprep.subr.bf16.mxu0 0
  %1050 = vmatpush2.bf16.xpose.msra.mxu0 0
  %1051 = vmatprep.subr.bf16.mxu0 0
  %1052 = vmatpush2.bf16.xpose.msra.mxu0 0
  %1053 = vmatprep.mubr.bf16.mxu0 0
  %1054 = vmatmul.mubr.bf16.gmra.mxu0 %v1016
  %v1055 = vpop.f32.mrf.mxu0
  %v1056 = vadd.f32 0.0, %v1055
  %v1057 = vpop.f32.mrf.mxu0
  %v1058 = vpop.f32.mrf.mxu0
  %v1059 = vpop.f32.mrf.mxu0
  %1060 = vdwg.mxu0
  %v1061 = vmul.f32 %v1010, 0.17677669
  %v1062 = vmul.f32 %v1056, 0.17677669
  %v1063 = vsel %vm494, -10000.0, %v1061
  %v1064 = vsel %vm495, -10000.0, %v1062
  %v1065 = vsel %vm498, %v1063, -inf
  %1066 = vmax.xlane.f32.xlu0 %v1065
  %v1067 = vpop.xlane.xlu0 %1066
  %v1068 = vsel %vm498, %v1064, -inf
  %1069 = vmax.xlane.f32.xlu0 %v1068
  %v1070 = vpop.xlane.xlu0 %1069
  %v1071 = vsub.f32 %v1063, %v1067
  %v1072 = vsub.f32 %v1064, %v1070
  %v1073 = vmul.f32 %v1071, 1.442695
  %v1074 = vpow.pop %v1073
  %v1075 = vmul.f32 %v1072, 1.442695
  %v1076 = vpow.pop %v1075
  %v1077 = vsel %vm498, %v1074, 0.0
  %1078 = vadd.xlane.f32.xlu0 %v1077
  %v1079 = vpop.xlane.xlu0 %1078
  %v1080 = vsel %vm498, %v1076, 0.0
  %1081 = vadd.xlane.f32.xlu0 %v1080
  %v1082 = vpop.xlane.xlu0 %1081
  %v1083 = vrcp.pop %v1079
  %v1084 = vmul.f32 %v1074, %v1083
  %v1085 = vrcp.pop %v1082
  %v1086 = vmul.f32 %v1076, %v1085
  %v1087 = vpack.c.bf16 %v1084, %v1084
  %v1088 = vpack.c.bf16 %v1086, %v1086
  %v1090 = vsel %vm498, %v1087, 0
  %v1093 = vsel %vm526, %v967, 0
  %1095 = vmatprep.subr.bf16.mxu0 0
  %1096 = vmatpush1.bf16.msra.mxu0 0
  %1097 = vmatprep.subr.bf16.mxu0 0
  %1098 = vmatpush1.bf16.msra.mxu0 0
  %1099 = vmatprep.subr.bf16.mxu0 0
  %1100 = vmatpush1.bf16.msra.mxu0 0
  %1101 = vmatprep.subr.bf16.mxu0 0
  %1102 = vmatpush1.bf16.msra.mxu0 0
  %1103 = vmatprep.subr.bf16.mxu0 0
  %1104 = vmatpush1.bf16.msra.mxu0 0
  %1105 = vmatprep.subr.bf16.mxu0 0
  %1106 = vmatpush1.bf16.msra.mxu0 0
  %1107 = vmatprep.subr.bf16.mxu0 0
  %1108 = vmatpush1.bf16.msra.mxu0 0
  %1109 = vmatprep.subr.bf16.mxu0 0
  %1110 = vmatpush1.bf16.msra.mxu0 %v1093
  %1111 = vmatprep.subr.bf16.mxu0 0
  %1112 = vmatpush2.bf16.msra.mxu0 0
  %1113 = vmatprep.subr.bf16.mxu0 0
  %1114 = vmatpush2.bf16.msra.mxu0 0
  %1115 = vmatprep.subr.bf16.mxu0 0
  %1116 = vmatpush2.bf16.msra.mxu0 0
  %1117 = vmatprep.subr.bf16.mxu0 0
  %1118 = vmatpush2.bf16.msra.mxu0 0
  %1119 = vmatprep.subr.bf16.mxu0 0
  %1120 = vmatpush2.bf16.msra.mxu0 0
  %1121 = vmatprep.subr.bf16.mxu0 0
  %1122 = vmatpush2.bf16.msra.mxu0 0
  %1123 = vmatprep.subr.bf16.mxu0 0
  %1124 = vmatpush2.bf16.msra.mxu0 0
  %1125 = vmatprep.subr.bf16.mxu0 0
  %1126 = vmatpush2.bf16.msra.mxu0 0
  %1127 = vmatprep.mubr.bf16.mxu0 0
  %1128 = vmatmul.mubr.bf16.gmra.mxu0 %v1090
  %v1129 = vpop.f32.mrf.mxu0
  %v1130 = vadd.f32 0.0, %v1129
  %v1131 = vpop.f32.mrf.mxu0
  %v1132 = vpop.f32.mrf.mxu0
  %v1133 = vpop.f32.mrf.mxu0
  %1134 = vdwg.mxu0
  %v1136 = vsel %vm498, %v1088, 0
  %v1139 = vsel %vm526, %v968, 0
  %1141 = vmatprep.subr.bf16.mxu0 0
  %1142 = vmatpush1.bf16.msra.mxu0 0
  %1143 = vmatprep.subr.bf16.mxu0 0
  %1144 = vmatpush1.bf16.msra.mxu0 0
  %1145 = vmatprep.subr.bf16.mxu0 0
  %1146 = vmatpush1.bf16.msra.mxu0 0
  %1147 = vmatprep.subr.bf16.mxu0 0
  %1148 = vmatpush1.bf16.msra.mxu0 0
  %1149 = vmatprep.subr.bf16.mxu0 0
  %1150 = vmatpush1.bf16.msra.mxu0 0
  %1151 = vmatprep.subr.bf16.mxu0 0
  %1152 = vmatpush1.bf16.msra.mxu0 0
  %1153 = vmatprep.subr.bf16.mxu0 0
  %1154 = vmatpush1.bf16.msra.mxu0 0
  %1155 = vmatprep.subr.bf16.mxu0 0
  %1156 = vmatpush1.bf16.msra.mxu0 %v1139
  %1157 = vmatprep.subr.bf16.mxu0 0
  %1158 = vmatpush2.bf16.msra.mxu0 0
  %1159 = vmatprep.subr.bf16.mxu0 0
  %1160 = vmatpush2.bf16.msra.mxu0 0
  %1161 = vmatprep.subr.bf16.mxu0 0
  %1162 = vmatpush2.bf16.msra.mxu0 0
  %1163 = vmatprep.subr.bf16.mxu0 0
  %1164 = vmatpush2.bf16.msra.mxu0 0
  %1165 = vmatprep.subr.bf16.mxu0 0
  %1166 = vmatpush2.bf16.msra.mxu0 0
  %1167 = vmatprep.subr.bf16.mxu0 0
  %1168 = vmatpush2.bf16.msra.mxu0 0
  %1169 = vmatprep.subr.bf16.mxu0 0
  %1170 = vmatpush2.bf16.msra.mxu0 0
  %1171 = vmatprep.subr.bf16.mxu0 0
  %1172 = vmatpush2.bf16.msra.mxu0 0
  %1173 = vmatprep.mubr.bf16.mxu0 0
  %1174 = vmatmul.mubr.bf16.gmra.mxu0 %v1136
  %v1175 = vpop.f32.mrf.mxu0
  %v1176 = vadd.f32 0.0, %v1175
  %v1177 = vpop.f32.mrf.mxu0
  %v1178 = vpop.f32.mrf.mxu0
  %v1179 = vpop.f32.mrf.mxu0
  %1180 = vdwg.mxu0
  %v1181 = vpack.c.bf16 %v1176, %v1130
  %s1182 = scalar_lea.vmem %s4, 16
  %v1183 = vld [vmem:[%s1182] sm:$0xf]
  %v1184 = vld [vmem:[%s1182 + $0x4] sm:$0xf]
  %v1185 = vld [vmem:[%s1182 + $0x8] sm:$0xf]
  %v1186 = vld [vmem:[%s1182 + $0xc] sm:$0xf]
  %v1191 = vunpack.c.l.b16 %v1183
  %v1192 = vunpack.c.l.b16 %v1184
  %v1193 = vunpack.c.l.b16 %v1185
  %v1194 = vunpack.c.l.b16 %v1186
  %v1195 = vpack.c.b16 %v1192, %v1191
  %v1196 = vpack.c.b16 %v1194, %v1193
  %v1200 = vsel %vm395, %v1181, 0
  %1202 = vmatprep.subr.bf16.mxu0 0
  %1203 = vmatpush1.bf16.msra.mxu0 0
  %1204 = vmatprep.subr.bf16.mxu0 0
  %1205 = vmatpush1.bf16.msra.mxu0 0
  %1206 = vmatprep.subr.bf16.mxu0 0
  %1207 = vmatpush1.bf16.msra.mxu0 0
  %1208 = vmatprep.subr.bf16.mxu0 0
  %1209 = vmatpush1.bf16.msra.mxu0 0
  %1210 = vmatprep.subr.bf16.mxu0 0
  %1211 = vmatpush1.bf16.msra.mxu0 0
  %1212 = vmatprep.subr.bf16.mxu0 0
  %1213 = vmatpush1.bf16.msra.mxu0 0
  %1214 = vmatprep.subr.bf16.mxu0 0
  %1215 = vmatpush1.bf16.msra.mxu0 %v1196
  %1216 = vmatprep.subr.bf16.mxu0 0
  %1217 = vmatpush1.bf16.msra.mxu0 %v1195
  %1218 = vmatprep.subr.bf16.mxu0 0
  %1219 = vmatpush2.bf16.msra.mxu0 0
  %1220 = vmatprep.subr.bf16.mxu0 0
  %1221 = vmatpush2.bf16.msra.mxu0 0
  %1222 = vmatprep.subr.bf16.mxu0 0
  %1223 = vmatpush2.bf16.msra.mxu0 0
  %1224 = vmatprep.subr.bf16.mxu0 0
  %1225 = vmatpush2.bf16.msra.mxu0 0
  %1226 = vmatprep.subr.bf16.mxu0 0
  %1227 = vmatpush2.bf16.msra.mxu0 0
  %1228 = vmatprep.subr.bf16.mxu0 0
  %1229 = vmatpush2.bf16.msra.mxu0 0
  %1230 = vmatprep.subr.bf16.mxu0 0
  %1231 = vmatpush2.bf16.msra.mxu0 0
  %1232 = vmatprep.subr.bf16.mxu0 0
  %1233 = vmatpush2.bf16.msra.mxu0 0
  %1234 = vmatprep.mubr.bf16.mxu0 0
  %1235 = vmatmul.mubr.bf16.gmra.mxu0 %v1200
  %v1236 = vpop.f32.mrf.mxu0
  %v1237 = vadd.f32 0.0, %v1236
  %v1238 = vpop.f32.mrf.mxu0
  %v1239 = vpop.f32.mrf.mxu0
  %v1240 = vadd.f32 0.0, %v1239
  %v1241 = vpop.f32.mrf.mxu0
  %1242 = vdwg.mxu0
  %v1247 = vunpack.c.l.b16 %v617
  %v1248 = vunpack.c.l.b16 %v618
  %v1249 = vunpack.c.l.b16 %v619
  %v1250 = vunpack.c.l.b16 %v620
  %v1251 = vpack.c.b16 %v1248, %v1247
  %v1252 = vpack.c.b16 %v1250, %v1249
  %v1256 = vsel %vm395, %v616, 0
  %1258 = vmatprep.subr.bf16.mxu0 0
  %1259 = vmatpush1.bf16.msra.mxu0 0
  %1260 = vmatprep.subr.bf16.mxu0 0
  %1261 = vmatpush1.bf16.msra.mxu0 0
  %1262 = vmatprep.subr.bf16.mxu0 0
  %1263 = vmatpush1.bf16.msra.mxu0 0
  %1264 = vmatprep.subr.bf16.mxu0 0
  %1265 = vmatpush1.bf16.msra.mxu0 0
  %1266 = vmatprep.subr.bf16.mxu0 0
  %1267 = vmatpush1.bf16.msra.mxu0 0
  %1268 = vmatprep.subr.bf16.mxu0 0
  %1269 = vmatpush1.bf16.msra.mxu0 0
  %1270 = vmatprep.subr.bf16.mxu0 0
  %1271 = vmatpush1.bf16.msra.mxu0 %v1252
  %1272 = vmatprep.subr.bf16.mxu0 0
  %1273 = vmatpush1.bf16.msra.mxu0 %v1251
  %1274 = vmatprep.subr.bf16.mxu0 0
  %1275 = vmatpush2.bf16.msra.mxu0 0
  %1276 = vmatprep.subr.bf16.mxu0 0
  %1277 = vmatpush2.bf16.msra.mxu0 0
  %1278 = vmatprep.subr.bf16.mxu0 0
  %1279 = vmatpush2.bf16.msra.mxu0 0
  %1280 = vmatprep.subr.bf16.mxu0 0
  %1281 = vmatpush2.bf16.msra.mxu0 0
  %1282 = vmatprep.subr.bf16.mxu0 0
  %1283 = vmatpush2.bf16.msra.mxu0 0
  %1284 = vmatprep.subr.bf16.mxu0 0
  %1285 = vmatpush2.bf16.msra.mxu0 0
  %1286 = vmatprep.subr.bf16.mxu0 0
  %1287 = vmatpush2.bf16.msra.mxu0 0
  %1288 = vmatprep.subr.bf16.mxu0 0
  %1289 = vmatpush2.bf16.msra.mxu0 0
  %1290 = vmatprep.mubr.bf16.mxu0 0
  %1291 = vmatmul.mubr.bf16.gmra.mxu0 %v1256
  %v1292 = vpop.f32.mrf.mxu0
  %v1293 = vadd.f32 %v1237, %v1292
  %v1294 = vpop.f32.mrf.mxu0
  %v1295 = vpop.f32.mrf.mxu0
  %v1296 = vadd.f32 %v1240, %v1295
  %v1297 = vpop.f32.mrf.mxu0
  %1298 = vdwg.mxu0
  %s1299 = scalar_lea.vmem %s3, 128
  %v1300 = vld [vmem:[%s1299] sm:$0xf]
  %v1301 = vld [vmem:[%s1299 + $0x4] sm:$0xf]
  %v1302 = vld [vmem:[%s1299 + $0x8] sm:$0xf]
  %v1303 = vld [vmem:[%s1299 + $0xc] sm:$0xf]
  %v1304 = vld [vmem:[%s1299 + $0x10] sm:$0xf]
  %v1305 = vld [vmem:[%s1299 + $0x14] sm:$0xf]
  %v1306 = vld [vmem:[%s1299 + $0x18] sm:$0xf]
  %v1307 = vld [vmem:[%s1299 + $0x1c] sm:$0xf]
  %v1308 = vld [vmem:[%s1299 + $0x20] sm:$0xf]
  %v1309 = vld [vmem:[%s1299 + $0x24] sm:$0xf]
  %v1310 = vld [vmem:[%s1299 + $0x28] sm:$0xf]
  %v1311 = vld [vmem:[%s1299 + $0x2c] sm:$0xf]
  %v1312 = vld [vmem:[%s1299 + $0x30] sm:$0xf]
  %v1313 = vld [vmem:[%s1299 + $0x34] sm:$0xf]
  %v1314 = vld [vmem:[%s1299 + $0x38] sm:$0xf]
  %v1315 = vld [vmem:[%s1299 + $0x3c] sm:$0xf]
  %s1316 = scalar_lea.vmem %s3, 384
  %v1317 = vld [vmem:[%s1316] sm:$0xf]
  %v1318 = vld [vmem:[%s1316 + $0x4] sm:$0xf]
  %v1319 = vld [vmem:[%s1316 + $0x8] sm:$0xf]
  %v1320 = vld [vmem:[%s1316 + $0xc] sm:$0xf]
  %v1321 = vld [vmem:[%s1316 + $0x10] sm:$0xf]
  %v1322 = vld [vmem:[%s1316 + $0x14] sm:$0xf]
  %v1323 = vld [vmem:[%s1316 + $0x18] sm:$0xf]
  %v1324 = vld [vmem:[%s1316 + $0x1c] sm:$0xf]
  %v1325 = vld [vmem:[%s1316 + $0x20] sm:$0xf]
  %v1326 = vld [vmem:[%s1316 + $0x24] sm:$0xf]
  %v1327 = vld [vmem:[%s1316 + $0x28] sm:$0xf]
  %v1328 = vld [vmem:[%s1316 + $0x2c] sm:$0xf]
  %v1329 = vld [vmem:[%s1316 + $0x30] sm:$0xf]
  %v1330 = vld [vmem:[%s1316 + $0x34] sm:$0xf]
  %v1331 = vld [vmem:[%s1316 + $0x38] sm:$0xf]
  %v1332 = vld [vmem:[%s1316 + $0x3c] sm:$0xf]
  %s1333 = scalar_lea.vmem %s3, 640
  %v1334 = vld [vmem:[%s1333] sm:$0xf]
  %v1335 = vld [vmem:[%s1333 + $0x4] sm:$0xf]
  %v1336 = vld [vmem:[%s1333 + $0x8] sm:$0xf]
  %v1337 = vld [vmem:[%s1333 + $0xc] sm:$0xf]
  %v1338 = vld [vmem:[%s1333 + $0x10] sm:$0xf]
  %v1339 = vld [vmem:[%s1333 + $0x14] sm:$0xf]
  %v1340 = vld [vmem:[%s1333 + $0x18] sm:$0xf]
  %v1341 = vld [vmem:[%s1333 + $0x1c] sm:$0xf]
  %v1342 = vld [vmem:[%s1333 + $0x20] sm:$0xf]
  %v1343 = vld [vmem:[%s1333 + $0x24] sm:$0xf]
  %v1344 = vld [vmem:[%s1333 + $0x28] sm:$0xf]
  %v1345 = vld [vmem:[%s1333 + $0x2c] sm:$0xf]
  %v1346 = vld [vmem:[%s1333 + $0x30] sm:$0xf]
  %v1347 = vld [vmem:[%s1333 + $0x34] sm:$0xf]
  %v1348 = vld [vmem:[%s1333 + $0x38] sm:$0xf]
  %v1349 = vld [vmem:[%s1333 + $0x3c] sm:$0xf]
  %s1350 = scalar_lea.vmem %s5, 2
  %v1351 = vld [vmem:[%s1350] sm:$0x1]
  %v1353 = vlaneseq
  %v1354 = vshrl.u32 %v1353, 7
  %v1355 = vsub.s32 0, %v1354
  %v1356 = vrot.slane %v1351, %v1355
  %v1374 = vunpack.c.l.b16 %v1300
  %v1375 = vunpack.c.l.b16 %v1301
  %v1376 = vunpack.c.l.b16 %v1302
  %v1377 = vunpack.c.l.b16 %v1303
  %v1378 = vunpack.c.l.b16 %v1304
  %v1379 = vunpack.c.l.b16 %v1305
  %v1380 = vunpack.c.l.b16 %v1306
  %v1381 = vunpack.c.l.b16 %v1307
  %v1382 = vunpack.c.l.b16 %v1308
  %v1383 = vunpack.c.l.b16 %v1309
  %v1384 = vunpack.c.l.b16 %v1310
  %v1385 = vunpack.c.l.b16 %v1311
  %v1386 = vunpack.c.l.b16 %v1312
  %v1387 = vunpack.c.l.b16 %v1313
  %v1388 = vunpack.c.l.b16 %v1314
  %v1389 = vunpack.c.l.b16 %v1315
  %v1390 = vpack.c.b16 %v1375, %v1374
  %v1391 = vpack.c.b16 %v1377, %v1376
  %v1392 = vpack.c.b16 %v1379, %v1378
  %v1393 = vpack.c.b16 %v1381, %v1380
  %v1394 = vpack.c.b16 %v1383, %v1382
  %v1395 = vpack.c.b16 %v1385, %v1384
  %v1396 = vpack.c.b16 %v1387, %v1386
  %v1397 = vpack.c.b16 %v1389, %v1388
  %1406 = vmatprep.subr.bf16.mxu0 0
  %1407 = vmatpush1.bf16.msra.mxu0 %v1397
  %1408 = vmatprep.subr.bf16.mxu0 0
  %1409 = vmatpush1.bf16.msra.mxu0 %v1396
  %1410 = vmatprep.subr.bf16.mxu0 0
  %1411 = vmatpush1.bf16.msra.mxu0 %v1395
  %1412 = vmatprep.subr.bf16.mxu0 0
  %1413 = vmatpush1.bf16.msra.mxu0 %v1394
  %1414 = vmatprep.subr.bf16.mxu0 0
  %1415 = vmatpush1.bf16.msra.mxu0 %v1393
  %1416 = vmatprep.subr.bf16.mxu0 0
  %1417 = vmatpush1.bf16.msra.mxu0 %v1392
  %1418 = vmatprep.subr.bf16.mxu0 0
  %1419 = vmatpush1.bf16.msra.mxu0 %v1391
  %1420 = vmatprep.subr.bf16.mxu0 0
  %1421 = vmatpush1.bf16.msra.mxu0 %v1390
  %1422 = vmatprep.subr.bf16.mxu0 0
  %1423 = vmatpush2.bf16.msra.mxu0 0
  %1424 = vmatprep.subr.bf16.mxu0 0
  %1425 = vmatpush2.bf16.msra.mxu0 0
  %1426 = vmatprep.subr.bf16.mxu0 0
  %1427 = vmatpush2.bf16.msra.mxu0 0
  %1428 = vmatprep.subr.bf16.mxu0 0
  %1429 = vmatpush2.bf16.msra.mxu0 0
  %1430 = vmatprep.subr.bf16.mxu0 0
  %1431 = vmatpush2.bf16.msra.mxu0 0
  %1432 = vmatprep.subr.bf16.mxu0 0
  %1433 = vmatpush2.bf16.msra.mxu0 0
  %1434 = vmatprep.subr.bf16.mxu0 0
  %1435 = vmatpush2.bf16.msra.mxu0 0
  %1436 = vmatprep.subr.bf16.mxu0 0
  %1437 = vmatpush2.bf16.msra.mxu0 0
  %1438 = vmatprep.mubr.bf16.mxu0 0
  %1439 = vmatmul.mubr.bf16.gmra.mxu0 %v98
  %v1440 = vpop.f32.mrf.mxu0
  %v1441 = vadd.f32 %v1356, %v1440
  %v1442 = vpop.f32.mrf.mxu0
  %v1443 = vpop.f32.mrf.mxu0
  %v1444 = vadd.f32 %v1356, %v1443
  %v1445 = vpop.f32.mrf.mxu0
  %1446 = vdwg.mxu0
  %v1447 = vpack.c.bf16 %v1441, %v1441
  %v1448 = vpack.c.bf16 %v1444, %v1444
  %s1449 = scalar_lea.vmem %s5, 6
  %v1450 = vld [vmem:[%s1449] sm:$0x1]
  %v1452 = vlaneseq
  %v1453 = vshrl.u32 %v1452, 7
  %v1454 = vsub.s32 0, %v1453
  %v1455 = vrot.slane %v1450, %v1454
  %v1473 = vunpack.c.l.b16 %v1317
  %v1474 = vunpack.c.l.b16 %v1318
  %v1475 = vunpack.c.l.b16 %v1319
  %v1476 = vunpack.c.l.b16 %v1320
  %v1477 = vunpack.c.l.b16 %v1321
  %v1478 = vunpack.c.l.b16 %v1322
  %v1479 = vunpack.c.l.b16 %v1323
  %v1480 = vunpack.c.l.b16 %v1324
  %v1481 = vunpack.c.l.b16 %v1325
  %v1482 = vunpack.c.l.b16 %v1326
  %v1483 = vunpack.c.l.b16 %v1327
  %v1484 = vunpack.c.l.b16 %v1328
  %v1485 = vunpack.c.l.b16 %v1329
  %v1486 = vunpack.c.l.b16 %v1330
  %v1487 = vunpack.c.l.b16 %v1331
  %v1488 = vunpack.c.l.b16 %v1332
  %v1489 = vpack.c.b16 %v1474, %v1473
  %v1490 = vpack.c.b16 %v1476, %v1475
  %v1491 = vpack.c.b16 %v1478, %v1477
  %v1492 = vpack.c.b16 %v1480, %v1479
  %v1493 = vpack.c.b16 %v1482, %v1481
  %v1494 = vpack.c.b16 %v1484, %v1483
  %v1495 = vpack.c.b16 %v1486, %v1485
  %v1496 = vpack.c.b16 %v1488, %v1487
  %1505 = vmatprep.subr.bf16.mxu0 0
  %1506 = vmatpush1.bf16.msra.mxu0 %v1496
  %1507 = vmatprep.subr.bf16.mxu0 0
  %1508 = vmatpush1.bf16.msra.mxu0 %v1495
  %1509 = vmatprep.subr.bf16.mxu0 0
  %1510 = vmatpush1.bf16.msra.mxu0 %v1494
  %1511 = vmatprep.subr.bf16.mxu0 0
  %1512 = vmatpush1.bf16.msra.mxu0 %v1493
  %1513 = vmatprep.subr.bf16.mxu0 0
  %1514 = vmatpush1.bf16.msra.mxu0 %v1492
  %1515 = vmatprep.subr.bf16.mxu0 0
  %1516 = vmatpush1.bf16.msra.mxu0 %v1491
  %1517 = vmatprep.subr.bf16.mxu0 0
  %1518 = vmatpush1.bf16.msra.mxu0 %v1490
  %1519 = vmatprep.subr.bf16.mxu0 0
  %1520 = vmatpush1.bf16.msra.mxu0 %v1489
  %1521 = vmatprep.subr.bf16.mxu0 0
  %1522 = vmatpush2.bf16.msra.mxu0 0
  %1523 = vmatprep.subr.bf16.mxu0 0
  %1524 = vmatpush2.bf16.msra.mxu0 0
  %1525 = vmatprep.subr.bf16.mxu0 0
  %1526 = vmatpush2.bf16.msra.mxu0 0
  %1527 = vmatprep.subr.bf16.mxu0 0
  %1528 = vmatpush2.bf16.msra.mxu0 0
  %1529 = vmatprep.subr.bf16.mxu0 0
  %1530 = vmatpush2.bf16.msra.mxu0 0
  %1531 = vmatprep.subr.bf16.mxu0 0
  %1532 = vmatpush2.bf16.msra.mxu0 0
  %1533 = vmatprep.subr.bf16.mxu0 0
  %1534 = vmatpush2.bf16.msra.mxu0 0
  %1535 = vmatprep.subr.bf16.mxu0 0
  %1536 = vmatpush2.bf16.msra.mxu0 0
  %1537 = vmatprep.mubr.bf16.mxu0 0
  %1538 = vmatmul.mubr.bf16.gmra.mxu0 %v203
  %v1539 = vpop.f32.mrf.mxu0
  %v1540 = vadd.f32 %v1455, %v1539
  %v1541 = vpop.f32.mrf.mxu0
  %v1542 = vpop.f32.mrf.mxu0
  %v1543 = vadd.f32 %v1455, %v1542
  %v1544 = vpop.f32.mrf.mxu0
  %1545 = vdwg.mxu0
  %v1546 = vpack.c.bf16 %v1540, %v1540
  %v1547 = vpack.c.bf16 %v1543, %v1543
  %s1548 = scalar_lea.vmem %s5, 10
  %v1549 = vld [vmem:[%s1548] sm:$0x1]
  %v1551 = vlaneseq
  %v1552 = vshrl.u32 %v1551, 7
  %v1553 = vsub.s32 0, %v1552
  %v1554 = vrot.slane %v1549, %v1553
  %v1572 = vunpack.c.l.b16 %v1334
  %v1573 = vunpack.c.l.b16 %v1335
  %v1574 = vunpack.c.l.b16 %v1336
  %v1575 = vunpack.c.l.b16 %v1337
  %v1576 = vunpack.c.l.b16 %v1338
  %v1577 = vunpack.c.l.b16 %v1339
  %v1578 = vunpack.c.l.b16 %v1340
  %v1579 = vunpack.c.l.b16 %v1341
  %v1580 = vunpack.c.l.b16 %v1342
  %v1581 = vunpack.c.l.b16 %v1343
  %v1582 = vunpack.c.l.b16 %v1344
  %v1583 = vunpack.c.l.b16 %v1345
  %v1584 = vunpack.c.l.b16 %v1346
  %v1585 = vunpack.c.l.b16 %v1347
  %v1586 = vunpack.c.l.b16 %v1348
  %v1587 = vunpack.c.l.b16 %v1349
  %v1588 = vpack.c.b16 %v1573, %v1572
  %v1589 = vpack.c.b16 %v1575, %v1574
  %v1590 = vpack.c.b16 %v1577, %v1576
  %v1591 = vpack.c.b16 %v1579, %v1578
  %v1592 = vpack.c.b16 %v1581, %v1580
  %v1593 = vpack.c.b16 %v1583, %v1582
  %v1594 = vpack.c.b16 %v1585, %v1584
  %v1595 = vpack.c.b16 %v1587, %v1586
  %1604 = vmatprep.subr.bf16.mxu0 0
  %1605 = vmatpush1.bf16.msra.mxu0 %v1595
  %1606 = vmatprep.subr.bf16.mxu0 0
  %1607 = vmatpush1.bf16.msra.mxu0 %v1594
  %1608 = vmatprep.subr.bf16.mxu0 0
  %1609 = vmatpush1.bf16.msra.mxu0 %v1593
  %1610 = vmatprep.subr.bf16.mxu0 0
  %1611 = vmatpush1.bf16.msra.mxu0 %v1592
  %1612 = vmatprep.subr.bf16.mxu0 0
  %1613 = vmatpush1.bf16.msra.mxu0 %v1591
  %1614 = vmatprep.subr.bf16.mxu0 0
  %1615 = vmatpush1.bf16.msra.mxu0 %v1590
  %1616 = vmatprep.subr.bf16.mxu0 0
  %1617 = vmatpush1.bf16.msra.mxu0 %v1589
  %1618 = vmatprep.subr.bf16.mxu0 0
  %1619 = vmatpush1.bf16.msra.mxu0 %v1588
  %1620 = vmatprep.subr.bf16.mxu0 0
  %1621 = vmatpush2.bf16.msra.mxu0 0
  %1622 = vmatprep.subr.bf16.mxu0 0
  %1623 = vmatpush2.bf16.msra.mxu0 0
  %1624 = vmatprep.subr.bf16.mxu0 0
  %1625 = vmatpush2.bf16.msra.mxu0 0
  %1626 = vmatprep.subr.bf16.mxu0 0
  %1627 = vmatpush2.bf16.msra.mxu0 0
  %1628 = vmatprep.subr.bf16.mxu0 0
  %1629 = vmatpush2.bf16.msra.mxu0 0
  %1630 = vmatprep.subr.bf16.mxu0 0
  %1631 = vmatpush2.bf16.msra.mxu0 0
  %1632 = vmatprep.subr.bf16.mxu0 0
  %1633 = vmatpush2.bf16.msra.mxu0 0
  %1634 = vmatprep.subr.bf16.mxu0 0
  %1635 = vmatpush2.bf16.msra.mxu0 0
  %1636 = vmatprep.mubr.bf16.mxu0 0
  %1637 = vmatmul.mubr.bf16.gmra.mxu0 %v203
  %v1638 = vpop.f32.mrf.mxu0
  %v1639 = vadd.f32 %v1554, %v1638
  %v1640 = vpop.f32.mrf.mxu0
  %v1641 = vpop.f32.mrf.mxu0
  %v1642 = vadd.f32 %v1554, %v1641
  %v1643 = vpop.f32.mrf.mxu0
  %1644 = vdwg.mxu0
  %v1645 = vpack.c.bf16 %v1639, %v1639
  %v1646 = vpack.c.bf16 %v1642, %v1642
  %v1648 = vsel %vm395, %v1447, 0
  %v1651 = vsel %vm395, %v1546, 0
  %1653 = vmatprep.subr.bf16.mxu0 0
  %1654 = vmatpush1.bf16.xpose.msra.mxu0 0
  %1655 = vmatprep.subr.bf16.mxu0 0
  %1656 = vmatpush1.bf16.xpose.msra.mxu0 0
  %1657 = vmatprep.subr.bf16.mxu0 0
  %1658 = vmatpush1.bf16.xpose.msra.mxu0 0
  %1659 = vmatprep.subr.bf16.mxu0 0
  %1660 = vmatpush1.bf16.xpose.msra.mxu0 0
  %1661 = vmatprep.subr.bf16.mxu0 0
  %1662 = vmatpush1.bf16.xpose.msra.mxu0 0
  %1663 = vmatprep.subr.bf16.mxu0 0
  %1664 = vmatpush1.bf16.xpose.msra.mxu0 0
  %1665 = vmatprep.subr.bf16.mxu0 0
  %1666 = vmatpush1.bf16.xpose.msra.mxu0 0
  %1667 = vmatprep.subr.bf16.mxu0 0
  %1668 = vmatpush1.bf16.xpose.msra.mxu0 %v1651
  %1669 = vmatprep.subr.bf16.mxu0 0
  %1670 = vmatpush2.bf16.xpose.msra.mxu0 0
  %1671 = vmatprep.subr.bf16.mxu0 0
  %1672 = vmatpush2.bf16.xpose.msra.mxu0 0
  %1673 = vmatprep.subr.bf16.mxu0 0
  %1674 = vmatpush2.bf16.xpose.msra.mxu0 0
  %1675 = vmatprep.subr.bf16.mxu0 0
  %1676 = vmatpush2.bf16.xpose.msra.mxu0 0
  %1677 = vmatprep.subr.bf16.mxu0 0
  %1678 = vmatpush2.bf16.xpose.msra.mxu0 0
  %1679 = vmatprep.subr.bf16.mxu0 0
  %1680 = vmatpush2.bf16.xpose.msra.mxu0 0
  %1681 = vmatprep.subr.bf16.mxu0 0
  %1682 = vmatpush2.bf16.xpose.msra.mxu0 0
  %1683 = vmatprep.subr.bf16.mxu0 0
  %1684 = vmatpush2.bf16.xpose.msra.mxu0 0
  %1685 = vmatprep.mubr.bf16.mxu0 0
  %1686 = vmatmul.mubr.bf16.gmra.mxu0 %v1648
  %v1687 = vpop.f32.mrf.mxu0
  %v1688 = vadd.f32 0.0, %v1687
  %v1689 = vpop.f32.mrf.mxu0
  %v1690 = vpop.f32.mrf.mxu0
  %v1691 = vpop.f32.mrf.mxu0
  %1692 = vdwg.mxu0
  %v1694 = vsel %vm395, %v1448, 0
  %v1697 = vsel %vm395, %v1547, 0
  %1699 = vmatprep.subr.bf16.mxu0 0
  %1700 = vmatpush1.bf16.xpose.msra.mxu0 0
  %1701 = vmatprep.subr.bf16.mxu0 0
  %1702 = vmatpush1.bf16.xpose.msra.mxu0 0
  %1703 = vmatprep.subr.bf16.mxu0 0
  %1704 = vmatpush1.bf16.xpose.msra.mxu0 0
  %1705 = vmatprep.subr.bf16.mxu0 0
  %1706 = vmatpush1.bf16.xpose.msra.mxu0 0
  %1707 = vmatprep.subr.bf16.mxu0 0
  %1708 = vmatpush1.bf16.xpose.msra.mxu0 0
  %1709 = vmatprep.subr.bf16.mxu0 0
  %1710 = vmatpush1.bf16.xpose.msra.mxu0 0
  %1711 = vmatprep.subr.bf16.mxu0 0
  %1712 = vmatpush1.bf16.xpose.msra.mxu0 0
  %1713 = vmatprep.subr.bf16.mxu0 0
  %1714 = vmatpush1.bf16.xpose.msra.mxu0 %v1697
  %1715 = vmatprep.subr.bf16.mxu0 0
  %1716 = vmatpush2.bf16.xpose.msra.mxu0 0
  %1717 = vmatprep.subr.bf16.mxu0 0
  %1718 = vmatpush2.bf16.xpose.msra.mxu0 0
  %1719 = vmatprep.subr.bf16.mxu0 0
  %1720 = vmatpush2.bf16.xpose.msra.mxu0 0
  %1721 = vmatprep.subr.bf16.mxu0 0
  %1722 = vmatpush2.bf16.xpose.msra.mxu0 0
  %1723 = vmatprep.subr.bf16.mxu0 0
  %1724 = vmatpush2.bf16.xpose.msra.mxu0 0
  %1725 = vmatprep.subr.bf16.mxu0 0
  %1726 = vmatpush2.bf16.xpose.msra.mxu0 0
  %1727 = vmatprep.subr.bf16.mxu0 0
  %1728 = vmatpush2.bf16.xpose.msra.mxu0 0
  %1729 = vmatprep.subr.bf16.mxu0 0
  %1730 = vmatpush2.bf16.xpose.msra.mxu0 0
  %1731 = vmatprep.mubr.bf16.mxu0 0
  %1732 = vmatmul.mubr.bf16.gmra.mxu0 %v1694
  %v1733 = vpop.f32.mrf.mxu0
  %v1734 = vadd.f32 0.0, %v1733
  %v1735 = vpop.f32.mrf.mxu0
  %v1736 = vpop.f32.mrf.mxu0
  %v1737 = vpop.f32.mrf.mxu0
  %1738 = vdwg.mxu0
  %v1739 = vmul.f32 %v1688, 0.17677669
  %v1740 = vmul.f32 %v1734, 0.17677669
  %v1741 = vsel %vm494, -10000.0, %v1739
  %v1742 = vsel %vm495, -10000.0, %v1740
  %v1743 = vsel %vm498, %v1741, -inf
  %1744 = vmax.xlane.f32.xlu0 %v1743
  %v1745 = vpop.xlane.xlu0 %1744
  %v1746 = vsel %vm498, %v1742, -inf
  %1747 = vmax.xlane.f32.xlu0 %v1746
  %v1748 = vpop.xlane.xlu0 %1747
  %v1749 = vsub.f32 %v1741, %v1745
  %v1750 = vsub.f32 %v1742, %v1748
  %v1751 = vmul.f32 %v1749, 1.442695
  %v1752 = vpow.pop %v1751
  %v1753 = vmul.f32 %v1750, 1.442695
  %v1754 = vpow.pop %v1753
  %v1755 = vsel %vm498, %v1752, 0.0
  %1756 = vadd.xlane.f32.xlu0 %v1755
  %v1757 = vpop.xlane.xlu0 %1756
  %v1758 = vsel %vm498, %v1754, 0.0
  %1759 = vadd.xlane.f32.xlu0 %v1758
  %v1760 = vpop.xlane.xlu0 %1759
  %v1761 = vrcp.pop %v1757
  %v1762 = vmul.f32 %v1752, %v1761
  %v1763 = vrcp.pop %v1760
  %v1764 = vmul.f32 %v1754, %v1763
  %v1765 = vpack.c.bf16 %v1762, %v1762
  %v1766 = vpack.c.bf16 %v1764, %v1764
  %v1768 = vsel %vm498, %v1765, 0
  %v1771 = vsel %vm526, %v1645, 0
  %1773 = vmatprep.subr.bf16.mxu0 0
  %1774 = vmatpush1.bf16.msra.mxu0 0
  %1775 = vmatprep.subr.bf16.mxu0 0
  %1776 = vmatpush1.bf16.msra.mxu0 0
  %1777 = vmatprep.subr.bf16.mxu0 0
  %1778 = vmatpush1.bf16.msra.mxu0 0
  %1779 = vmatprep.subr.bf16.mxu0 0
  %1780 = vmatpush1.bf16.msra.mxu0 0
  %1781 = vmatprep.subr.bf16.mxu0 0
  %1782 = vmatpush1.bf16.msra.mxu0 0
  %1783 = vmatprep.subr.bf16.mxu0 0
  %1784 = vmatpush1.bf16.msra.mxu0 0
  %1785 = vmatprep.subr.bf16.mxu0 0
  %1786 = vmatpush1.bf16.msra.mxu0 0
  %1787 = vmatprep.subr.bf16.mxu0 0
  %1788 = vmatpush1.bf16.msra.mxu0 %v1771
  %1789 = vmatprep.subr.bf16.mxu0 0
  %1790 = vmatpush2.bf16.msra.mxu0 0
  %1791 = vmatprep.subr.bf16.mxu0 0
  %1792 = vmatpush2.bf16.msra.mxu0 0
  %1793 = vmatprep.subr.bf16.mxu0 0
  %1794 = vmatpush2.bf16.msra.mxu0 0
  %1795 = vmatprep.subr.bf16.mxu0 0
  %1796 = vmatpush2.bf16.msra.mxu0 0
  %1797 = vmatprep.subr.bf16.mxu0 0
  %1798 = vmatpush2.bf16.msra.mxu0 0
  %1799 = vmatprep.subr.bf16.mxu0 0
  %1800 = vmatpush2.bf16.msra.mxu0 0
  %1801 = vmatprep.subr.bf16.mxu0 0
  %1802 = vmatpush2.bf16.msra.mxu0 0
  %1803 = vmatprep.subr.bf16.mxu0 0
  %1804 = vmatpush2.bf16.msra.mxu0 0
  %1805 = vmatprep.mubr.bf16.mxu0 0
  %1806 = vmatmul.mubr.bf16.gmra.mxu0 %v1768
  %v1807 = vpop.f32.mrf.mxu0
  %v1808 = vadd.f32 0.0, %v1807
  %v1809 = vpop.f32.mrf.mxu0
  %v1810 = vpop.f32.mrf.mxu0
  %v1811 = vpop.f32.mrf.mxu0
  %1812 = vdwg.mxu0
  %v1814 = vsel %vm498, %v1766, 0
  %v1817 = vsel %vm526, %v1646, 0
  %1819 = vmatprep.subr.bf16.mxu0 0
  %1820 = vmatpush1.bf16.msra.mxu0 0
  %1821 = vmatprep.subr.bf16.mxu0 0
  %1822 = vmatpush1.bf16.msra.mxu0 0
  %1823 = vmatprep.subr.bf16.mxu0 0
  %1824 = vmatpush1.bf16.msra.mxu0 0
  %1825 = vmatprep.subr.bf16.mxu0 0
  %1826 = vmatpush1.bf16.msra.mxu0 0
  %1827 = vmatprep.subr.bf16.mxu0 0
  %1828 = vmatpush1.bf16.msra.mxu0 0
  %1829 = vmatprep.subr.bf16.mxu0 0
  %1830 = vmatpush1.bf16.msra.mxu0 0
  %1831 = vmatprep.subr.bf16.mxu0 0
  %1832 = vmatpush1.bf16.msra.mxu0 0
  %1833 = vmatprep.subr.bf16.mxu0 0
  %1834 = vmatpush1.bf16.msra.mxu0 %v1817
  %1835 = vmatprep.subr.bf16.mxu0 0
  %1836 = vmatpush2.bf16.msra.mxu0 0
  %1837 = vmatprep.subr.bf16.mxu0 0
  %1838 = vmatpush2.bf16.msra.mxu0 0
  %1839 = vmatprep.subr.bf16.mxu0 0
  %1840 = vmatpush2.bf16.msra.mxu0 0
  %1841 = vmatprep.subr.bf16.mxu0 0
  %1842 = vmatpush2.bf16.msra.mxu0 0
  %1843 = vmatprep.subr.bf16.mxu0 0
  %1844 = vmatpush2.bf16.msra.mxu0 0
  %1845 = vmatprep.subr.bf16.mxu0 0
  %1846 = vmatpush2.bf16.msra.mxu0 0
  %1847 = vmatprep.subr.bf16.mxu0 0
  %1848 = vmatpush2.bf16.msra.mxu0 0
  %1849 = vmatprep.subr.bf16.mxu0 0
  %1850 = vmatpush2.bf16.msra.mxu0 0
  %1851 = vmatprep.mubr.bf16.mxu0 0
  %1852 = vmatmul.mubr.bf16.gmra.mxu0 %v1814
  %v1853 = vpop.f32.mrf.mxu0
  %v1854 = vadd.f32 0.0, %v1853
  %v1855 = vpop.f32.mrf.mxu0
  %v1856 = vpop.f32.mrf.mxu0
  %v1857 = vpop.f32.mrf.mxu0
  %1858 = vdwg.mxu0
  %v1859 = vpack.c.bf16 %v1854, %v1808
  %s1860 = scalar_lea.vmem %s4, 32
  %v1861 = vld [vmem:[%s1860] sm:$0xf]
  %v1862 = vld [vmem:[%s1860 + $0x4] sm:$0xf]
  %v1863 = vld [vmem:[%s1860 + $0x8] sm:$0xf]
  %v1864 = vld [vmem:[%s1860 + $0xc] sm:$0xf]
  %v1869 = vunpack.c.l.b16 %v1861
  %v1870 = vunpack.c.l.b16 %v1862
  %v1871 = vunpack.c.l.b16 %v1863
  %v1872 = vunpack.c.l.b16 %v1864
  %v1873 = vpack.c.b16 %v1870, %v1869
  %v1874 = vpack.c.b16 %v1872, %v1871
  %v1878 = vsel %vm395, %v1859, 0
  %1880 = vmatprep.subr.bf16.mxu0 0
  %1881 = vmatpush1.bf16.msra.mxu0 0
  %1882 = vmatprep.subr.bf16.mxu0 0
  %1883 = vmatpush1.bf16.msra.mxu0 0
  %1884 = vmatprep.subr.bf16.mxu0 0
  %1885 = vmatpush1.bf16.msra.mxu0 0
  %1886 = vmatprep.subr.bf16.mxu0 0
  %1887 = vmatpush1.bf16.msra.mxu0 0
  %1888 = vmatprep.subr.bf16.mxu0 0
  %1889 = vmatpush1.bf16.msra.mxu0 0
  %1890 = vmatprep.subr.bf16.mxu0 0
  %1891 = vmatpush1.bf16.msra.mxu0 0
  %1892 = vmatprep.subr.bf16.mxu0 0
  %1893 = vmatpush1.bf16.msra.mxu0 %v1874
  %1894 = vmatprep.subr.bf16.mxu0 0
  %1895 = vmatpush1.bf16.msra.mxu0 %v1873
  %1896 = vmatprep.subr.bf16.mxu0 0
  %1897 = vmatpush2.bf16.msra.mxu0 0
  %1898 = vmatprep.subr.bf16.mxu0 0
  %1899 = vmatpush2.bf16.msra.mxu0 0
  %1900 = vmatprep.subr.bf16.mxu0 0
  %1901 = vmatpush2.bf16.msra.mxu0 0
  %1902 = vmatprep.subr.bf16.mxu0 0
  %1903 = vmatpush2.bf16.msra.mxu0 0
  %1904 = vmatprep.subr.bf16.mxu0 0
  %1905 = vmatpush2.bf16.msra.mxu0 0
  %1906 = vmatprep.subr.bf16.mxu0 0
  %1907 = vmatpush2.bf16.msra.mxu0 0
  %1908 = vmatprep.subr.bf16.mxu0 0
  %1909 = vmatpush2.bf16.msra.mxu0 0
  %1910 = vmatprep.subr.bf16.mxu0 0
  %1911 = vmatpush2.bf16.msra.mxu0 0
  %1912 = vmatprep.mubr.bf16.mxu0 0
  %1913 = vmatmul.mubr.bf16.gmra.mxu0 %v1878
  %v1914 = vpop.f32.mrf.mxu0
  %v1915 = vadd.f32 0.0, %v1914
  %v1916 = vpop.f32.mrf.mxu0
  %v1917 = vpop.f32.mrf.mxu0
  %v1918 = vadd.f32 0.0, %v1917
  %v1919 = vpop.f32.mrf.mxu0
  %1920 = vdwg.mxu0
  %v1921 = vadd.f32 %v1293, %v1915
  %v1922 = vadd.f32 %v1296, %v1918
  %s1923 = scalar_lea.vmem %s3, 192
  %v1924 = vld [vmem:[%s1923] sm:$0xf]
  %v1925 = vld [vmem:[%s1923 + $0x4] sm:$0xf]
  %v1926 = vld [vmem:[%s1923 + $0x8] sm:$0xf]
  %v1927 = vld [vmem:[%s1923 + $0xc] sm:$0xf]
  %v1928 = vld [vmem:[%s1923 + $0x10] sm:$0xf]
  %v1929 = vld [vmem:[%s1923 + $0x14] sm:$0xf]
  %v1930 = vld [vmem:[%s1923 + $0x18] sm:$0xf]
  %v1931 = vld [vmem:[%s1923 + $0x1c] sm:$0xf]
  %v1932 = vld [vmem:[%s1923 + $0x20] sm:$0xf]
  %v1933 = vld [vmem:[%s1923 + $0x24] sm:$0xf]
  %v1934 = vld [vmem:[%s1923 + $0x28] sm:$0xf]
  %v1935 = vld [vmem:[%s1923 + $0x2c] sm:$0xf]
  %v1936 = vld [vmem:[%s1923 + $0x30] sm:$0xf]
  %v1937 = vld [vmem:[%s1923 + $0x34] sm:$0xf]
  %v1938 = vld [vmem:[%s1923 + $0x38] sm:$0xf]
  %v1939 = vld [vmem:[%s1923 + $0x3c] sm:$0xf]
  %s1940 = scalar_lea.vmem %s3, 448
  %v1941 = vld [vmem:[%s1940] sm:$0xf]
  %v1942 = vld [vmem:[%s1940 + $0x4] sm:$0xf]
  %v1943 = vld [vmem:[%s1940 + $0x8] sm:$0xf]
  %v1944 = vld [vmem:[%s1940 + $0xc] sm:$0xf]
  %v1945 = vld [vmem:[%s1940 + $0x10] sm:$0xf]
  %v1946 = vld [vmem:[%s1940 + $0x14] sm:$0xf]
  %v1947 = vld [vmem:[%s1940 + $0x18] sm:$0xf]
  %v1948 = vld [vmem:[%s1940 + $0x1c] sm:$0xf]
  %v1949 = vld [vmem:[%s1940 + $0x20] sm:$0xf]
  %v1950 = vld [vmem:[%s1940 + $0x24] sm:$0xf]
  %v1951 = vld [vmem:[%s1940 + $0x28] sm:$0xf]
  %v1952 = vld [vmem:[%s1940 + $0x2c] sm:$0xf]
  %v1953 = vld [vmem:[%s1940 + $0x30] sm:$0xf]
  %v1954 = vld [vmem:[%s1940 + $0x34] sm:$0xf]
  %v1955 = vld [vmem:[%s1940 + $0x38] sm:$0xf]
  %v1956 = vld [vmem:[%s1940 + $0x3c] sm:$0xf]
  %s1957 = scalar_lea.vmem %s3, 704
  %v1958 = vld [vmem:[%s1957] sm:$0xf]
  %v1959 = vld [vmem:[%s1957 + $0x4] sm:$0xf]
  %v1960 = vld [vmem:[%s1957 + $0x8] sm:$0xf]
  %v1961 = vld [vmem:[%s1957 + $0xc] sm:$0xf]
  %v1962 = vld [vmem:[%s1957 + $0x10] sm:$0xf]
  %v1963 = vld [vmem:[%s1957 + $0x14] sm:$0xf]
  %v1964 = vld [vmem:[%s1957 + $0x18] sm:$0xf]
  %v1965 = vld [vmem:[%s1957 + $0x1c] sm:$0xf]
  %v1966 = vld [vmem:[%s1957 + $0x20] sm:$0xf]
  %v1967 = vld [vmem:[%s1957 + $0x24] sm:$0xf]
  %v1968 = vld [vmem:[%s1957 + $0x28] sm:$0xf]
  %v1969 = vld [vmem:[%s1957 + $0x2c] sm:$0xf]
  %v1970 = vld [vmem:[%s1957 + $0x30] sm:$0xf]
  %v1971 = vld [vmem:[%s1957 + $0x34] sm:$0xf]
  %v1972 = vld [vmem:[%s1957 + $0x38] sm:$0xf]
  %v1973 = vld [vmem:[%s1957 + $0x3c] sm:$0xf]
  %s1974 = scalar_lea.vmem %s5, 3
  %v1975 = vld [vmem:[%s1974] sm:$0x1]
  %v1977 = vlaneseq
  %v1978 = vshrl.u32 %v1977, 7
  %v1979 = vsub.s32 0, %v1978
  %v1980 = vrot.slane %v1975, %v1979
  %v1998 = vunpack.c.l.b16 %v1924
  %v1999 = vunpack.c.l.b16 %v1925
  %v2000 = vunpack.c.l.b16 %v1926
  %v2001 = vunpack.c.l.b16 %v1927
  %v2002 = vunpack.c.l.b16 %v1928
  %v2003 = vunpack.c.l.b16 %v1929
  %v2004 = vunpack.c.l.b16 %v1930
  %v2005 = vunpack.c.l.b16 %v1931
  %v2006 = vunpack.c.l.b16 %v1932
  %v2007 = vunpack.c.l.b16 %v1933
  %v2008 = vunpack.c.l.b16 %v1934
  %v2009 = vunpack.c.l.b16 %v1935
  %v2010 = vunpack.c.l.b16 %v1936
  %v2011 = vunpack.c.l.b16 %v1937
  %v2012 = vunpack.c.l.b16 %v1938
  %v2013 = vunpack.c.l.b16 %v1939
  %v2014 = vpack.c.b16 %v1999, %v1998
  %v2015 = vpack.c.b16 %v2001, %v2000
  %v2016 = vpack.c.b16 %v2003, %v2002
  %v2017 = vpack.c.b16 %v2005, %v2004
  %v2018 = vpack.c.b16 %v2007, %v2006
  %v2019 = vpack.c.b16 %v2009, %v2008
  %v2020 = vpack.c.b16 %v2011, %v2010
  %v2021 = vpack.c.b16 %v2013, %v2012
  %2030 = vmatprep.subr.bf16.mxu0 0
  %2031 = vmatpush1.bf16.msra.mxu0 %v2021
  %2032 = vmatprep.subr.bf16.mxu0 0
  %2033 = vmatpush1.bf16.msra.mxu0 %v2020
  %2034 = vmatprep.subr.bf16.mxu0 0
  %2035 = vmatpush1.bf16.msra.mxu0 %v2019
  %2036 = vmatprep.subr.bf16.mxu0 0
  %2037 = vmatpush1.bf16.msra.mxu0 %v2018
  %2038 = vmatprep.subr.bf16.mxu0 0
  %2039 = vmatpush1.bf16.msra.mxu0 %v2017
  %2040 = vmatprep.subr.bf16.mxu0 0
  %2041 = vmatpush1.bf16.msra.mxu0 %v2016
  %2042 = vmatprep.subr.bf16.mxu0 0
  %2043 = vmatpush1.bf16.msra.mxu0 %v2015
  %2044 = vmatprep.subr.bf16.mxu0 0
  %2045 = vmatpush1.bf16.msra.mxu0 %v2014
  %2046 = vmatprep.subr.bf16.mxu0 0
  %2047 = vmatpush2.bf16.msra.mxu0 0
  %2048 = vmatprep.subr.bf16.mxu0 0
  %2049 = vmatpush2.bf16.msra.mxu0 0
  %2050 = vmatprep.subr.bf16.mxu0 0
  %2051 = vmatpush2.bf16.msra.mxu0 0
  %2052 = vmatprep.subr.bf16.mxu0 0
  %2053 = vmatpush2.bf16.msra.mxu0 0
  %2054 = vmatprep.subr.bf16.mxu0 0
  %2055 = vmatpush2.bf16.msra.mxu0 0
  %2056 = vmatprep.subr.bf16.mxu0 0
  %2057 = vmatpush2.bf16.msra.mxu0 0
  %2058 = vmatprep.subr.bf16.mxu0 0
  %2059 = vmatpush2.bf16.msra.mxu0 0
  %2060 = vmatprep.subr.bf16.mxu0 0
  %2061 = vmatpush2.bf16.msra.mxu0 0
  %2062 = vmatprep.mubr.bf16.mxu0 0
  %2063 = vmatmul.mubr.bf16.gmra.mxu0 %v98
  %v2064 = vpop.f32.mrf.mxu0
  %v2065 = vadd.f32 %v1980, %v2064
  %v2066 = vpop.f32.mrf.mxu0
  %v2067 = vpop.f32.mrf.mxu0
  %v2068 = vadd.f32 %v1980, %v2067
  %v2069 = vpop.f32.mrf.mxu0
  %2070 = vdwg.mxu0
  %v2071 = vpack.c.bf16 %v2065, %v2065
  %v2072 = vpack.c.bf16 %v2068, %v2068
  %s2073 = scalar_lea.vmem %s5, 7
  %v2074 = vld [vmem:[%s2073] sm:$0x1]
  %v2076 = vlaneseq
  %v2077 = vshrl.u32 %v2076, 7
  %v2078 = vsub.s32 0, %v2077
  %v2079 = vrot.slane %v2074, %v2078
  %v2097 = vunpack.c.l.b16 %v1941
  %v2098 = vunpack.c.l.b16 %v1942
  %v2099 = vunpack.c.l.b16 %v1943
  %v2100 = vunpack.c.l.b16 %v1944
  %v2101 = vunpack.c.l.b16 %v1945
  %v2102 = vunpack.c.l.b16 %v1946
  %v2103 = vunpack.c.l.b16 %v1947
  %v2104 = vunpack.c.l.b16 %v1948
  %v2105 = vunpack.c.l.b16 %v1949
  %v2106 = vunpack.c.l.b16 %v1950
  %v2107 = vunpack.c.l.b16 %v1951
  %v2108 = vunpack.c.l.b16 %v1952
  %v2109 = vunpack.c.l.b16 %v1953
  %v2110 = vunpack.c.l.b16 %v1954
  %v2111 = vunpack.c.l.b16 %v1955
  %v2112 = vunpack.c.l.b16 %v1956
  %v2113 = vpack.c.b16 %v2098, %v2097
  %v2114 = vpack.c.b16 %v2100, %v2099
  %v2115 = vpack.c.b16 %v2102, %v2101
  %v2116 = vpack.c.b16 %v2104, %v2103
  %v2117 = vpack.c.b16 %v2106, %v2105
  %v2118 = vpack.c.b16 %v2108, %v2107
  %v2119 = vpack.c.b16 %v2110, %v2109
  %v2120 = vpack.c.b16 %v2112, %v2111
  %2129 = vmatprep.subr.bf16.mxu0 0
  %2130 = vmatpush1.bf16.msra.mxu0 %v2120
  %2131 = vmatprep.subr.bf16.mxu0 0
  %2132 = vmatpush1.bf16.msra.mxu0 %v2119
  %2133 = vmatprep.subr.bf16.mxu0 0
  %2134 = vmatpush1.bf16.msra.mxu0 %v2118
  %2135 = vmatprep.subr.bf16.mxu0 0
  %2136 = vmatpush1.bf16.msra.mxu0 %v2117
  %2137 = vmatprep.subr.bf16.mxu0 0
  %2138 = vmatpush1.bf16.msra.mxu0 %v2116
  %2139 = vmatprep.subr.bf16.mxu0 0
  %2140 = vmatpush1.bf16.msra.mxu0 %v2115
  %2141 = vmatprep.subr.bf16.mxu0 0
  %2142 = vmatpush1.bf16.msra.mxu0 %v2114
  %2143 = vmatprep.subr.bf16.mxu0 0
  %2144 = vmatpush1.bf16.msra.mxu0 %v2113
  %2145 = vmatprep.subr.bf16.mxu0 0
  %2146 = vmatpush2.bf16.msra.mxu0 0
  %2147 = vmatprep.subr.bf16.mxu0 0
  %2148 = vmatpush2.bf16.msra.mxu0 0
  %2149 = vmatprep.subr.bf16.mxu0 0
  %2150 = vmatpush2.bf16.msra.mxu0 0
  %2151 = vmatprep.subr.bf16.mxu0 0
  %2152 = vmatpush2.bf16.msra.mxu0 0
  %2153 = vmatprep.subr.bf16.mxu0 0
  %2154 = vmatpush2.bf16.msra.mxu0 0
  %2155 = vmatprep.subr.bf16.mxu0 0
  %2156 = vmatpush2.bf16.msra.mxu0 0
  %2157 = vmatprep.subr.bf16.mxu0 0
  %2158 = vmatpush2.bf16.msra.mxu0 0
  %2159 = vmatprep.subr.bf16.mxu0 0
  %2160 = vmatpush2.bf16.msra.mxu0 0
  %2161 = vmatprep.mubr.bf16.mxu0 0
  %2162 = vmatmul.mubr.bf16.gmra.mxu0 %v203
  %v2163 = vpop.f32.mrf.mxu0
  %v2164 = vadd.f32 %v2079, %v2163
  %v2165 = vpop.f32.mrf.mxu0
  %v2166 = vpop.f32.mrf.mxu0
  %v2167 = vadd.f32 %v2079, %v2166
  %v2168 = vpop.f32.mrf.mxu0
  %2169 = vdwg.mxu0
  %v2170 = vpack.c.bf16 %v2164, %v2164
  %v2171 = vpack.c.bf16 %v2167, %v2167
  %s2172 = scalar_lea.vmem %s5, 11
  %v2173 = vld [vmem:[%s2172] sm:$0x1]
  %v2175 = vlaneseq
  %v2176 = vshrl.u32 %v2175, 7
  %v2177 = vsub.s32 0, %v2176
  %v2178 = vrot.slane %v2173, %v2177
  %v2196 = vunpack.c.l.b16 %v1958
  %v2197 = vunpack.c.l.b16 %v1959
  %v2198 = vunpack.c.l.b16 %v1960
  %v2199 = vunpack.c.l.b16 %v1961
  %v2200 = vunpack.c.l.b16 %v1962
  %v2201 = vunpack.c.l.b16 %v1963
  %v2202 = vunpack.c.l.b16 %v1964
  %v2203 = vunpack.c.l.b16 %v1965
  %v2204 = vunpack.c.l.b16 %v1966
  %v2205 = vunpack.c.l.b16 %v1967
  %v2206 = vunpack.c.l.b16 %v1968
  %v2207 = vunpack.c.l.b16 %v1969
  %v2208 = vunpack.c.l.b16 %v1970
  %v2209 = vunpack.c.l.b16 %v1971
  %v2210 = vunpack.c.l.b16 %v1972
  %v2211 = vunpack.c.l.b16 %v1973
  %v2212 = vpack.c.b16 %v2197, %v2196
  %v2213 = vpack.c.b16 %v2199, %v2198
  %v2214 = vpack.c.b16 %v2201, %v2200
  %v2215 = vpack.c.b16 %v2203, %v2202
  %v2216 = vpack.c.b16 %v2205, %v2204
  %v2217 = vpack.c.b16 %v2207, %v2206
  %v2218 = vpack.c.b16 %v2209, %v2208
  %v2219 = vpack.c.b16 %v2211, %v2210
  %2228 = vmatprep.subr.bf16.mxu0 0
  %2229 = vmatpush1.bf16.msra.mxu0 %v2219
  %2230 = vmatprep.subr.bf16.mxu0 0
  %2231 = vmatpush1.bf16.msra.mxu0 %v2218
  %2232 = vmatprep.subr.bf16.mxu0 0
  %2233 = vmatpush1.bf16.msra.mxu0 %v2217
  %2234 = vmatprep.subr.bf16.mxu0 0
  %2235 = vmatpush1.bf16.msra.mxu0 %v2216
  %2236 = vmatprep.subr.bf16.mxu0 0
  %2237 = vmatpush1.bf16.msra.mxu0 %v2215
  %2238 = vmatprep.subr.bf16.mxu0 0
  %2239 = vmatpush1.bf16.msra.mxu0 %v2214
  %2240 = vmatprep.subr.bf16.mxu0 0
  %2241 = vmatpush1.bf16.msra.mxu0 %v2213
  %2242 = vmatprep.subr.bf16.mxu0 0
  %2243 = vmatpush1.bf16.msra.mxu0 %v2212
  %2244 = vmatprep.subr.bf16.mxu0 0
  %2245 = vmatpush2.bf16.msra.mxu0 0
  %2246 = vmatprep.subr.bf16.mxu0 0
  %2247 = vmatpush2.bf16.msra.mxu0 0
  %2248 = vmatprep.subr.bf16.mxu0 0
  %2249 = vmatpush2.bf16.msra.mxu0 0
  %2250 = vmatprep.subr.bf16.mxu0 0
  %2251 = vmatpush2.bf16.msra.mxu0 0
  %2252 = vmatprep.subr.bf16.mxu0 0
  %2253 = vmatpush2.bf16.msra.mxu0 0
  %2254 = vmatprep.subr.bf16.mxu0 0
  %2255 = vmatpush2.bf16.msra.mxu0 0
  %2256 = vmatprep.subr.bf16.mxu0 0
  %2257 = vmatpush2.bf16.msra.mxu0 0
  %2258 = vmatprep.subr.bf16.mxu0 0
  %2259 = vmatpush2.bf16.msra.mxu0 0
  %2260 = vmatprep.mubr.bf16.mxu0 0
  %2261 = vmatmul.mubr.bf16.gmra.mxu0 %v203
  %v2262 = vpop.f32.mrf.mxu0
  %v2263 = vadd.f32 %v2178, %v2262
  %v2264 = vpop.f32.mrf.mxu0
  %v2265 = vpop.f32.mrf.mxu0
  %v2266 = vadd.f32 %v2178, %v2265
  %v2267 = vpop.f32.mrf.mxu0
  %2268 = vdwg.mxu0
  %v2269 = vpack.c.bf16 %v2263, %v2263
  %v2270 = vpack.c.bf16 %v2266, %v2266
  %v2272 = vsel %vm395, %v2071, 0
  %v2275 = vsel %vm395, %v2170, 0
  %2277 = vmatprep.subr.bf16.mxu0 0
  %2278 = vmatpush1.bf16.xpose.msra.mxu0 0
  %2279 = vmatprep.subr.bf16.mxu0 0
  %2280 = vmatpush1.bf16.xpose.msra.mxu0 0
  %2281 = vmatprep.subr.bf16.mxu0 0
  %2282 = vmatpush1.bf16.xpose.msra.mxu0 0
  %2283 = vmatprep.subr.bf16.mxu0 0
  %2284 = vmatpush1.bf16.xpose.msra.mxu0 0
  %2285 = vmatprep.subr.bf16.mxu0 0
  %2286 = vmatpush1.bf16.xpose.msra.mxu0 0
  %2287 = vmatprep.subr.bf16.mxu0 0
  %2288 = vmatpush1.bf16.xpose.msra.mxu0 0
  %2289 = vmatprep.subr.bf16.mxu0 0
  %2290 = vmatpush1.bf16.xpose.msra.mxu0 0
  %2291 = vmatprep.subr.bf16.mxu0 0
  %2292 = vmatpush1.bf16.xpose.msra.mxu0 %v2275
  %2293 = vmatprep.subr.bf16.mxu0 0
  %2294 = vmatpush2.bf16.xpose.msra.mxu0 0
  %2295 = vmatprep.subr.bf16.mxu0 0
  %2296 = vmatpush2.bf16.xpose.msra.mxu0 0
  %2297 = vmatprep.subr.bf16.mxu0 0
  %2298 = vmatpush2.bf16.xpose.msra.mxu0 0
  %2299 = vmatprep.subr.bf16.mxu0 0
  %2300 = vmatpush2.bf16.xpose.msra.mxu0 0
  %2301 = vmatprep.subr.bf16.mxu0 0
  %2302 = vmatpush2.bf16.xpose.msra.mxu0 0
  %2303 = vmatprep.subr.bf16.mxu0 0
  %2304 = vmatpush2.bf16.xpose.msra.mxu0 0
  %2305 = vmatprep.subr.bf16.mxu0 0
  %2306 = vmatpush2.bf16.xpose.msra.mxu0 0
  %2307 = vmatprep.subr.bf16.mxu0 0
  %2308 = vmatpush2.bf16.xpose.msra.mxu0 0
  %2309 = vmatprep.mubr.bf16.mxu0 0
  %2310 = vmatmul.mubr.bf16.gmra.mxu0 %v2272
  %v2311 = vpop.f32.mrf.mxu0
  %v2312 = vadd.f32 0.0, %v2311
  %v2313 = vpop.f32.mrf.mxu0
  %v2314 = vpop.f32.mrf.mxu0
  %v2315 = vpop.f32.mrf.mxu0
  %2316 = vdwg.mxu0
  %v2318 = vsel %vm395, %v2072, 0
  %v2321 = vsel %vm395, %v2171, 0
  %2323 = vmatprep.subr.bf16.mxu0 0
  %2324 = vmatpush1.bf16.xpose.msra.mxu0 0
  %2325 = vmatprep.subr.bf16.mxu0 0
  %2326 = vmatpush1.bf16.xpose.msra.mxu0 0
  %2327 = vmatprep.subr.bf16.mxu0 0
  %2328 = vmatpush1.bf16.xpose.msra.mxu0 0
  %2329 = vmatprep.subr.bf16.mxu0 0
  %2330 = vmatpush1.bf16.xpose.msra.mxu0 0
  %2331 = vmatprep.subr.bf16.mxu0 0
  %2332 = vmatpush1.bf16.xpose.msra.mxu0 0
  %2333 = vmatprep.subr.bf16.mxu0 0
  %2334 = vmatpush1.bf16.xpose.msra.mxu0 0
  %2335 = vmatprep.subr.bf16.mxu0 0
  %2336 = vmatpush1.bf16.xpose.msra.mxu0 0
  %2337 = vmatprep.subr.bf16.mxu0 0
  %2338 = vmatpush1.bf16.xpose.msra.mxu0 %v2321
  %2339 = vmatprep.subr.bf16.mxu0 0
  %2340 = vmatpush2.bf16.xpose.msra.mxu0 0
  %2341 = vmatprep.subr.bf16.mxu0 0
  %2342 = vmatpush2.bf16.xpose.msra.mxu0 0
  %2343 = vmatprep.subr.bf16.mxu0 0
  %2344 = vmatpush2.bf16.xpose.msra.mxu0 0
  %2345 = vmatprep.subr.bf16.mxu0 0
  %2346 = vmatpush2.bf16.xpose.msra.mxu0 0
  %2347 = vmatprep.subr.bf16.mxu0 0
  %2348 = vmatpush2.bf16.xpose.msra.mxu0 0
  %2349 = vmatprep.subr.bf16.mxu0 0
  %2350 = vmatpush2.bf16.xpose.msra.mxu0 0
  %2351 = vmatprep.subr.bf16.mxu0 0
  %2352 = vmatpush2.bf16.xpose.msra.mxu0 0
  %2353 = vmatprep.subr.bf16.mxu0 0
  %2354 = vmatpush2.bf16.xpose.msra.mxu0 0
  %2355 = vmatprep.mubr.bf16.mxu0 0
  %2356 = vmatmul.mubr.bf16.gmra.mxu0 %v2318
  %v2357 = vpop.f32.mrf.mxu0
  %v2358 = vadd.f32 0.0, %v2357
  %v2359 = vpop.f32.mrf.mxu0
  %v2360 = vpop.f32.mrf.mxu0
  %v2361 = vpop.f32.mrf.mxu0
  %2362 = vdwg.mxu0
  %v2363 = vmul.f32 %v2312, 0.17677669
  %v2364 = vmul.f32 %v2358, 0.17677669
  %v2365 = vsel %vm494, -10000.0, %v2363
  %v2366 = vsel %vm495, -10000.0, %v2364
  %v2367 = vsel %vm498, %v2365, -inf
  %2368 = vmax.xlane.f32.xlu0 %v2367
  %v2369 = vpop.xlane.xlu0 %2368
  %v2370 = vsel %vm498, %v2366, -inf
  %2371 = vmax.xlane.f32.xlu0 %v2370
  %v2372 = vpop.xlane.xlu0 %2371
  %v2373 = vsub.f32 %v2365, %v2369
  %v2374 = vsub.f32 %v2366, %v2372
  %v2375 = vmul.f32 %v2373, 1.442695
  %v2376 = vpow.pop %v2375
  %v2377 = vmul.f32 %v2374, 1.442695
  %v2378 = vpow.pop %v2377
  %v2379 = vsel %vm498, %v2376, 0.0
  %2380 = vadd.xlane.f32.xlu0 %v2379
  %v2381 = vpop.xlane.xlu0 %2380
  %v2382 = vsel %vm498, %v2378, 0.0
  %2383 = vadd.xlane.f32.xlu0 %v2382
  %v2384 = vpop.xlane.xlu0 %2383
  %v2385 = vrcp.pop %v2381
  %v2386 = vmul.f32 %v2376, %v2385
  %v2387 = vrcp.pop %v2384
  %v2388 = vmul.f32 %v2378, %v2387
  %v2389 = vpack.c.bf16 %v2386, %v2386
  %v2390 = vpack.c.bf16 %v2388, %v2388
  %v2392 = vsel %vm498, %v2389, 0
  %v2395 = vsel %vm526, %v2269, 0
  %2397 = vmatprep.subr.bf16.mxu0 0
  %2398 = vmatpush1.bf16.msra.mxu0 0
  %2399 = vmatprep.subr.bf16.mxu0 0
  %2400 = vmatpush1.bf16.msra.mxu0 0
  %2401 = vmatprep.subr.bf16.mxu0 0
  %2402 = vmatpush1.bf16.msra.mxu0 0
  %2403 = vmatprep.subr.bf16.mxu0 0
  %2404 = vmatpush1.bf16.msra.mxu0 0
  %2405 = vmatprep.subr.bf16.mxu0 0
  %2406 = vmatpush1.bf16.msra.mxu0 0
  %2407 = vmatprep.subr.bf16.mxu0 0
  %2408 = vmatpush1.bf16.msra.mxu0 0
  %2409 = vmatprep.subr.bf16.mxu0 0
  %2410 = vmatpush1.bf16.msra.mxu0 0
  %2411 = vmatprep.subr.bf16.mxu0 0
  %2412 = vmatpush1.bf16.msra.mxu0 %v2395
  %2413 = vmatprep.subr.bf16.mxu0 0
  %2414 = vmatpush2.bf16.msra.mxu0 0
  %2415 = vmatprep.subr.bf16.mxu0 0
  %2416 = vmatpush2.bf16.msra.mxu0 0
  %2417 = vmatprep.subr.bf16.mxu0 0
  %2418 = vmatpush2.bf16.msra.mxu0 0
  %2419 = vmatprep.subr.bf16.mxu0 0
  %2420 = vmatpush2.bf16.msra.mxu0 0
  %2421 = vmatprep.subr.bf16.mxu0 0
  %2422 = vmatpush2.bf16.msra.mxu0 0
  %2423 = vmatprep.subr.bf16.mxu0 0
  %2424 = vmatpush2.bf16.msra.mxu0 0
  %2425 = vmatprep.subr.bf16.mxu0 0
  %2426 = vmatpush2.bf16.msra.mxu0 0
  %2427 = vmatprep.subr.bf16.mxu0 0
  %2428 = vmatpush2.bf16.msra.mxu0 0
  %2429 = vmatprep.mubr.bf16.mxu0 0
  %2430 = vmatmul.mubr.bf16.gmra.mxu0 %v2392
  %v2431 = vpop.f32.mrf.mxu0
  %v2432 = vadd.f32 0.0, %v2431
  %v2433 = vpop.f32.mrf.mxu0
  %v2434 = vpop.f32.mrf.mxu0
  %v2435 = vpop.f32.mrf.mxu0
  %2436 = vdwg.mxu0
  %v2438 = vsel %vm498, %v2390, 0
  %v2441 = vsel %vm526, %v2270, 0
  %2443 = vmatprep.subr.bf16.mxu0 0
  %2444 = vmatpush1.bf16.msra.mxu0 0
  %2445 = vmatprep.subr.bf16.mxu0 0
  %2446 = vmatpush1.bf16.msra.mxu0 0
  %2447 = vmatprep.subr.bf16.mxu0 0
  %2448 = vmatpush1.bf16.msra.mxu0 0
  %2449 = vmatprep.subr.bf16.mxu0 0
  %2450 = vmatpush1.bf16.msra.mxu0 0
  %2451 = vmatprep.subr.bf16.mxu0 0
  %2452 = vmatpush1.bf16.msra.mxu0 0
  %2453 = vmatprep.subr.bf16.mxu0 0
  %2454 = vmatpush1.bf16.msra.mxu0 0
  %2455 = vmatprep.subr.bf16.mxu0 0
  %2456 = vmatpush1.bf16.msra.mxu0 0
  %2457 = vmatprep.subr.bf16.mxu0 0
  %2458 = vmatpush1.bf16.msra.mxu0 %v2441
  %2459 = vmatprep.subr.bf16.mxu0 0
  %2460 = vmatpush2.bf16.msra.mxu0 0
  %2461 = vmatprep.subr.bf16.mxu0 0
  %2462 = vmatpush2.bf16.msra.mxu0 0
  %2463 = vmatprep.subr.bf16.mxu0 0
  %2464 = vmatpush2.bf16.msra.mxu0 0
  %2465 = vmatprep.subr.bf16.mxu0 0
  %2466 = vmatpush2.bf16.msra.mxu0 0
  %2467 = vmatprep.subr.bf16.mxu0 0
  %2468 = vmatpush2.bf16.msra.mxu0 0
  %2469 = vmatprep.subr.bf16.mxu0 0
  %2470 = vmatpush2.bf16.msra.mxu0 0
  %2471 = vmatprep.subr.bf16.mxu0 0
  %2472 = vmatpush2.bf16.msra.mxu0 0
  %2473 = vmatprep.subr.bf16.mxu0 0
  %2474 = vmatpush2.bf16.msra.mxu0 0
  %2475 = vmatprep.mubr.bf16.mxu0 0
  %2476 = vmatmul.mubr.bf16.gmra.mxu0 %v2438
  %v2477 = vpop.f32.mrf.mxu0
  %v2478 = vadd.f32 0.0, %v2477
  %v2479 = vpop.f32.mrf.mxu0
  %v2480 = vpop.f32.mrf.mxu0
  %v2481 = vpop.f32.mrf.mxu0
  %2482 = vdwg.mxu0
  %v2483 = vpack.c.bf16 %v2478, %v2432
  %s2484 = scalar_lea.vmem %s4, 48
  %v2485 = vld [vmem:[%s2484] sm:$0xf]
  %v2486 = vld [vmem:[%s2484 + $0x4] sm:$0xf]
  %v2487 = vld [vmem:[%s2484 + $0x8] sm:$0xf]
  %v2488 = vld [vmem:[%s2484 + $0xc] sm:$0xf]
  %v2493 = vunpack.c.l.b16 %v2485
  %v2494 = vunpack.c.l.b16 %v2486
  %v2495 = vunpack.c.l.b16 %v2487
  %v2496 = vunpack.c.l.b16 %v2488
  %v2497 = vpack.c.b16 %v2494, %v2493
  %v2498 = vpack.c.b16 %v2496, %v2495
  %v2502 = vsel %vm395, %v2483, 0
  %2504 = vmatprep.subr.bf16.mxu0 0
  %2505 = vmatpush1.bf16.msra.mxu0 0
  %2506 = vmatprep.subr.bf16.mxu0 0
  %2507 = vmatpush1.bf16.msra.mxu0 0
  %2508 = vmatprep.subr.bf16.mxu0 0
  %2509 = vmatpush1.bf16.msra.mxu0 0
  %2510 = vmatprep.subr.bf16.mxu0 0
  %2511 = vmatpush1.bf16.msra.mxu0 0
  %2512 = vmatprep.subr.bf16.mxu0 0
  %2513 = vmatpush1.bf16.msra.mxu0 0
  %2514 = vmatprep.subr.bf16.mxu0 0
  %2515 = vmatpush1.bf16.msra.mxu0 0
  %2516 = vmatprep.subr.bf16.mxu0 0
  %2517 = vmatpush1.bf16.msra.mxu0 %v2498
  %2518 = vmatprep.subr.bf16.mxu0 0
  %2519 = vmatpush1.bf16.msra.mxu0 %v2497
  %2520 = vmatprep.subr.bf16.mxu0 0
  %2521 = vmatpush2.bf16.msra.mxu0 0
  %2522 = vmatprep.subr.bf16.mxu0 0
  %2523 = vmatpush2.bf16.msra.mxu0 0
  %2524 = vmatprep.subr.bf16.mxu0 0
  %2525 = vmatpush2.bf16.msra.mxu0 0
  %2526 = vmatprep.subr.bf16.mxu0 0
  %2527 = vmatpush2.bf16.msra.mxu0 0
  %2528 = vmatprep.subr.bf16.mxu0 0
  %2529 = vmatpush2.bf16.msra.mxu0 0
  %2530 = vmatprep.subr.bf16.mxu0 0
  %2531 = vmatpush2.bf16.msra.mxu0 0
  %2532 = vmatprep.subr.bf16.mxu0 0
  %2533 = vmatpush2.bf16.msra.mxu0 0
  %2534 = vmatprep.subr.bf16.mxu0 0
  %2535 = vmatpush2.bf16.msra.mxu0 0
  %2536 = vmatprep.mubr.bf16.mxu0 0
  %2537 = vmatmul.mubr.bf16.gmra.mxu0 %v2502
  %v2538 = vpop.f32.mrf.mxu0
  %v2539 = vadd.f32 0.0, %v2538
  %v2540 = vpop.f32.mrf.mxu0
  %v2541 = vpop.f32.mrf.mxu0
  %v2542 = vadd.f32 0.0, %v2541
  %v2543 = vpop.f32.mrf.mxu0
  %2544 = vdwg.mxu0
  %v2545 = vadd.f32 %v1921, %v2539
  %v2546 = vadd.f32 %v1922, %v2542
  %v2547 = vld [vmem:[%s6] sm:$0x1]
  %v2548 = vlaneseq
  %v2549 = vshrl.u32 %v2548, 7
  %v2550 = vsub.s32 0, %v2549
  %v2551 = vrot.slane %v2547, %v2550
  %v2552 = vadd.f32 %v2545, %v2551
  %v2553 = vadd.f32 %v2546, %v2551
  %v2554 = vunpack.c.l.bf16 %v29
  %v2555 = vunpack.c.l.bf16 %v30
  %v2556 = vadd.f32 %v2552, %v2554
  %v2557 = vadd.f32 %v2553, %v2555
  %2558 = vadd.xlane.f32.xlu0 %v2556
  %v2559 = vpop.xlane.xlu0 %2558
  %2560 = vadd.xlane.f32.xlu0 %v2557
  %v2561 = vpop.xlane.xlu0 %2560
  %v2562 = vrcp.pop 128.0
  %v2563 = vmul.f32 %v2559, %v2562
  %v2564 = vmul.f32 %v2561, %v2562
  %v2565 = vsub.f32 %v2556, %v2563
  %v2566 = vsub.f32 %v2557, %v2564
  %v2567 = vmul.f32 %v2565, %v2565
  %v2568 = vmul.f32 %v2566, %v2566
  %2569 = vadd.xlane.f32.xlu0 %v2567
  %v2570 = vpop.xlane.xlu0 %2569
  %2571 = vadd.xlane.f32.xlu0 %v2568
  %v2572 = vpop.xlane.xlu0 %2571
  %v2573 = vmul.f32 %v2570, %v2562
  %v2574 = vmul.f32 %v2572, %v2562
  %v2575 = vld [vmem:[%s6 + $0x1] sm:$0x1]
  %v2576 = vlaneseq
  %v2577 = vshrl.u32 %v2576, 7
  %v2578 = vsub.s32 0, %v2577
  %v2579 = vrot.slane %v2575, %v2578
  %v2580 = vmul.f32 %v2579, %v2565
  %v2581 = vmul.f32 %v2579, %v2566
  %v2582 = vadd.f32 %v2573, 1e-12
  %v2583 = vadd.f32 %v2574, 1e-12
  %v2584 = vrsqrt.pop %v2582
  %v2585 = vrsqrt.pop %v2583
  %v2586 = vmul.f32 %v2580, %v2584
  %v2587 = vmul.f32 %v2581, %v2585
  %v2588 = vld [vmem:[%s6 + $0x2] sm:$0x1]
  %v2589 = vlaneseq
  %v2590 = vshrl.u32 %v2589, 7
  %v2591 = vsub.s32 0, %v2590
  %v2592 = vrot.slane %v2588, %v2591
  %v2593 = vadd.f32 %v2586, %v2592
  %v2594 = vadd.f32 %v2587, %v2592
  %v2595 = vpack.c.bf16 %v2593, %v2593
  %v2596 = vpack.c.bf16 %v2594, %v2594
  %2597 = vst [vmem:[%s7] sm:$0xf] %v2595
  %2598 = vst [vmem:[%s7 + $0x4] sm:$0xf] %v2596
  // Predicated region
  $region30: #{decoder_layer.3} parent=0 // pred_check
    _
  $region31: #{decoder_layer.3} parent=0 // pred_check_branch
    %2600 = sbr.rel (0) target = $region33
  $region32: #{decoder_layer.3} parent=0 // pred_region
    _
  $region33: #{decoder_layer.3} parent=0 // pred_fallthru
    _
  // Predicated region
  $region34: #{decoder_layer.3} parent=0 // pred_check
    _
  $region35: #{decoder_layer.3} parent=0 // pred_check_branch
    %2602 = sbr.rel (0) target = $region37
  $region36: #{decoder_layer.3} parent=0 // pred_region
    _
  $region37: #{decoder_layer.3} parent=0 // pred_fallthru
    _

</llo_original>
